<compile_context>
chip_gen: v7x
topology: tpu7x:2x2x1
jax: 0.10.0
libtpu: 0.0.40
codegen_flags: <defaults>
</compile_context>

<pallas_src>
import math

import jax
import jax.numpy as jnp
from jax.experimental import pallas as pl
from jax.experimental.pallas import tpu as pltpu

# ---------------- scaled-down ViT configuration ----------------
IMAGE_H, IMAGE_W = 32, 32          # small spectrogram "image"
PATCH = 16                         # ViT-B/16 patch size
IN_CH = 3
NUM_CLASSES = 6                    # module default num_classes=6
HIDDEN = 128
NUM_HEADS = 4
D_HEAD = HIDDEN // NUM_HEADS       # 32
NUM_LAYERS = 2
MLP_DIM = 4 * HIDDEN               # 512 (same 4x ratio as ViT-B)
BATCH = 2
N_PATCHES = (IMAGE_H // PATCH) * (IMAGE_W // PATCH)   # 4
NUM_TOKENS = N_PATCHES + 1                            # 5 (class token + patches)
NUM_ROWS = BATCH * NUM_TOKENS                         # 10 stacked token rows
PATCH_DIM = IN_CH * PATCH * PATCH                     # 768
LN_EPS = 1e-6                      # torchvision ViT LayerNorm eps


# -----------------------------------------------------------------------------
# In-kernel helpers
# -----------------------------------------------------------------------------
def _layer_norm(v, g, b):
    mu = jnp.mean(v, axis=-1, keepdims=True)
    var = jnp.mean((v - mu) ** 2, axis=-1, keepdims=True)
    return (v - mu) * jax.lax.rsqrt(var + LN_EPS) * g + b


def _gelu(x):
    # Exact erf GELU — matches torch nn.GELU() (default approximate='none').
    return 0.5 * x * (1.0 + jax.lax.erf(x * (1.0 / math.sqrt(2.0))))


def _mm(a, w_bf16):
    # bf16 operands, f32 accumulation on the MXU.
    return jnp.dot(a.astype(jnp.bfloat16), w_bf16, preferred_element_type=jnp.float32)


# -----------------------------------------------------------------------------
# Single fused ViT forward kernel (whole batch in one grid step)
# -----------------------------------------------------------------------------
def vit_kernel(patches_ref, bias_ref, wp_ref, bp_ref, cls_ref, pos_ref,
               ln1_g_ref, ln1_b_ref, wqkv_ref, bqkv_ref, wo_ref, bo_ref,
               ln2_g_ref, ln2_b_ref, w1_ref, b1_ref, w2_ref, b2_ref,
               lnf_g_ref, lnf_b_ref, wh_ref, bh_ref, out_ref):
    # ---- patch embedding: Conv2d(3, H, kernel=P, stride=P) == one matmul ----
    # patches_ref holds B*T rows; class-token rows are zero, so their xproj
    # rows are just bp and get replaced below by the class embedding (no
    # sublane-axis concatenate needed).
    xproj = _mm(patches_ref[...], wp_ref[...]) + bp_ref[...]        # (BT, HIDDEN)
    row = jax.lax.broadcasted_iota(jnp.int32, (NUM_ROWS, 1), 0)
    is_cls = (row % NUM_TOKENS) == 0
    # class token + positional embedding (dropout = identity at eval)
    tok = jnp.where(is_cls, cls_ref[...], xproj) + pos_ref[...]     # (BT, HIDDEN)

    attn_bias = bias_ref[...]            # (BT, BT): 0 within image, -1e30 across
    inv_sqrt = 1.0 / math.sqrt(D_HEAD)

    for l in range(NUM_LAYERS):                                     # static unroll
        # --- pre-LN multi-head self-attention (all images stacked) ---
        y = _layer_norm(tok, ln1_g_ref[l], ln1_b_ref[l])
        qkv = _mm(y, wqkv_ref[l]) + bqkv_ref[l]                     # (BT, 3*HIDDEN)
        q = qkv[:, 0 * HIDDEN:1 * HIDDEN] * inv_sqrt                # fold 1/sqrt(dh)
        k = qkv[:, 1 * HIDDEN:2 * HIDDEN]
        v = qkv[:, 2 * HIDDEN:3 * HIDDEN]

        head_out = []
        for h in range(NUM_HEADS):
            sl = slice(h * D_HEAD, (h + 1) * D_HEAD)
            qh = q[:, sl].astype(jnp.bfloat16)
            kh = k[:, sl].astype(jnp.bfloat16)
            vh = v[:, sl].astype(jnp.bfloat16)
            s = jax.lax.dot_general(qh, kh, (((1,), (1,)), ((), ())),
                                    preferred_element_type=jnp.float32)   # (BT, BT)
            s = s + attn_bias                          # block-diagonal image mask
            s = s - jnp.max(s, axis=-1, keepdims=True)
            e = jnp.exp(s)
            p = e * pl.reciprocal(jnp.sum(e, axis=-1, keepdims=True), approx=True)
            head_out.append(jnp.dot(p.astype(jnp.bfloat16), vh,
                                    preferred_element_type=jnp.float32))  # (BT, dh)
        # Lane-concat heads, then ONE K=HIDDEN output-projection matmul.
        hv = jnp.concatenate(head_out, axis=-1)                     # (BT, HIDDEN)
        tok = tok + _mm(hv, wo_ref[l]) + bo_ref[l]

        # --- pre-LN MLP: Linear -> GELU -> Linear ---
        y2 = _layer_norm(tok, ln2_g_ref[l], ln2_b_ref[l])
        hmid = _gelu(_mm(y2, w1_ref[l]) + b1_ref[l])                # (BT, MLP_DIM)
        tok = tok + _mm(hmid, w2_ref[l]) + b2_ref[l]

    # --- final LayerNorm, Linear head, LogSoftmax(dim=1) on the class rows ---
    tok = _layer_norm(tok, lnf_g_ref[...], lnf_b_ref[...])
    logits = _mm(tok, wh_ref[...]) + bh_ref[...]                    # (BT, NUM_CLASSES)
    m = jnp.max(logits, axis=-1, keepdims=True)
    lse = m + jnp.log(jnp.sum(jnp.exp(logits - m), axis=-1, keepdims=True))
    logprobs = logits - lse
    for b in range(BATCH):                                          # 2 static row writes
        r = b * NUM_TOKENS
        out_ref[b:b + 1, :] = logprobs[r:r + 1, :]


# -----------------------------------------------------------------------------
# Host-side wrapper
# -----------------------------------------------------------------------------
def _full_spec(arr):
    zeros = (0,) * arr.ndim
    return pl.BlockSpec(arr.shape, lambda i, z=zeros: z)


def _extract_patch_tokens(x):
    """(B, C, H, W) -> (B*T, C*P*P) with a zero row per image at the cls slot.

    Patch rows match Conv2d(kernel=P, stride=P) + flatten + permute in the ViT.
    """
    B = x.shape[0]
    nh, nw = IMAGE_H // PATCH, IMAGE_W // PATCH
    p = x.reshape(B, IN_CH, nh, PATCH, nw, PATCH)
    p = p.transpose(0, 2, 4, 1, 3, 5).reshape(B, nh * nw, PATCH_DIM)
    zeros = jnp.zeros((B, 1, PATCH_DIM), p.dtype)                   # class-token slot
    return jnp.concatenate([zeros, p], axis=1).reshape(B * NUM_TOKENS, PATCH_DIM)


def forward(params, x):
    B = x.shape[0]
    patches_tok = _extract_patch_tokens(x)                          # (B*T, PATCH_DIM)
    pos_tiled = jnp.tile(params["pos"], (B, 1))                     # (B*T, HIDDEN)
    # block-diagonal attention mask: tokens only attend within their own image
    seg = jnp.repeat(jnp.arange(B), NUM_TOKENS)
    attn_bias = jnp.where(seg[:, None] == seg[None, :], 0.0, -1e30).astype(jnp.float32)

    weight_args = [params[k] for k in (
        "wp", "bp", "cls",
        # pos handled separately (tiled above)
        "ln1_g", "ln1_b", "wqkv", "bqkv", "wo", "bo",
        "ln2_g", "ln2_b", "w1", "b1", "w2", "b2",
        "lnf_g", "lnf_b", "wh", "bh")]
    args = [patches_tok, attn_bias,
            weight_args[0], weight_args[1], weight_args[2], pos_tiled] + weight_args[3:]

    out = pl.pallas_call(
        vit_kernel,
        grid=(1,),                                                  # whole batch, one step
        in_specs=[_full_spec(a) for a in args],
        out_specs=pl.BlockSpec((B, NUM_CLASSES), lambda i: (0, 0)),
        out_shape=jax.ShapeDtypeStruct((B, NUM_CLASSES), jnp.float32),
        compiler_params=pltpu.CompilerParams(dimension_semantics=("arbitrary",)),
    )(*args)
    return out


# -----------------------------------------------------------------------------
# Deterministic synthetic parameters (shapes from the scaled-down ViT)
# -----------------------------------------------------------------------------
def init_params(key):
    keys = iter(jax.random.split(key, 64))

    def nrm(shape, fan_in):
        w = jax.random.normal(next(keys), shape, jnp.float32) / math.sqrt(fan_in)
        return w.astype(jnp.bfloat16)      # matmul weights stored bf16 (MXU-native)

    def small(shape):
        return 0.02 * jax.random.normal(next(keys), shape, jnp.float32)

    def per_layer(fn):
        return jnp.stack([fn() for _ in range(NUM_LAYERS)], axis=0)

    p = {}
    # patch embedding (conv_proj flattened to (P*P*3, HIDDEN)) + bias
    p["wp"] = nrm((PATCH_DIM, HIDDEN), PATCH_DIM)
    p["bp"] = small((1, HIDDEN))
    # class token and learned positional embedding for num_patches + 1 tokens
    p["cls"] = small((1, HIDDEN))
    p["pos"] = small((NUM_TOKENS, HIDDEN))

    # transformer encoder layers (weights pre-transposed to (in, out), stacked on L)
    p["ln1_g"] = per_layer(lambda: 1.0 + small((1, HIDDEN)))
    p["ln1_b"] = per_layer(lambda: small((1, HIDDEN)))
    p["wqkv"] = per_layer(lambda: nrm((HIDDEN, 3 * HIDDEN), HIDDEN))
    p["bqkv"] = per_layer(lambda: small((1, 3 * HIDDEN)))
    p["wo"] = per_layer(lambda: nrm((HIDDEN, HIDDEN), HIDDEN))
    p["bo"] = per_layer(lambda: small((1, HIDDEN)))
    p["ln2_g"] = per_layer(lambda: 1.0 + small((1, HIDDEN)))
    p["ln2_b"] = per_layer(lambda: small((1, HIDDEN)))
    p["w1"] = per_layer(lambda: nrm((HIDDEN, MLP_DIM), HIDDEN))
    p["b1"] = per_layer(lambda: small((1, MLP_DIM)))
    p["w2"] = per_layer(lambda: nrm((MLP_DIM, HIDDEN), MLP_DIM))
    p["b2"] = per_layer(lambda: small((1, HIDDEN)))

    # final LayerNorm of the encoder
    p["lnf_g"] = 1.0 + small((1, HIDDEN))
    p["lnf_b"] = small((1, HIDDEN))

    # replaced head: Linear(hidden, num_classes) (+ LogSoftmax in-kernel)
    p["wh"] = nrm((HIDDEN, NUM_CLASSES), HIDDEN)
    p["bh"] = small((1, NUM_CLASSES))
    return p


if __name__ == "__main__":
    key = jax.random.PRNGKey(0)
    pkey, xkey = jax.random.split(key)
    params = init_params(pkey)
    x = jax.random.normal(xkey, (BATCH, IN_CH, IMAGE_H, IMAGE_W), jnp.float32)

    out = jax.jit(forward)(params, x)
    out = jax.block_until_ready(out)

    assert out.shape == (BATCH, NUM_CLASSES)
    assert bool(jnp.all(jnp.isfinite(out)))
    # LogSoftmax rows must exponentiate to ~1
    assert bool(jnp.all(jnp.abs(jnp.sum(jnp.exp(out), axis=1) - 1.0) < 1e-3))
    print("KERNEL_OK")
</pallas_src>

<mosaic_0001>
module attributes {stable_mosaic.version = 11 : i64} {
  func.func @vit_kernel(%arg0: i32, %arg1: memref<10x768xf32, #tpu.memory_space<vmem>>, %arg2: memref<10x10xf32, #tpu.memory_space<vmem>>, %arg3: memref<768x128xbf16, #tpu.memory_space<vmem>>, %arg4: memref<1x128xf32, #tpu.memory_space<vmem>>, %arg5: memref<1x128xf32, #tpu.memory_space<vmem>>, %arg6: memref<10x128xf32, #tpu.memory_space<vmem>>, %arg7: memref<2x1x128xf32, #tpu.memory_space<vmem>>, %arg8: memref<2x1x128xf32, #tpu.memory_space<vmem>>, %arg9: memref<2x128x384xbf16, #tpu.memory_space<vmem>>, %arg10: memref<2x1x384xf32, #tpu.memory_space<vmem>>, %arg11: memref<2x128x128xbf16, #tpu.memory_space<vmem>>, %arg12: memref<2x1x128xf32, #tpu.memory_space<vmem>>, %arg13: memref<2x1x128xf32, #tpu.memory_space<vmem>>, %arg14: memref<2x1x128xf32, #tpu.memory_space<vmem>>, %arg15: memref<2x128x512xbf16, #tpu.memory_space<vmem>>, %arg16: memref<2x1x512xf32, #tpu.memory_space<vmem>>, %arg17: memref<2x512x128xbf16, #tpu.memory_space<vmem>>, %arg18: memref<2x1x128xf32, #tpu.memory_space<vmem>>, %arg19: memref<1x128xf32, #tpu.memory_space<vmem>>, %arg20: memref<1x128xf32, #tpu.memory_space<vmem>>, %arg21: memref<128x6xbf16, #tpu.memory_space<vmem>>, %arg22: memref<1x6xf32, #tpu.memory_space<vmem>>, %arg23: memref<2x6xf32, #tpu.memory_space<vmem>>) attributes {dimension_semantics = [#tpu.dimension_semantics<arbitrary>], iteration_bounds = array<i64: 1>, scalar_prefetch = 0 : i64, scratch_operands = 0 : i64, tpu.core_type = #tpu.core_type<tc>, window_params = [{pipeline_mode = #tpu.pipeline_mode<synchronous>, transform_indices = @transform_0, window_bounds = array<i64: 10, 768>}, {pipeline_mode = #tpu.pipeline_mode<synchronous>, transform_indices = @transform_1, window_bounds = array<i64: 10, 10>}, {pipeline_mode = #tpu.pipeline_mode<synchronous>, transform_indices = @transform_2, window_bounds = array<i64: 768, 128>}, {pipeline_mode = #tpu.pipeline_mode<synchronous>, transform_indices = @transform_3, window_bounds = array<i64: 1, 128>}, {pipeline_mode = #tpu.pipeline_mode<synchronous>, transform_indices = @transform_4, window_bounds = array<i64: 1, 128>}, {pipeline_mode = #tpu.pipeline_mode<synchronous>, transform_indices = @transform_5, window_bounds = array<i64: 10, 128>}, {pipeline_mode = #tpu.pipeline_mode<synchronous>, transform_indices = @transform_6, window_bounds = array<i64: 2, 1, 128>}, {pipeline_mode = #tpu.pipeline_mode<synchronous>, transform_indices = @transform_7, window_bounds = array<i64: 2, 1, 128>}, {pipeline_mode = #tpu.pipeline_mode<synchronous>, transform_indices = @transform_8, window_bounds = array<i64: 2, 128, 384>}, {pipeline_mode = #tpu.pipeline_mode<synchronous>, transform_indices = @transform_9, window_bounds = array<i64: 2, 1, 384>}, {pipeline_mode = #tpu.pipeline_mode<synchronous>, transform_indices = @transform_10, window_bounds = array<i64: 2, 128, 128>}, {pipeline_mode = #tpu.pipeline_mode<synchronous>, transform_indices = @transform_11, window_bounds = array<i64: 2, 1, 128>}, {pipeline_mode = #tpu.pipeline_mode<synchronous>, transform_indices = @transform_12, window_bounds = array<i64: 2, 1, 128>}, {pipeline_mode = #tpu.pipeline_mode<synchronous>, transform_indices = @transform_13, window_bounds = array<i64: 2, 1, 128>}, {pipeline_mode = #tpu.pipeline_mode<synchronous>, transform_indices = @transform_14, window_bounds = array<i64: 2, 128, 512>}, {pipeline_mode = #tpu.pipeline_mode<synchronous>, transform_indices = @transform_15, window_bounds = array<i64: 2, 1, 512>}, {pipeline_mode = #tpu.pipeline_mode<synchronous>, transform_indices = @transform_16, window_bounds = array<i64: 2, 512, 128>}, {pipeline_mode = #tpu.pipeline_mode<synchronous>, transform_indices = @transform_17, window_bounds = array<i64: 2, 1, 128>}, {pipeline_mode = #tpu.pipeline_mode<synchronous>, transform_indices = @transform_18, window_bounds = array<i64: 1, 128>}, {pipeline_mode = #tpu.pipeline_mode<synchronous>, transform_indices = @transform_19, window_bounds = array<i64: 1, 128>}, {pipeline_mode = #tpu.pipeline_mode<synchronous>, transform_indices = @transform_20, window_bounds = array<i64: 128, 6>}, {pipeline_mode = #tpu.pipeline_mode<synchronous>, transform_indices = @transform_21, window_bounds = array<i64: 1, 6>}, {pipeline_mode = #tpu.pipeline_mode<synchronous>, transform_indices = @transform_22, window_bounds = array<i64: 2, 6>}]} {
    %c0 = arith.constant 0 : index
    %c0_0 = arith.constant 0 : index
    %0 = vector.load %arg1[%c0, %c0_0] : memref<10x768xf32, #tpu.memory_space<vmem>>, vector<10x768xf32>
    %c0_1 = arith.constant 0 : index
    %c0_2 = arith.constant 0 : index
    %1 = vector.load %arg3[%c0_1, %c0_2] : memref<768x128xbf16, #tpu.memory_space<vmem>>, vector<768x128xbf16>
    %2 = arith.truncf %0 : vector<10x768xf32> to vector<10x768xbf16>
    %cst = arith.constant dense<0.000000e+00> : vector<10x128xf32>
    %3 = tpu.matmul %2, %1, %cst {dimension_numbers = #tpu.dot_dimension_numbers<[1], [0], [0], [1], [0, 0, 1, 1], [], []>} : vector<10x768xbf16>, vector<768x128xbf16>, vector<10x128xf32> -> vector<10x128xf32>
    %c0_3 = arith.constant 0 : index
    %c0_4 = arith.constant 0 : index
    %4 = vector.load %arg4[%c0_3, %c0_4] : memref<1x128xf32, #tpu.memory_space<vmem>>, vector<1x128xf32>
    %5 = vector.broadcast %4 : vector<1x128xf32> to vector<10x128xf32>
    %6 = arith.addf %3, %5 : vector<10x128xf32>
    %7 = tpu.iota {dimensions = array<i32: 0>} : vector<10x1xi32>
    %c5_i32 = arith.constant 5 : i32
    %c0_i32 = arith.constant 0 : i32
    %8 = arith.cmpi eq, %c5_i32, %c0_i32 : i32
    %c1_i32 = arith.constant 1 : i32
    %9 = arith.select %8, %c1_i32, %c5_i32 : i32
    %10 = vector.broadcast %9 : i32 to vector<10x1xi32>
    %11 = arith.remsi %7, %10 : vector<10x1xi32>
    %c0_i32_5 = arith.constant 0 : i32
    %12 = vector.broadcast %c0_i32_5 : i32 to vector<10x1xi32>
    %13 = arith.cmpi ne, %11, %12 : vector<10x1xi32>
    %c0_i32_6 = arith.constant 0 : i32
    %14 = vector.broadcast %c0_i32_6 : i32 to vector<10x1xi32>
    %15 = arith.cmpi slt, %11, %14 : vector<10x1xi32>
    %c0_i32_7 = arith.constant 0 : i32
    %16 = arith.cmpi slt, %9, %c0_i32_7 : i32
    %17 = vector.broadcast %16 : i1 to vector<10x1xi1>
    %18 = vector.broadcast %17 : vector<10x1xi1> to vector<10x1xi1>
    %19 = arith.xori %15, %18 : vector<10x1xi1>
    %20 = arith.andi %19, %13 : vector<10x1xi1>
    %21 = vector.broadcast %9 : i32 to vector<10x1xi32>
    %22 = arith.addi %11, %21 : vector<10x1xi32>
    %23 = arith.select %20, %22, %11 : vector<10x1xi1>, vector<10x1xi32>
    %c0_i32_8 = arith.constant 0 : i32
    %24 = vector.broadcast %c0_i32_8 : i32 to vector<10x1xi32>
    %25 = arith.cmpi eq, %23, %24 : vector<10x1xi32>
    %c0_9 = arith.constant 0 : index
    %c0_10 = arith.constant 0 : index
    %26 = vector.load %arg5[%c0_9, %c0_10] : memref<1x128xf32, #tpu.memory_space<vmem>>, vector<1x128xf32>
    %27 = vector.shape_cast %25 : vector<10x1xi1> to vector<10x1xi1>
    %28 = vector.broadcast %27 : vector<10x1xi1> to vector<10x128xi1>
    %29 = vector.shape_cast %26 : vector<1x128xf32> to vector<1x128xf32>
    %30 = vector.broadcast %29 : vector<1x128xf32> to vector<10x128xf32>
    %31 = arith.select %28, %30, %6 : vector<10x128xi1>, vector<10x128xf32>
    %c0_11 = arith.constant 0 : index
    %c0_12 = arith.constant 0 : index
    %32 = vector.load %arg6[%c0_11, %c0_12] : memref<10x128xf32, #tpu.memory_space<vmem>>, vector<10x128xf32>
    %33 = arith.addf %31, %32 : vector<10x128xf32>
    %c0_13 = arith.constant 0 : index
    %c0_14 = arith.constant 0 : index
    %34 = vector.load %arg2[%c0_13, %c0_14] : memref<10x10xf32, #tpu.memory_space<vmem>>, vector<10x10xf32>
    %c0_15 = arith.constant 0 : index
    %c0_16 = arith.constant 0 : index
    %c0_17 = arith.constant 0 : index
    %35 = vector.load %arg7[%c0_15, %c0_16, %c0_17] : memref<2x1x128xf32, #tpu.memory_space<vmem>>, vector<1x1x128xf32>
    %36 = vector.shape_cast %35 : vector<1x1x128xf32> to vector<1x128xf32>
    %c0_18 = arith.constant 0 : index
    %c0_19 = arith.constant 0 : index
    %c0_20 = arith.constant 0 : index
    %37 = vector.load %arg8[%c0_18, %c0_19, %c0_20] : memref<2x1x128xf32, #tpu.memory_space<vmem>>, vector<1x1x128xf32>
    %38 = vector.shape_cast %37 : vector<1x1x128xf32> to vector<1x128xf32>
    %cst_21 = arith.constant dense<0.000000e+00> : vector<10xf32>
    %39 = vector.multi_reduction <add>, %33, %cst_21 [1] : vector<10x128xf32> to vector<10xf32>
    %40 = vector.shape_cast %39 : vector<10xf32> to vector<10x1xf32>
    %cst_22 = arith.constant 1.280000e+02 : f32
    %41 = vector.broadcast %cst_22 : f32 to vector<10x1xf32>
    %42 = arith.divf %40, %41 : vector<10x1xf32>
    %43 = vector.broadcast %42 : vector<10x1xf32> to vector<10x128xf32>
    %44 = arith.subf %33, %43 : vector<10x128xf32>
    %45 = arith.mulf %44, %44 : vector<10x128xf32>
    %cst_23 = arith.constant dense<0.000000e+00> : vector<10xf32>
    %46 = vector.multi_reduction <add>, %45, %cst_23 [1] : vector<10x128xf32> to vector<10xf32>
    %47 = vector.shape_cast %46 : vector<10xf32> to vector<10x1xf32>
    %cst_24 = arith.constant 1.280000e+02 : f32
    %48 = vector.broadcast %cst_24 : f32 to vector<10x1xf32>
    %49 = arith.divf %47, %48 : vector<10x1xf32>
    %50 = vector.broadcast %42 : vector<10x1xf32> to vector<10x128xf32>
    %51 = arith.subf %33, %50 : vector<10x128xf32>
    %cst_25 = arith.constant 9.99999997E-7 : f32
    %52 = vector.broadcast %cst_25 : f32 to vector<10x1xf32>
    %53 = arith.addf %49, %52 : vector<10x1xf32>
    %54 = math.rsqrt %53 : vector<10x1xf32>
    %55 = vector.broadcast %54 : vector<10x1xf32> to vector<10x128xf32>
    %56 = arith.mulf %51, %55 : vector<10x128xf32>
    %57 = vector.broadcast %36 : vector<1x128xf32> to vector<10x128xf32>
    %58 = arith.mulf %56, %57 : vector<10x128xf32>
    %59 = vector.broadcast %38 : vector<1x128xf32> to vector<10x128xf32>
    %60 = arith.addf %58, %59 : vector<10x128xf32>
    %c0_26 = arith.constant 0 : index
    %c0_27 = arith.constant 0 : index
    %c0_28 = arith.constant 0 : index
    %61 = vector.load %arg9[%c0_26, %c0_27, %c0_28] : memref<2x128x384xbf16, #tpu.memory_space<vmem>>, vector<1x128x384xbf16>
    %62 = vector.shape_cast %61 : vector<1x128x384xbf16> to vector<128x384xbf16>
    %63 = arith.truncf %60 : vector<10x128xf32> to vector<10x128xbf16>
    %cst_29 = arith.constant dense<0.000000e+00> : vector<10x384xf32>
    %64 = tpu.matmul %63, %62, %cst_29 {dimension_numbers = #tpu.dot_dimension_numbers<[1], [0], [0], [1], [0, 0, 1, 1], [], []>} : vector<10x128xbf16>, vector<128x384xbf16>, vector<10x384xf32> -> vector<10x384xf32>
    %c0_30 = arith.constant 0 : index
    %c0_31 = arith.constant 0 : index
    %c0_32 = arith.constant 0 : index
    %65 = vector.load %arg10[%c0_30, %c0_31, %c0_32] : memref<2x1x384xf32, #tpu.memory_space<vmem>>, vector<1x1x384xf32>
    %66 = vector.shape_cast %65 : vector<1x1x384xf32> to vector<1x384xf32>
    %67 = vector.broadcast %66 : vector<1x384xf32> to vector<10x384xf32>
    %68 = arith.addf %64, %67 : vector<10x384xf32>
    %69 = vector.extract_strided_slice %68 {offsets = [0, 0], sizes = [10, 128], strides = [1, 1]} : vector<10x384xf32> to vector<10x128xf32>
    %cst_33 = arith.constant 0.176776692 : f32
    %70 = vector.broadcast %cst_33 : f32 to vector<10x128xf32>
    %71 = arith.mulf %69, %70 : vector<10x128xf32>
    %72 = vector.extract_strided_slice %68 {offsets = [0, 128], sizes = [10, 128], strides = [1, 1]} : vector<10x384xf32> to vector<10x128xf32>
    %73 = vector.extract_strided_slice %68 {offsets = [0, 256], sizes = [10, 128], strides = [1, 1]} : vector<10x384xf32> to vector<10x128xf32>
    %74 = vector.extract_strided_slice %71 {offsets = [0, 0], sizes = [10, 32], strides = [1, 1]} : vector<10x128xf32> to vector<10x32xf32>
    %75 = arith.truncf %74 : vector<10x32xf32> to vector<10x32xbf16>
    %76 = vector.extract_strided_slice %72 {offsets = [0, 0], sizes = [10, 32], strides = [1, 1]} : vector<10x128xf32> to vector<10x32xf32>
    %77 = arith.truncf %76 : vector<10x32xf32> to vector<10x32xbf16>
    %78 = vector.extract_strided_slice %73 {offsets = [0, 0], sizes = [10, 32], strides = [1, 1]} : vector<10x128xf32> to vector<10x32xf32>
    %79 = arith.truncf %78 : vector<10x32xf32> to vector<10x32xbf16>
    %cst_34 = arith.constant dense<0.000000e+00> : vector<10x10xf32>
    %80 = tpu.matmul %75, %77, %cst_34 {dimension_numbers = #tpu.dot_dimension_numbers<[1], [1], [0], [0], [0, 0, 1, 0], [], []>} : vector<10x32xbf16>, vector<10x32xbf16>, vector<10x10xf32> -> vector<10x10xf32>
    %81 = arith.addf %80, %34 : vector<10x10xf32>
    %cst_35 = arith.constant dense<0xFF800000> : vector<10xf32>
    %82 = vector.multi_reduction <maximumf>, %81, %cst_35 [1] : vector<10x10xf32> to vector<10xf32>
    %83 = vector.shape_cast %82 : vector<10xf32> to vector<10x1xf32>
    %84 = vector.broadcast %83 : vector<10x1xf32> to vector<10x10xf32>
    %85 = arith.subf %81, %84 : vector<10x10xf32>
    %86 = math.exp %85 : vector<10x10xf32>
    %cst_36 = arith.constant dense<0.000000e+00> : vector<10xf32>
    %87 = vector.multi_reduction <add>, %86, %cst_36 [1] : vector<10x10xf32> to vector<10xf32>
    %88 = vector.shape_cast %87 : vector<10xf32> to vector<10x1xf32>
    %89 = tpu.reciprocal %88 {approx = true} : vector<10x1xf32> -> vector<10x1xf32>
    %90 = vector.broadcast %89 : vector<10x1xf32> to vector<10x10xf32>
    %91 = arith.mulf %86, %90 : vector<10x10xf32>
    %92 = arith.truncf %91 : vector<10x10xf32> to vector<10x10xbf16>
    %cst_37 = arith.constant dense<0.000000e+00> : vector<10x32xf32>
    %93 = tpu.matmul %92, %79, %cst_37 {dimension_numbers = #tpu.dot_dimension_numbers<[1], [0], [0], [1], [0, 0, 1, 1], [], []>} : vector<10x10xbf16>, vector<10x32xbf16>, vector<10x32xf32> -> vector<10x32xf32>
    %94 = vector.extract_strided_slice %71 {offsets = [0, 32], sizes = [10, 32], strides = [1, 1]} : vector<10x128xf32> to vector<10x32xf32>
    %95 = arith.truncf %94 : vector<10x32xf32> to vector<10x32xbf16>
    %96 = vector.extract_strided_slice %72 {offsets = [0, 32], sizes = [10, 32], strides = [1, 1]} : vector<10x128xf32> to vector<10x32xf32>
    %97 = arith.truncf %96 : vector<10x32xf32> to vector<10x32xbf16>
    %98 = vector.extract_strided_slice %73 {offsets = [0, 32], sizes = [10, 32], strides = [1, 1]} : vector<10x128xf32> to vector<10x32xf32>
    %99 = arith.truncf %98 : vector<10x32xf32> to vector<10x32xbf16>
    %cst_38 = arith.constant dense<0.000000e+00> : vector<10x10xf32>
    %100 = tpu.matmul %95, %97, %cst_38 {dimension_numbers = #tpu.dot_dimension_numbers<[1], [1], [0], [0], [0, 0, 1, 0], [], []>} : vector<10x32xbf16>, vector<10x32xbf16>, vector<10x10xf32> -> vector<10x10xf32>
    %101 = arith.addf %100, %34 : vector<10x10xf32>
    %cst_39 = arith.constant dense<0xFF800000> : vector<10xf32>
    %102 = vector.multi_reduction <maximumf>, %101, %cst_39 [1] : vector<10x10xf32> to vector<10xf32>
    %103 = vector.shape_cast %102 : vector<10xf32> to vector<10x1xf32>
    %104 = vector.broadcast %103 : vector<10x1xf32> to vector<10x10xf32>
    %105 = arith.subf %101, %104 : vector<10x10xf32>
    %106 = math.exp %105 : vector<10x10xf32>
    %cst_40 = arith.constant dense<0.000000e+00> : vector<10xf32>
    %107 = vector.multi_reduction <add>, %106, %cst_40 [1] : vector<10x10xf32> to vector<10xf32>
    %108 = vector.shape_cast %107 : vector<10xf32> to vector<10x1xf32>
    %109 = tpu.reciprocal %108 {approx = true} : vector<10x1xf32> -> vector<10x1xf32>
    %110 = vector.broadcast %109 : vector<10x1xf32> to vector<10x10xf32>
    %111 = arith.mulf %106, %110 : vector<10x10xf32>
    %112 = arith.truncf %111 : vector<10x10xf32> to vector<10x10xbf16>
    %cst_41 = arith.constant dense<0.000000e+00> : vector<10x32xf32>
    %113 = tpu.matmul %112, %99, %cst_41 {dimension_numbers = #tpu.dot_dimension_numbers<[1], [0], [0], [1], [0, 0, 1, 1], [], []>} : vector<10x10xbf16>, vector<10x32xbf16>, vector<10x32xf32> -> vector<10x32xf32>
    %114 = vector.extract_strided_slice %71 {offsets = [0, 64], sizes = [10, 32], strides = [1, 1]} : vector<10x128xf32> to vector<10x32xf32>
    %115 = arith.truncf %114 : vector<10x32xf32> to vector<10x32xbf16>
    %116 = vector.extract_strided_slice %72 {offsets = [0, 64], sizes = [10, 32], strides = [1, 1]} : vector<10x128xf32> to vector<10x32xf32>
    %117 = arith.truncf %116 : vector<10x32xf32> to vector<10x32xbf16>
    %118 = vector.extract_strided_slice %73 {offsets = [0, 64], sizes = [10, 32], strides = [1, 1]} : vector<10x128xf32> to vector<10x32xf32>
    %119 = arith.truncf %118 : vector<10x32xf32> to vector<10x32xbf16>
    %cst_42 = arith.constant dense<0.000000e+00> : vector<10x10xf32>
    %120 = tpu.matmul %115, %117, %cst_42 {dimension_numbers = #tpu.dot_dimension_numbers<[1], [1], [0], [0], [0, 0, 1, 0], [], []>} : vector<10x32xbf16>, vector<10x32xbf16>, vector<10x10xf32> -> vector<10x10xf32>
    %121 = arith.addf %120, %34 : vector<10x10xf32>
    %cst_43 = arith.constant dense<0xFF800000> : vector<10xf32>
    %122 = vector.multi_reduction <maximumf>, %121, %cst_43 [1] : vector<10x10xf32> to vector<10xf32>
    %123 = vector.shape_cast %122 : vector<10xf32> to vector<10x1xf32>
    %124 = vector.broadcast %123 : vector<10x1xf32> to vector<10x10xf32>
    %125 = arith.subf %121, %124 : vector<10x10xf32>
    %126 = math.exp %125 : vector<10x10xf32>
    %cst_44 = arith.constant dense<0.000000e+00> : vector<10xf32>
    %127 = vector.multi_reduction <add>, %126, %cst_44 [1] : vector<10x10xf32> to vector<10xf32>
    %128 = vector.shape_cast %127 : vector<10xf32> to vector<10x1xf32>
    %129 = tpu.reciprocal %128 {approx = true} : vector<10x1xf32> -> vector<10x1xf32>
    %130 = vector.broadcast %129 : vector<10x1xf32> to vector<10x10xf32>
    %131 = arith.mulf %126, %130 : vector<10x10xf32>
    %132 = arith.truncf %131 : vector<10x10xf32> to vector<10x10xbf16>
    %cst_45 = arith.constant dense<0.000000e+00> : vector<10x32xf32>
    %133 = tpu.matmul %132, %119, %cst_45 {dimension_numbers = #tpu.dot_dimension_numbers<[1], [0], [0], [1], [0, 0, 1, 1], [], []>} : vector<10x10xbf16>, vector<10x32xbf16>, vector<10x32xf32> -> vector<10x32xf32>
    %134 = vector.extract_strided_slice %71 {offsets = [0, 96], sizes = [10, 32], strides = [1, 1]} : vector<10x128xf32> to vector<10x32xf32>
    %135 = arith.truncf %134 : vector<10x32xf32> to vector<10x32xbf16>
    %136 = vector.extract_strided_slice %72 {offsets = [0, 96], sizes = [10, 32], strides = [1, 1]} : vector<10x128xf32> to vector<10x32xf32>
    %137 = arith.truncf %136 : vector<10x32xf32> to vector<10x32xbf16>
    %138 = vector.extract_strided_slice %73 {offsets = [0, 96], sizes = [10, 32], strides = [1, 1]} : vector<10x128xf32> to vector<10x32xf32>
    %139 = arith.truncf %138 : vector<10x32xf32> to vector<10x32xbf16>
    %cst_46 = arith.constant dense<0.000000e+00> : vector<10x10xf32>
    %140 = tpu.matmul %135, %137, %cst_46 {dimension_numbers = #tpu.dot_dimension_numbers<[1], [1], [0], [0], [0, 0, 1, 0], [], []>} : vector<10x32xbf16>, vector<10x32xbf16>, vector<10x10xf32> -> vector<10x10xf32>
    %141 = arith.addf %140, %34 : vector<10x10xf32>
    %cst_47 = arith.constant dense<0xFF800000> : vector<10xf32>
    %142 = vector.multi_reduction <maximumf>, %141, %cst_47 [1] : vector<10x10xf32> to vector<10xf32>
    %143 = vector.shape_cast %142 : vector<10xf32> to vector<10x1xf32>
    %144 = vector.broadcast %143 : vector<10x1xf32> to vector<10x10xf32>
    %145 = arith.subf %141, %144 : vector<10x10xf32>
    %146 = math.exp %145 : vector<10x10xf32>
    %cst_48 = arith.constant dense<0.000000e+00> : vector<10xf32>
    %147 = vector.multi_reduction <add>, %146, %cst_48 [1] : vector<10x10xf32> to vector<10xf32>
    %148 = vector.shape_cast %147 : vector<10xf32> to vector<10x1xf32>
    %149 = tpu.reciprocal %148 {approx = true} : vector<10x1xf32> -> vector<10x1xf32>
    %150 = vector.broadcast %149 : vector<10x1xf32> to vector<10x10xf32>
    %151 = arith.mulf %146, %150 : vector<10x10xf32>
    %152 = arith.truncf %151 : vector<10x10xf32> to vector<10x10xbf16>
    %cst_49 = arith.constant dense<0.000000e+00> : vector<10x32xf32>
    %153 = tpu.matmul %152, %139, %cst_49 {dimension_numbers = #tpu.dot_dimension_numbers<[1], [0], [0], [1], [0, 0, 1, 1], [], []>} : vector<10x10xbf16>, vector<10x32xbf16>, vector<10x32xf32> -> vector<10x32xf32>
    %154 = tpu.concatenate %93, %113, %133, %153 in 1 : vector<10x32xf32>, vector<10x32xf32>, vector<10x32xf32>, vector<10x32xf32> -> vector<10x128xf32>
    %c0_50 = arith.constant 0 : index
    %c0_51 = arith.constant 0 : index
    %c0_52 = arith.constant 0 : index
    %155 = vector.load %arg11[%c0_50, %c0_51, %c0_52] : memref<2x128x128xbf16, #tpu.memory_space<vmem>>, vector<1x128x128xbf16>
    %156 = vector.shape_cast %155 : vector<1x128x128xbf16> to vector<128x128xbf16>
    %157 = arith.truncf %154 : vector<10x128xf32> to vector<10x128xbf16>
    %cst_53 = arith.constant dense<0.000000e+00> : vector<10x128xf32>
    %158 = tpu.matmul %157, %156, %cst_53 {dimension_numbers = #tpu.dot_dimension_numbers<[1], [0], [0], [1], [0, 0, 1, 1], [], []>} : vector<10x128xbf16>, vector<128x128xbf16>, vector<10x128xf32> -> vector<10x128xf32>
    %159 = arith.addf %33, %158 : vector<10x128xf32>
    %c0_54 = arith.constant 0 : index
    %c0_55 = arith.constant 0 : index
    %c0_56 = arith.constant 0 : index
    %160 = vector.load %arg12[%c0_54, %c0_55, %c0_56] : memref<2x1x128xf32, #tpu.memory_space<vmem>>, vector<1x1x128xf32>
    %161 = vector.shape_cast %160 : vector<1x1x128xf32> to vector<1x128xf32>
    %162 = vector.broadcast %161 : vector<1x128xf32> to vector<10x128xf32>
    %163 = arith.addf %159, %162 : vector<10x128xf32>
    %c0_57 = arith.constant 0 : index
    %c0_58 = arith.constant 0 : index
    %c0_59 = arith.constant 0 : index
    %164 = vector.load %arg13[%c0_57, %c0_58, %c0_59] : memref<2x1x128xf32, #tpu.memory_space<vmem>>, vector<1x1x128xf32>
    %165 = vector.shape_cast %164 : vector<1x1x128xf32> to vector<1x128xf32>
    %c0_60 = arith.constant 0 : index
    %c0_61 = arith.constant 0 : index
    %c0_62 = arith.constant 0 : index
    %166 = vector.load %arg14[%c0_60, %c0_61, %c0_62] : memref<2x1x128xf32, #tpu.memory_space<vmem>>, vector<1x1x128xf32>
    %167 = vector.shape_cast %166 : vector<1x1x128xf32> to vector<1x128xf32>
    %cst_63 = arith.constant dense<0.000000e+00> : vector<10xf32>
    %168 = vector.multi_reduction <add>, %163, %cst_63 [1] : vector<10x128xf32> to vector<10xf32>
    %169 = vector.shape_cast %168 : vector<10xf32> to vector<10x1xf32>
    %cst_64 = arith.constant 1.280000e+02 : f32
    %170 = vector.broadcast %cst_64 : f32 to vector<10x1xf32>
    %171 = arith.divf %169, %170 : vector<10x1xf32>
    %172 = vector.broadcast %171 : vector<10x1xf32> to vector<10x128xf32>
    %173 = arith.subf %163, %172 : vector<10x128xf32>
    %174 = arith.mulf %173, %173 : vector<10x128xf32>
    %cst_65 = arith.constant dense<0.000000e+00> : vector<10xf32>
    %175 = vector.multi_reduction <add>, %174, %cst_65 [1] : vector<10x128xf32> to vector<10xf32>
    %176 = vector.shape_cast %175 : vector<10xf32> to vector<10x1xf32>
    %cst_66 = arith.constant 1.280000e+02 : f32
    %177 = vector.broadcast %cst_66 : f32 to vector<10x1xf32>
    %178 = arith.divf %176, %177 : vector<10x1xf32>
    %179 = vector.broadcast %171 : vector<10x1xf32> to vector<10x128xf32>
    %180 = arith.subf %163, %179 : vector<10x128xf32>
    %cst_67 = arith.constant 9.99999997E-7 : f32
    %181 = vector.broadcast %cst_67 : f32 to vector<10x1xf32>
    %182 = arith.addf %178, %181 : vector<10x1xf32>
    %183 = math.rsqrt %182 : vector<10x1xf32>
    %184 = vector.broadcast %183 : vector<10x1xf32> to vector<10x128xf32>
    %185 = arith.mulf %180, %184 : vector<10x128xf32>
    %186 = vector.broadcast %165 : vector<1x128xf32> to vector<10x128xf32>
    %187 = arith.mulf %185, %186 : vector<10x128xf32>
    %188 = vector.broadcast %167 : vector<1x128xf32> to vector<10x128xf32>
    %189 = arith.addf %187, %188 : vector<10x128xf32>
    %c0_68 = arith.constant 0 : index
    %c0_69 = arith.constant 0 : index
    %c0_70 = arith.constant 0 : index
    %190 = vector.load %arg15[%c0_68, %c0_69, %c0_70] : memref<2x128x512xbf16, #tpu.memory_space<vmem>>, vector<1x128x512xbf16>
    %191 = vector.shape_cast %190 : vector<1x128x512xbf16> to vector<128x512xbf16>
    %192 = arith.truncf %189 : vector<10x128xf32> to vector<10x128xbf16>
    %cst_71 = arith.constant dense<0.000000e+00> : vector<10x512xf32>
    %193 = tpu.matmul %192, %191, %cst_71 {dimension_numbers = #tpu.dot_dimension_numbers<[1], [0], [0], [1], [0, 0, 1, 1], [], []>} : vector<10x128xbf16>, vector<128x512xbf16>, vector<10x512xf32> -> vector<10x512xf32>
    %c0_72 = arith.constant 0 : index
    %c0_73 = arith.constant 0 : index
    %c0_74 = arith.constant 0 : index
    %194 = vector.load %arg16[%c0_72, %c0_73, %c0_74] : memref<2x1x512xf32, #tpu.memory_space<vmem>>, vector<1x1x512xf32>
    %195 = vector.shape_cast %194 : vector<1x1x512xf32> to vector<1x512xf32>
    %196 = vector.broadcast %195 : vector<1x512xf32> to vector<10x512xf32>
    %197 = arith.addf %193, %196 : vector<10x512xf32>
    %cst_75 = arith.constant 5.000000e-01 : f32
    %198 = vector.broadcast %cst_75 : f32 to vector<10x512xf32>
    %199 = arith.mulf %198, %197 : vector<10x512xf32>
    %cst_76 = arith.constant 0.707106769 : f32
    %200 = vector.broadcast %cst_76 : f32 to vector<10x512xf32>
    %201 = arith.mulf %197, %200 : vector<10x512xf32>
    %202 = math.erf %201 : vector<10x512xf32>
    %cst_77 = arith.constant 1.000000e+00 : f32
    %203 = vector.broadcast %cst_77 : f32 to vector<10x512xf32>
    %204 = arith.addf %203, %202 : vector<10x512xf32>
    %205 = arith.mulf %199, %204 : vector<10x512xf32>
    %c0_78 = arith.constant 0 : index
    %c0_79 = arith.constant 0 : index
    %c0_80 = arith.constant 0 : index
    %206 = vector.load %arg17[%c0_78, %c0_79, %c0_80] : memref<2x512x128xbf16, #tpu.memory_space<vmem>>, vector<1x512x128xbf16>
    %207 = vector.shape_cast %206 : vector<1x512x128xbf16> to vector<512x128xbf16>
    %208 = arith.truncf %205 : vector<10x512xf32> to vector<10x512xbf16>
    %cst_81 = arith.constant dense<0.000000e+00> : vector<10x128xf32>
    %209 = tpu.matmul %208, %207, %cst_81 {dimension_numbers = #tpu.dot_dimension_numbers<[1], [0], [0], [1], [0, 0, 1, 1], [], []>} : vector<10x512xbf16>, vector<512x128xbf16>, vector<10x128xf32> -> vector<10x128xf32>
    %210 = arith.addf %163, %209 : vector<10x128xf32>
    %c0_82 = arith.constant 0 : index
    %c0_83 = arith.constant 0 : index
    %c0_84 = arith.constant 0 : index
    %211 = vector.load %arg18[%c0_82, %c0_83, %c0_84] : memref<2x1x128xf32, #tpu.memory_space<vmem>>, vector<1x1x128xf32>
    %212 = vector.shape_cast %211 : vector<1x1x128xf32> to vector<1x128xf32>
    %213 = vector.broadcast %212 : vector<1x128xf32> to vector<10x128xf32>
    %214 = arith.addf %210, %213 : vector<10x128xf32>
    %c1 = arith.constant 1 : index
    %c0_85 = arith.constant 0 : index
    %c0_86 = arith.constant 0 : index
    %215 = vector.load %arg7[%c1, %c0_85, %c0_86] : memref<2x1x128xf32, #tpu.memory_space<vmem>>, vector<1x1x128xf32>
    %216 = vector.shape_cast %215 : vector<1x1x128xf32> to vector<1x128xf32>
    %c1_87 = arith.constant 1 : index
    %c0_88 = arith.constant 0 : index
    %c0_89 = arith.constant 0 : index
    %217 = vector.load %arg8[%c1_87, %c0_88, %c0_89] : memref<2x1x128xf32, #tpu.memory_space<vmem>>, vector<1x1x128xf32>
    %218 = vector.shape_cast %217 : vector<1x1x128xf32> to vector<1x128xf32>
    %cst_90 = arith.constant dense<0.000000e+00> : vector<10xf32>
    %219 = vector.multi_reduction <add>, %214, %cst_90 [1] : vector<10x128xf32> to vector<10xf32>
    %220 = vector.shape_cast %219 : vector<10xf32> to vector<10x1xf32>
    %cst_91 = arith.constant 1.280000e+02 : f32
    %221 = vector.broadcast %cst_91 : f32 to vector<10x1xf32>
    %222 = arith.divf %220, %221 : vector<10x1xf32>
    %223 = vector.broadcast %222 : vector<10x1xf32> to vector<10x128xf32>
    %224 = arith.subf %214, %223 : vector<10x128xf32>
    %225 = arith.mulf %224, %224 : vector<10x128xf32>
    %cst_92 = arith.constant dense<0.000000e+00> : vector<10xf32>
    %226 = vector.multi_reduction <add>, %225, %cst_92 [1] : vector<10x128xf32> to vector<10xf32>
    %227 = vector.shape_cast %226 : vector<10xf32> to vector<10x1xf32>
    %cst_93 = arith.constant 1.280000e+02 : f32
    %228 = vector.broadcast %cst_93 : f32 to vector<10x1xf32>
    %229 = arith.divf %227, %228 : vector<10x1xf32>
    %230 = vector.broadcast %222 : vector<10x1xf32> to vector<10x128xf32>
    %231 = arith.subf %214, %230 : vector<10x128xf32>
    %cst_94 = arith.constant 9.99999997E-7 : f32
    %232 = vector.broadcast %cst_94 : f32 to vector<10x1xf32>
    %233 = arith.addf %229, %232 : vector<10x1xf32>
    %234 = math.rsqrt %233 : vector<10x1xf32>
    %235 = vector.broadcast %234 : vector<10x1xf32> to vector<10x128xf32>
    %236 = arith.mulf %231, %235 : vector<10x128xf32>
    %237 = vector.broadcast %216 : vector<1x128xf32> to vector<10x128xf32>
    %238 = arith.mulf %236, %237 : vector<10x128xf32>
    %239 = vector.broadcast %218 : vector<1x128xf32> to vector<10x128xf32>
    %240 = arith.addf %238, %239 : vector<10x128xf32>
    %c1_95 = arith.constant 1 : index
    %c0_96 = arith.constant 0 : index
    %c0_97 = arith.constant 0 : index
    %241 = vector.load %arg9[%c1_95, %c0_96, %c0_97] : memref<2x128x384xbf16, #tpu.memory_space<vmem>>, vector<1x128x384xbf16>
    %242 = vector.shape_cast %241 : vector<1x128x384xbf16> to vector<128x384xbf16>
    %243 = arith.truncf %240 : vector<10x128xf32> to vector<10x128xbf16>
    %cst_98 = arith.constant dense<0.000000e+00> : vector<10x384xf32>
    %244 = tpu.matmul %243, %242, %cst_98 {dimension_numbers = #tpu.dot_dimension_numbers<[1], [0], [0], [1], [0, 0, 1, 1], [], []>} : vector<10x128xbf16>, vector<128x384xbf16>, vector<10x384xf32> -> vector<10x384xf32>
    %c1_99 = arith.constant 1 : index
    %c0_100 = arith.constant 0 : index
    %c0_101 = arith.constant 0 : index
    %245 = vector.load %arg10[%c1_99, %c0_100, %c0_101] : memref<2x1x384xf32, #tpu.memory_space<vmem>>, vector<1x1x384xf32>
    %246 = vector.shape_cast %245 : vector<1x1x384xf32> to vector<1x384xf32>
    %247 = vector.broadcast %246 : vector<1x384xf32> to vector<10x384xf32>
    %248 = arith.addf %244, %247 : vector<10x384xf32>
    %249 = vector.extract_strided_slice %248 {offsets = [0, 0], sizes = [10, 128], strides = [1, 1]} : vector<10x384xf32> to vector<10x128xf32>
    %cst_102 = arith.constant 0.176776692 : f32
    %250 = vector.broadcast %cst_102 : f32 to vector<10x128xf32>
    %251 = arith.mulf %249, %250 : vector<10x128xf32>
    %252 = vector.extract_strided_slice %248 {offsets = [0, 128], sizes = [10, 128], strides = [1, 1]} : vector<10x384xf32> to vector<10x128xf32>
    %253 = vector.extract_strided_slice %248 {offsets = [0, 256], sizes = [10, 128], strides = [1, 1]} : vector<10x384xf32> to vector<10x128xf32>
    %254 = vector.extract_strided_slice %251 {offsets = [0, 0], sizes = [10, 32], strides = [1, 1]} : vector<10x128xf32> to vector<10x32xf32>
    %255 = arith.truncf %254 : vector<10x32xf32> to vector<10x32xbf16>
    %256 = vector.extract_strided_slice %252 {offsets = [0, 0], sizes = [10, 32], strides = [1, 1]} : vector<10x128xf32> to vector<10x32xf32>
    %257 = arith.truncf %256 : vector<10x32xf32> to vector<10x32xbf16>
    %258 = vector.extract_strided_slice %253 {offsets = [0, 0], sizes = [10, 32], strides = [1, 1]} : vector<10x128xf32> to vector<10x32xf32>
    %259 = arith.truncf %258 : vector<10x32xf32> to vector<10x32xbf16>
    %cst_103 = arith.constant dense<0.000000e+00> : vector<10x10xf32>
    %260 = tpu.matmul %255, %257, %cst_103 {dimension_numbers = #tpu.dot_dimension_numbers<[1], [1], [0], [0], [0, 0, 1, 0], [], []>} : vector<10x32xbf16>, vector<10x32xbf16>, vector<10x10xf32> -> vector<10x10xf32>
    %261 = arith.addf %260, %34 : vector<10x10xf32>
    %cst_104 = arith.constant dense<0xFF800000> : vector<10xf32>
    %262 = vector.multi_reduction <maximumf>, %261, %cst_104 [1] : vector<10x10xf32> to vector<10xf32>
    %263 = vector.shape_cast %262 : vector<10xf32> to vector<10x1xf32>
    %264 = vector.broadcast %263 : vector<10x1xf32> to vector<10x10xf32>
    %265 = arith.subf %261, %264 : vector<10x10xf32>
    %266 = math.exp %265 : vector<10x10xf32>
    %cst_105 = arith.constant dense<0.000000e+00> : vector<10xf32>
    %267 = vector.multi_reduction <add>, %266, %cst_105 [1] : vector<10x10xf32> to vector<10xf32>
    %268 = vector.shape_cast %267 : vector<10xf32> to vector<10x1xf32>
    %269 = tpu.reciprocal %268 {approx = true} : vector<10x1xf32> -> vector<10x1xf32>
    %270 = vector.broadcast %269 : vector<10x1xf32> to vector<10x10xf32>
    %271 = arith.mulf %266, %270 : vector<10x10xf32>
    %272 = arith.truncf %271 : vector<10x10xf32> to vector<10x10xbf16>
    %cst_106 = arith.constant dense<0.000000e+00> : vector<10x32xf32>
    %273 = tpu.matmul %272, %259, %cst_106 {dimension_numbers = #tpu.dot_dimension_numbers<[1], [0], [0], [1], [0, 0, 1, 1], [], []>} : vector<10x10xbf16>, vector<10x32xbf16>, vector<10x32xf32> -> vector<10x32xf32>
    %274 = vector.extract_strided_slice %251 {offsets = [0, 32], sizes = [10, 32], strides = [1, 1]} : vector<10x128xf32> to vector<10x32xf32>
    %275 = arith.truncf %274 : vector<10x32xf32> to vector<10x32xbf16>
    %276 = vector.extract_strided_slice %252 {offsets = [0, 32], sizes = [10, 32], strides = [1, 1]} : vector<10x128xf32> to vector<10x32xf32>
    %277 = arith.truncf %276 : vector<10x32xf32> to vector<10x32xbf16>
    %278 = vector.extract_strided_slice %253 {offsets = [0, 32], sizes = [10, 32], strides = [1, 1]} : vector<10x128xf32> to vector<10x32xf32>
    %279 = arith.truncf %278 : vector<10x32xf32> to vector<10x32xbf16>
    %cst_107 = arith.constant dense<0.000000e+00> : vector<10x10xf32>
    %280 = tpu.matmul %275, %277, %cst_107 {dimension_numbers = #tpu.dot_dimension_numbers<[1], [1], [0], [0], [0, 0, 1, 0], [], []>} : vector<10x32xbf16>, vector<10x32xbf16>, vector<10x10xf32> -> vector<10x10xf32>
    %281 = arith.addf %280, %34 : vector<10x10xf32>
    %cst_108 = arith.constant dense<0xFF800000> : vector<10xf32>
    %282 = vector.multi_reduction <maximumf>, %281, %cst_108 [1] : vector<10x10xf32> to vector<10xf32>
    %283 = vector.shape_cast %282 : vector<10xf32> to vector<10x1xf32>
    %284 = vector.broadcast %283 : vector<10x1xf32> to vector<10x10xf32>
    %285 = arith.subf %281, %284 : vector<10x10xf32>
    %286 = math.exp %285 : vector<10x10xf32>
    %cst_109 = arith.constant dense<0.000000e+00> : vector<10xf32>
    %287 = vector.multi_reduction <add>, %286, %cst_109 [1] : vector<10x10xf32> to vector<10xf32>
    %288 = vector.shape_cast %287 : vector<10xf32> to vector<10x1xf32>
    %289 = tpu.reciprocal %288 {approx = true} : vector<10x1xf32> -> vector<10x1xf32>
    %290 = vector.broadcast %289 : vector<10x1xf32> to vector<10x10xf32>
    %291 = arith.mulf %286, %290 : vector<10x10xf32>
    %292 = arith.truncf %291 : vector<10x10xf32> to vector<10x10xbf16>
    %cst_110 = arith.constant dense<0.000000e+00> : vector<10x32xf32>
    %293 = tpu.matmul %292, %279, %cst_110 {dimension_numbers = #tpu.dot_dimension_numbers<[1], [0], [0], [1], [0, 0, 1, 1], [], []>} : vector<10x10xbf16>, vector<10x32xbf16>, vector<10x32xf32> -> vector<10x32xf32>
    %294 = vector.extract_strided_slice %251 {offsets = [0, 64], sizes = [10, 32], strides = [1, 1]} : vector<10x128xf32> to vector<10x32xf32>
    %295 = arith.truncf %294 : vector<10x32xf32> to vector<10x32xbf16>
    %296 = vector.extract_strided_slice %252 {offsets = [0, 64], sizes = [10, 32], strides = [1, 1]} : vector<10x128xf32> to vector<10x32xf32>
    %297 = arith.truncf %296 : vector<10x32xf32> to vector<10x32xbf16>
    %298 = vector.extract_strided_slice %253 {offsets = [0, 64], sizes = [10, 32], strides = [1, 1]} : vector<10x128xf32> to vector<10x32xf32>
    %299 = arith.truncf %298 : vector<10x32xf32> to vector<10x32xbf16>
    %cst_111 = arith.constant dense<0.000000e+00> : vector<10x10xf32>
    %300 = tpu.matmul %295, %297, %cst_111 {dimension_numbers = #tpu.dot_dimension_numbers<[1], [1], [0], [0], [0, 0, 1, 0], [], []>} : vector<10x32xbf16>, vector<10x32xbf16>, vector<10x10xf32> -> vector<10x10xf32>
    %301 = arith.addf %300, %34 : vector<10x10xf32>
    %cst_112 = arith.constant dense<0xFF800000> : vector<10xf32>
    %302 = vector.multi_reduction <maximumf>, %301, %cst_112 [1] : vector<10x10xf32> to vector<10xf32>
    %303 = vector.shape_cast %302 : vector<10xf32> to vector<10x1xf32>
    %304 = vector.broadcast %303 : vector<10x1xf32> to vector<10x10xf32>
    %305 = arith.subf %301, %304 : vector<10x10xf32>
    %306 = math.exp %305 : vector<10x10xf32>
    %cst_113 = arith.constant dense<0.000000e+00> : vector<10xf32>
    %307 = vector.multi_reduction <add>, %306, %cst_113 [1] : vector<10x10xf32> to vector<10xf32>
    %308 = vector.shape_cast %307 : vector<10xf32> to vector<10x1xf32>
    %309 = tpu.reciprocal %308 {approx = true} : vector<10x1xf32> -> vector<10x1xf32>
    %310 = vector.broadcast %309 : vector<10x1xf32> to vector<10x10xf32>
    %311 = arith.mulf %306, %310 : vector<10x10xf32>
    %312 = arith.truncf %311 : vector<10x10xf32> to vector<10x10xbf16>
    %cst_114 = arith.constant dense<0.000000e+00> : vector<10x32xf32>
    %313 = tpu.matmul %312, %299, %cst_114 {dimension_numbers = #tpu.dot_dimension_numbers<[1], [0], [0], [1], [0, 0, 1, 1], [], []>} : vector<10x10xbf16>, vector<10x32xbf16>, vector<10x32xf32> -> vector<10x32xf32>
    %314 = vector.extract_strided_slice %251 {offsets = [0, 96], sizes = [10, 32], strides = [1, 1]} : vector<10x128xf32> to vector<10x32xf32>
    %315 = arith.truncf %314 : vector<10x32xf32> to vector<10x32xbf16>
    %316 = vector.extract_strided_slice %252 {offsets = [0, 96], sizes = [10, 32], strides = [1, 1]} : vector<10x128xf32> to vector<10x32xf32>
    %317 = arith.truncf %316 : vector<10x32xf32> to vector<10x32xbf16>
    %318 = vector.extract_strided_slice %253 {offsets = [0, 96], sizes = [10, 32], strides = [1, 1]} : vector<10x128xf32> to vector<10x32xf32>
    %319 = arith.truncf %318 : vector<10x32xf32> to vector<10x32xbf16>
    %cst_115 = arith.constant dense<0.000000e+00> : vector<10x10xf32>
    %320 = tpu.matmul %315, %317, %cst_115 {dimension_numbers = #tpu.dot_dimension_numbers<[1], [1], [0], [0], [0, 0, 1, 0], [], []>} : vector<10x32xbf16>, vector<10x32xbf16>, vector<10x10xf32> -> vector<10x10xf32>
    %321 = arith.addf %320, %34 : vector<10x10xf32>
    %cst_116 = arith.constant dense<0xFF800000> : vector<10xf32>
    %322 = vector.multi_reduction <maximumf>, %321, %cst_116 [1] : vector<10x10xf32> to vector<10xf32>
    %323 = vector.shape_cast %322 : vector<10xf32> to vector<10x1xf32>
    %324 = vector.broadcast %323 : vector<10x1xf32> to vector<10x10xf32>
    %325 = arith.subf %321, %324 : vector<10x10xf32>
    %326 = math.exp %325 : vector<10x10xf32>
    %cst_117 = arith.constant dense<0.000000e+00> : vector<10xf32>
    %327 = vector.multi_reduction <add>, %326, %cst_117 [1] : vector<10x10xf32> to vector<10xf32>
    %328 = vector.shape_cast %327 : vector<10xf32> to vector<10x1xf32>
    %329 = tpu.reciprocal %328 {approx = true} : vector<10x1xf32> -> vector<10x1xf32>
    %330 = vector.broadcast %329 : vector<10x1xf32> to vector<10x10xf32>
    %331 = arith.mulf %326, %330 : vector<10x10xf32>
    %332 = arith.truncf %331 : vector<10x10xf32> to vector<10x10xbf16>
    %cst_118 = arith.constant dense<0.000000e+00> : vector<10x32xf32>
    %333 = tpu.matmul %332, %319, %cst_118 {dimension_numbers = #tpu.dot_dimension_numbers<[1], [0], [0], [1], [0, 0, 1, 1], [], []>} : vector<10x10xbf16>, vector<10x32xbf16>, vector<10x32xf32> -> vector<10x32xf32>
    %334 = tpu.concatenate %273, %293, %313, %333 in 1 : vector<10x32xf32>, vector<10x32xf32>, vector<10x32xf32>, vector<10x32xf32> -> vector<10x128xf32>
    %c1_119 = arith.constant 1 : index
    %c0_120 = arith.constant 0 : index
    %c0_121 = arith.constant 0 : index
    %335 = vector.load %arg11[%c1_119, %c0_120, %c0_121] : memref<2x128x128xbf16, #tpu.memory_space<vmem>>, vector<1x128x128xbf16>
    %336 = vector.shape_cast %335 : vector<1x128x128xbf16> to vector<128x128xbf16>
    %337 = arith.truncf %334 : vector<10x128xf32> to vector<10x128xbf16>
    %cst_122 = arith.constant dense<0.000000e+00> : vector<10x128xf32>
    %338 = tpu.matmul %337, %336, %cst_122 {dimension_numbers = #tpu.dot_dimension_numbers<[1], [0], [0], [1], [0, 0, 1, 1], [], []>} : vector<10x128xbf16>, vector<128x128xbf16>, vector<10x128xf32> -> vector<10x128xf32>
    %339 = arith.addf %214, %338 : vector<10x128xf32>
    %c1_123 = arith.constant 1 : index
    %c0_124 = arith.constant 0 : index
    %c0_125 = arith.constant 0 : index
    %340 = vector.load %arg12[%c1_123, %c0_124, %c0_125] : memref<2x1x128xf32, #tpu.memory_space<vmem>>, vector<1x1x128xf32>
    %341 = vector.shape_cast %340 : vector<1x1x128xf32> to vector<1x128xf32>
    %342 = vector.broadcast %341 : vector<1x128xf32> to vector<10x128xf32>
    %343 = arith.addf %339, %342 : vector<10x128xf32>
    %c1_126 = arith.constant 1 : index
    %c0_127 = arith.constant 0 : index
    %c0_128 = arith.constant 0 : index
    %344 = vector.load %arg13[%c1_126, %c0_127, %c0_128] : memref<2x1x128xf32, #tpu.memory_space<vmem>>, vector<1x1x128xf32>
    %345 = vector.shape_cast %344 : vector<1x1x128xf32> to vector<1x128xf32>
    %c1_129 = arith.constant 1 : index
    %c0_130 = arith.constant 0 : index
    %c0_131 = arith.constant 0 : index
    %346 = vector.load %arg14[%c1_129, %c0_130, %c0_131] : memref<2x1x128xf32, #tpu.memory_space<vmem>>, vector<1x1x128xf32>
    %347 = vector.shape_cast %346 : vector<1x1x128xf32> to vector<1x128xf32>
    %cst_132 = arith.constant dense<0.000000e+00> : vector<10xf32>
    %348 = vector.multi_reduction <add>, %343, %cst_132 [1] : vector<10x128xf32> to vector<10xf32>
    %349 = vector.shape_cast %348 : vector<10xf32> to vector<10x1xf32>
    %cst_133 = arith.constant 1.280000e+02 : f32
    %350 = vector.broadcast %cst_133 : f32 to vector<10x1xf32>
    %351 = arith.divf %349, %350 : vector<10x1xf32>
    %352 = vector.broadcast %351 : vector<10x1xf32> to vector<10x128xf32>
    %353 = arith.subf %343, %352 : vector<10x128xf32>
    %354 = arith.mulf %353, %353 : vector<10x128xf32>
    %cst_134 = arith.constant dense<0.000000e+00> : vector<10xf32>
    %355 = vector.multi_reduction <add>, %354, %cst_134 [1] : vector<10x128xf32> to vector<10xf32>
    %356 = vector.shape_cast %355 : vector<10xf32> to vector<10x1xf32>
    %cst_135 = arith.constant 1.280000e+02 : f32
    %357 = vector.broadcast %cst_135 : f32 to vector<10x1xf32>
    %358 = arith.divf %356, %357 : vector<10x1xf32>
    %359 = vector.broadcast %351 : vector<10x1xf32> to vector<10x128xf32>
    %360 = arith.subf %343, %359 : vector<10x128xf32>
    %cst_136 = arith.constant 9.99999997E-7 : f32
    %361 = vector.broadcast %cst_136 : f32 to vector<10x1xf32>
    %362 = arith.addf %358, %361 : vector<10x1xf32>
    %363 = math.rsqrt %362 : vector<10x1xf32>
    %364 = vector.broadcast %363 : vector<10x1xf32> to vector<10x128xf32>
    %365 = arith.mulf %360, %364 : vector<10x128xf32>
    %366 = vector.broadcast %345 : vector<1x128xf32> to vector<10x128xf32>
    %367 = arith.mulf %365, %366 : vector<10x128xf32>
    %368 = vector.broadcast %347 : vector<1x128xf32> to vector<10x128xf32>
    %369 = arith.addf %367, %368 : vector<10x128xf32>
    %c1_137 = arith.constant 1 : index
    %c0_138 = arith.constant 0 : index
    %c0_139 = arith.constant 0 : index
    %370 = vector.load %arg15[%c1_137, %c0_138, %c0_139] : memref<2x128x512xbf16, #tpu.memory_space<vmem>>, vector<1x128x512xbf16>
    %371 = vector.shape_cast %370 : vector<1x128x512xbf16> to vector<128x512xbf16>
    %372 = arith.truncf %369 : vector<10x128xf32> to vector<10x128xbf16>
    %cst_140 = arith.constant dense<0.000000e+00> : vector<10x512xf32>
    %373 = tpu.matmul %372, %371, %cst_140 {dimension_numbers = #tpu.dot_dimension_numbers<[1], [0], [0], [1], [0, 0, 1, 1], [], []>} : vector<10x128xbf16>, vector<128x512xbf16>, vector<10x512xf32> -> vector<10x512xf32>
    %c1_141 = arith.constant 1 : index
    %c0_142 = arith.constant 0 : index
    %c0_143 = arith.constant 0 : index
    %374 = vector.load %arg16[%c1_141, %c0_142, %c0_143] : memref<2x1x512xf32, #tpu.memory_space<vmem>>, vector<1x1x512xf32>
    %375 = vector.shape_cast %374 : vector<1x1x512xf32> to vector<1x512xf32>
    %376 = vector.broadcast %375 : vector<1x512xf32> to vector<10x512xf32>
    %377 = arith.addf %373, %376 : vector<10x512xf32>
    %cst_144 = arith.constant 5.000000e-01 : f32
    %378 = vector.broadcast %cst_144 : f32 to vector<10x512xf32>
    %379 = arith.mulf %378, %377 : vector<10x512xf32>
    %cst_145 = arith.constant 0.707106769 : f32
    %380 = vector.broadcast %cst_145 : f32 to vector<10x512xf32>
    %381 = arith.mulf %377, %380 : vector<10x512xf32>
    %382 = math.erf %381 : vector<10x512xf32>
    %cst_146 = arith.constant 1.000000e+00 : f32
    %383 = vector.broadcast %cst_146 : f32 to vector<10x512xf32>
    %384 = arith.addf %383, %382 : vector<10x512xf32>
    %385 = arith.mulf %379, %384 : vector<10x512xf32>
    %c1_147 = arith.constant 1 : index
    %c0_148 = arith.constant 0 : index
    %c0_149 = arith.constant 0 : index
    %386 = vector.load %arg17[%c1_147, %c0_148, %c0_149] : memref<2x512x128xbf16, #tpu.memory_space<vmem>>, vector<1x512x128xbf16>
    %387 = vector.shape_cast %386 : vector<1x512x128xbf16> to vector<512x128xbf16>
    %388 = arith.truncf %385 : vector<10x512xf32> to vector<10x512xbf16>
    %cst_150 = arith.constant dense<0.000000e+00> : vector<10x128xf32>
    %389 = tpu.matmul %388, %387, %cst_150 {dimension_numbers = #tpu.dot_dimension_numbers<[1], [0], [0], [1], [0, 0, 1, 1], [], []>} : vector<10x512xbf16>, vector<512x128xbf16>, vector<10x128xf32> -> vector<10x128xf32>
    %390 = arith.addf %343, %389 : vector<10x128xf32>
    %c1_151 = arith.constant 1 : index
    %c0_152 = arith.constant 0 : index
    %c0_153 = arith.constant 0 : index
    %391 = vector.load %arg18[%c1_151, %c0_152, %c0_153] : memref<2x1x128xf32, #tpu.memory_space<vmem>>, vector<1x1x128xf32>
    %392 = vector.shape_cast %391 : vector<1x1x128xf32> to vector<1x128xf32>
    %393 = vector.broadcast %392 : vector<1x128xf32> to vector<10x128xf32>
    %394 = arith.addf %390, %393 : vector<10x128xf32>
    %c0_154 = arith.constant 0 : index
    %c0_155 = arith.constant 0 : index
    %395 = vector.load %arg19[%c0_154, %c0_155] : memref<1x128xf32, #tpu.memory_space<vmem>>, vector<1x128xf32>
    %c0_156 = arith.constant 0 : index
    %c0_157 = arith.constant 0 : index
    %396 = vector.load %arg20[%c0_156, %c0_157] : memref<1x128xf32, #tpu.memory_space<vmem>>, vector<1x128xf32>
    %cst_158 = arith.constant dense<0.000000e+00> : vector<10xf32>
    %397 = vector.multi_reduction <add>, %394, %cst_158 [1] : vector<10x128xf32> to vector<10xf32>
    %398 = vector.shape_cast %397 : vector<10xf32> to vector<10x1xf32>
    %cst_159 = arith.constant 1.280000e+02 : f32
    %399 = vector.broadcast %cst_159 : f32 to vector<10x1xf32>
    %400 = arith.divf %398, %399 : vector<10x1xf32>
    %401 = vector.broadcast %400 : vector<10x1xf32> to vector<10x128xf32>
    %402 = arith.subf %394, %401 : vector<10x128xf32>
    %403 = arith.mulf %402, %402 : vector<10x128xf32>
    %cst_160 = arith.constant dense<0.000000e+00> : vector<10xf32>
    %404 = vector.multi_reduction <add>, %403, %cst_160 [1] : vector<10x128xf32> to vector<10xf32>
    %405 = vector.shape_cast %404 : vector<10xf32> to vector<10x1xf32>
    %cst_161 = arith.constant 1.280000e+02 : f32
    %406 = vector.broadcast %cst_161 : f32 to vector<10x1xf32>
    %407 = arith.divf %405, %406 : vector<10x1xf32>
    %408 = vector.broadcast %400 : vector<10x1xf32> to vector<10x128xf32>
    %409 = arith.subf %394, %408 : vector<10x128xf32>
    %cst_162 = arith.constant 9.99999997E-7 : f32
    %410 = vector.broadcast %cst_162 : f32 to vector<10x1xf32>
    %411 = arith.addf %407, %410 : vector<10x1xf32>
    %412 = math.rsqrt %411 : vector<10x1xf32>
    %413 = vector.broadcast %412 : vector<10x1xf32> to vector<10x128xf32>
    %414 = arith.mulf %409, %413 : vector<10x128xf32>
    %415 = vector.broadcast %395 : vector<1x128xf32> to vector<10x128xf32>
    %416 = arith.mulf %414, %415 : vector<10x128xf32>
    %417 = vector.broadcast %396 : vector<1x128xf32> to vector<10x128xf32>
    %418 = arith.addf %416, %417 : vector<10x128xf32>
    %c0_163 = arith.constant 0 : index
    %c0_164 = arith.constant 0 : index
    %419 = vector.load %arg21[%c0_163, %c0_164] : memref<128x6xbf16, #tpu.memory_space<vmem>>, vector<128x6xbf16>
    %420 = arith.truncf %418 : vector<10x128xf32> to vector<10x128xbf16>
    %cst_165 = arith.constant dense<0.000000e+00> : vector<10x6xf32>
    %421 = tpu.matmul %420, %419, %cst_165 {dimension_numbers = #tpu.dot_dimension_numbers<[1], [0], [0], [1], [0, 0, 1, 1], [], []>} : vector<10x128xbf16>, vector<128x6xbf16>, vector<10x6xf32> -> vector<10x6xf32>
    %c0_166 = arith.constant 0 : index
    %c0_167 = arith.constant 0 : index
    %422 = vector.load %arg22[%c0_166, %c0_167] : memref<1x6xf32, #tpu.memory_space<vmem>>, vector<1x6xf32>
    %423 = vector.broadcast %422 : vector<1x6xf32> to vector<10x6xf32>
    %424 = arith.addf %421, %423 : vector<10x6xf32>
    %cst_168 = arith.constant dense<0xFF800000> : vector<10xf32>
    %425 = vector.multi_reduction <maximumf>, %424, %cst_168 [1] : vector<10x6xf32> to vector<10xf32>
    %426 = vector.shape_cast %425 : vector<10xf32> to vector<10x1xf32>
    %427 = vector.broadcast %426 : vector<10x1xf32> to vector<10x6xf32>
    %428 = arith.subf %424, %427 : vector<10x6xf32>
    %429 = math.exp %428 : vector<10x6xf32>
    %cst_169 = arith.constant dense<0.000000e+00> : vector<10xf32>
    %430 = vector.multi_reduction <add>, %429, %cst_169 [1] : vector<10x6xf32> to vector<10xf32>
    %431 = vector.shape_cast %430 : vector<10xf32> to vector<10x1xf32>
    %432 = math.log %431 : vector<10x1xf32>
    %433 = arith.addf %426, %432 : vector<10x1xf32>
    %434 = vector.broadcast %433 : vector<10x1xf32> to vector<10x6xf32>
    %435 = arith.subf %424, %434 : vector<10x6xf32>
    %436 = vector.extract_strided_slice %435 {offsets = [0, 0], sizes = [1, 6], strides = [1, 1]} : vector<10x6xf32> to vector<1x6xf32>
    %c0_170 = arith.constant 0 : index
    %c0_171 = arith.constant 0 : index
    %437 = vector.load %arg23[%c0_170, %c0_171] : memref<2x6xf32, #tpu.memory_space<vmem>>, vector<1x6xf32>
    tpu.vector_store %arg23[%c0_170, %c0_171], %436 {strides = array<i32>} : memref<2x6xf32, #tpu.memory_space<vmem>>, vector<1x6xf32>,
    %438 = vector.extract_strided_slice %435 {offsets = [5, 0], sizes = [1, 6], strides = [1, 1]} : vector<10x6xf32> to vector<1x6xf32>
    %c1_172 = arith.constant 1 : index
    %c0_173 = arith.constant 0 : index
    %439 = vector.load %arg23[%c1_172, %c0_173] : memref<2x6xf32, #tpu.memory_space<vmem>>, vector<1x6xf32>
    tpu.vector_store %arg23[%c1_172, %c0_173], %438 {strides = array<i32>} : memref<2x6xf32, #tpu.memory_space<vmem>>, vector<1x6xf32>,
    return
  }
  func.func @transform_0(%arg0: i32) -> (i32, i32) {
    %c0_i32 = arith.constant 0 : i32
    %c0_i32_0 = arith.constant 0 : i32
    %c0_i32_1 = arith.constant 0 : i32
    return %c0_i32, %c0_i32_0 : i32, i32
  }
  func.func @transform_1(%arg0: i32) -> (i32, i32) {
    %c0_i32 = arith.constant 0 : i32
    %c0_i32_0 = arith.constant 0 : i32
    %c0_i32_1 = arith.constant 0 : i32
    return %c0_i32, %c0_i32_0 : i32, i32
  }
  func.func @transform_2(%arg0: i32) -> (i32, i32) {
    %c0_i32 = arith.constant 0 : i32
    %c0_i32_0 = arith.constant 0 : i32
    %c0_i32_1 = arith.constant 0 : i32
    return %c0_i32, %c0_i32_0 : i32, i32
  }
  func.func @transform_3(%arg0: i32) -> (i32, i32) {
    %c0_i32 = arith.constant 0 : i32
    %c0_i32_0 = arith.constant 0 : i32
    %c0_i32_1 = arith.constant 0 : i32
    return %c0_i32, %c0_i32_0 : i32, i32
  }
  func.func @transform_4(%arg0: i32) -> (i32, i32) {
    %c0_i32 = arith.constant 0 : i32
    %c0_i32_0 = arith.constant 0 : i32
    %c0_i32_1 = arith.constant 0 : i32
    return %c0_i32, %c0_i32_0 : i32, i32
  }
  func.func @transform_5(%arg0: i32) -> (i32, i32) {
    %c0_i32 = arith.constant 0 : i32
    %c0_i32_0 = arith.constant 0 : i32
    %c0_i32_1 = arith.constant 0 : i32
    return %c0_i32, %c0_i32_0 : i32, i32
  }
  func.func @transform_6(%arg0: i32) -> (i32, i32, i32) {
    %c0_i32 = arith.constant 0 : i32
    %c0_i32_0 = arith.constant 0 : i32
    %c0_i32_1 = arith.constant 0 : i32
    %c0_i32_2 = arith.constant 0 : i32
    return %c0_i32, %c0_i32_0, %c0_i32_1 : i32, i32, i32
  }
  func.func @transform_7(%arg0: i32) -> (i32, i32, i32) {
    %c0_i32 = arith.constant 0 : i32
    %c0_i32_0 = arith.constant 0 : i32
    %c0_i32_1 = arith.constant 0 : i32
    %c0_i32_2 = arith.constant 0 : i32
    return %c0_i32, %c0_i32_0, %c0_i32_1 : i32, i32, i32
  }
  func.func @transform_8(%arg0: i32) -> (i32, i32, i32) {
    %c0_i32 = arith.constant 0 : i32
    %c0_i32_0 = arith.constant 0 : i32
    %c0_i32_1 = arith.constant 0 : i32
    %c0_i32_2 = arith.constant 0 : i32
    return %c0_i32, %c0_i32_0, %c0_i32_1 : i32, i32, i32
  }
  func.func @transform_9(%arg0: i32) -> (i32, i32, i32) {
    %c0_i32 = arith.constant 0 : i32
    %c0_i32_0 = arith.constant 0 : i32
    %c0_i32_1 = arith.constant 0 : i32
    %c0_i32_2 = arith.constant 0 : i32
    return %c0_i32, %c0_i32_0, %c0_i32_1 : i32, i32, i32
  }
  func.func @transform_10(%arg0: i32) -> (i32, i32, i32) {
    %c0_i32 = arith.constant 0 : i32
    %c0_i32_0 = arith.constant 0 : i32
    %c0_i32_1 = arith.constant 0 : i32
    %c0_i32_2 = arith.constant 0 : i32
    return %c0_i32, %c0_i32_0, %c0_i32_1 : i32, i32, i32
  }
  func.func @transform_11(%arg0: i32) -> (i32, i32, i32) {
    %c0_i32 = arith.constant 0 : i32
    %c0_i32_0 = arith.constant 0 : i32
    %c0_i32_1 = arith.constant 0 : i32
    %c0_i32_2 = arith.constant 0 : i32
    return %c0_i32, %c0_i32_0, %c0_i32_1 : i32, i32, i32
  }
  func.func @transform_12(%arg0: i32) -> (i32, i32, i32) {
    %c0_i32 = arith.constant 0 : i32
    %c0_i32_0 = arith.constant 0 : i32
    %c0_i32_1 = arith.constant 0 : i32
    %c0_i32_2 = arith.constant 0 : i32
    return %c0_i32, %c0_i32_0, %c0_i32_1 : i32, i32, i32
  }
  func.func @transform_13(%arg0: i32) -> (i32, i32, i32) {
    %c0_i32 = arith.constant 0 : i32
    %c0_i32_0 = arith.constant 0 : i32
    %c0_i32_1 = arith.constant 0 : i32
    %c0_i32_2 = arith.constant 0 : i32
    return %c0_i32, %c0_i32_0, %c0_i32_1 : i32, i32, i32
  }
  func.func @transform_14(%arg0: i32) -> (i32, i32, i32) {
    %c0_i32 = arith.constant 0 : i32
    %c0_i32_0 = arith.constant 0 : i32
    %c0_i32_1 = arith.constant 0 : i32
    %c0_i32_2 = arith.constant 0 : i32
    return %c0_i32, %c0_i32_0, %c0_i32_1 : i32, i32, i32
  }
  func.func @transform_15(%arg0: i32) -> (i32, i32, i32) {
    %c0_i32 = arith.constant 0 : i32
    %c0_i32_0 = arith.constant 0 : i32
    %c0_i32_1 = arith.constant 0 : i32
    %c0_i32_2 = arith.constant 0 : i32
    return %c0_i32, %c0_i32_0, %c0_i32_1 : i32, i32, i32
  }
  func.func @transform_16(%arg0: i32) -> (i32, i32, i32) {
    %c0_i32 = arith.constant 0 : i32
    %c0_i32_0 = arith.constant 0 : i32
    %c0_i32_1 = arith.constant 0 : i32
    %c0_i32_2 = arith.constant 0 : i32
    return %c0_i32, %c0_i32_0, %c0_i32_1 : i32, i32, i32
  }
  func.func @transform_17(%arg0: i32) -> (i32, i32, i32) {
    %c0_i32 = arith.constant 0 : i32
    %c0_i32_0 = arith.constant 0 : i32
    %c0_i32_1 = arith.constant 0 : i32
    %c0_i32_2 = arith.constant 0 : i32
    return %c0_i32, %c0_i32_0, %c0_i32_1 : i32, i32, i32
  }
  func.func @transform_18(%arg0: i32) -> (i32, i32) {
    %c0_i32 = arith.constant 0 : i32
    %c0_i32_0 = arith.constant 0 : i32
    %c0_i32_1 = arith.constant 0 : i32
    return %c0_i32, %c0_i32_0 : i32, i32
  }
  func.func @transform_19(%arg0: i32) -> (i32, i32) {
    %c0_i32 = arith.constant 0 : i32
    %c0_i32_0 = arith.constant 0 : i32
    %c0_i32_1 = arith.constant 0 : i32
    return %c0_i32, %c0_i32_0 : i32, i32
  }
  func.func @transform_20(%arg0: i32) -> (i32, i32) {
    %c0_i32 = arith.constant 0 : i32
    %c0_i32_0 = arith.constant 0 : i32
    %c0_i32_1 = arith.constant 0 : i32
    return %c0_i32, %c0_i32_0 : i32, i32
  }
  func.func @transform_21(%arg0: i32) -> (i32, i32) {
    %c0_i32 = arith.constant 0 : i32
    %c0_i32_0 = arith.constant 0 : i32
    %c0_i32_1 = arith.constant 0 : i32
    return %c0_i32, %c0_i32_0 : i32, i32
  }
  func.func @transform_22(%arg0: i32) -> (i32, i32) {
    %c0_i32 = arith.constant 0 : i32
    %c0_i32_0 = arith.constant 0 : i32
    %c0_i32_1 = arith.constant 0 : i32
    return %c0_i32, %c0_i32_0 : i32, i32
  }
}

</mosaic_0001>

<llo_original>
// kernel: tile.9
$region0: #{tile.9}
  %s0 = inlined_call_operand.vmem [shape: f32[2,5,128], index: 0, kind: input, shape index: {}]
  %s1 = inlined_call_operand.vmem [shape: f32[10,128], index: 1, kind: output, shape index: {}]
  %v2 = vld [vmem:[%s0] sm:$0x1f]
  %3 = vst [vmem:[%s1] sm:$0x1f] %v2
  %s4 = scalar_lea.vmem %s0, 8
  %v5 = vld [vmem:[%s4] sm:$0x1f]
  %s6 = scalar_lea.vmem %s1, 5
  %7 = vst [vmem:[%s6] sm:$0x1f] %v5

// kernel: eq.8
$region0: #{eq.8}
  %s0 = inlined_call_operand.vmem [shape: s32[2,5], index: 0, kind: input, shape index: {}]
  %s1 = inlined_call_operand.vmem [shape: s32[10], index: 1, kind: output, shape index: {}]
  $region1: #{eq.8} parent=0
    #allocation0 [shape = 'u8[4096]{0}', space=vmem, size = 0x1000, scoped, tag = 'scoped mem for output reshape']
    #allocation1 [shape = 'u8[4096]{0}', space=vmem, size = 0x1000, scoped, tag = 'scoped mem for input reshape']
    %s3 = sshllo.u32 0, 2
    %v4 = vld [vmem:[%s0] sm:%s3]
    %5 = vst [vmem:[#allocation1] sm:%s3] %v4
    %v6 = vld [vmem:[#allocation1] sm:$0x1]
    %vm7 = vcmask 39936
    %8 = vst.msk [vmem:[#allocation0] sm:$0x1] %vm7, %v6
    %s9 = scalar_lea.vmem [#allocation1], 1
    %v10 = vld [vmem:[%s9] sm:$0x1]
    %11 = vrot.lane.b32.xlu0 %v10, 5
    %v12 = vpop.permute.xlu0 %11
    %vm13 = vcmask 80936
    %14 = vst.msk [vmem:[#allocation0] sm:$0x1] %vm13, %v12
    %s16 = sshllo.u32 0, 1
    %v18 = vld [vmem:[#allocation0] sm:%s16]
    %s19 = sshllo.u32 0, 1
    %20 = vst [vmem:[%s1] sm:%s19] %v18

// kernel: forward.1
$region0: #{forward.1}
  #allocation0 [shape = 'u32[]', space=smem, size = 0x4, offset = 0x4, fixed_abs, tag = 'smem constant byte address 0x4 - core index']
  #allocation1 [shape = 'u32[144,128]{1,0:T(1,128)}', space=vmem, size = 0x12000, scoped, tag = 'internal scratch']
  %s0 = inlined_call_operand.vmem [shape: f32[10,768], index: 0, kind: input, shape index: {}]
  %s1 = inlined_call_operand.vmem [shape: f32[10,10], index: 1, kind: input, shape index: {}]
  %s2 = inlined_call_operand.vmem [shape: bf16[768,128], index: 2, kind: input, shape index: {}]
  %s3 = inlined_call_operand.vmem [shape: f32[1,128], index: 3, kind: input, shape index: {}]
  %s4 = inlined_call_operand.vmem [shape: f32[1,128], index: 4, kind: input, shape index: {}]
  %s5 = inlined_call_operand.vmem [shape: f32[10,128], index: 5, kind: input, shape index: {}]
  %s6 = inlined_call_operand.vmem [shape: f32[2,1,128], index: 6, kind: input, shape index: {}]
  %s7 = inlined_call_operand.vmem [shape: f32[2,1,128], index: 7, kind: input, shape index: {}]
  %s8 = inlined_call_operand.vmem [shape: bf16[2,128,384], index: 8, kind: input, shape index: {}]
  %s9 = inlined_call_operand.vmem [shape: f32[2,1,384], index: 9, kind: input, shape index: {}]
  %s10 = inlined_call_operand.vmem [shape: bf16[2,128,128], index: 10, kind: input, shape index: {}]
  %s11 = inlined_call_operand.vmem [shape: f32[2,1,128], index: 11, kind: input, shape index: {}]
  %s12 = inlined_call_operand.vmem [shape: f32[2,1,128], index: 12, kind: input, shape index: {}]
  %s13 = inlined_call_operand.vmem [shape: f32[2,1,128], index: 13, kind: input, shape index: {}]
  %s14 = inlined_call_operand.vmem [shape: bf16[2,128,512], index: 14, kind: input, shape index: {}]
  %s15 = inlined_call_operand.vmem [shape: f32[2,1,512], index: 15, kind: input, shape index: {}]
  %s16 = inlined_call_operand.vmem [shape: bf16[2,512,128], index: 16, kind: input, shape index: {}]
  %s17 = inlined_call_operand.vmem [shape: f32[2,1,128], index: 17, kind: input, shape index: {}]
  %s18 = inlined_call_operand.vmem [shape: f32[1,128], index: 18, kind: input, shape index: {}]
  %s19 = inlined_call_operand.vmem [shape: f32[1,128], index: 19, kind: input, shape index: {}]
  %s20 = inlined_call_operand.vmem [shape: bf16[128,6], index: 20, kind: input, shape index: {}]
  %s21 = inlined_call_operand.vmem [shape: f32[1,6], index: 21, kind: input, shape index: {}]
  %s22 = inlined_call_operand.hbm [shape: f32[2,6], index: 22, kind: output, shape index: {}]
  %s23 = sld [smem:[#allocation0]]
  $region98: #{forward.1} parent=0
    _
  %s25 = ssub.s32 1, %s23
  %s26 = scalar_select 0, %s25, %s23
  $region1: #{forward.1} parent=0
    #allocation2 [shape = 'u8[1024]{0}', space=vmem, size = 0x400, scoped, tag = 'output window, operand 0, single buffered']
    #allocation3 [shape = 's32[1]{0}', space=sflag, size = 0x4, scoped, tag = 'scoped memory for forward.1']
    %27 = vsyncpa [#allocation3], 0
    // Predicated region
    $region2: #{forward.1} parent=1 // pred_check
      _
    $region3: #{forward.1} parent=1 // pred_check_branch
      %29 = sbr.rel (0) target = $region5
    $region4: #{forward.1} parent=1 // pred_region
      _
    $region5: #{forward.1} parent=1 // pred_fallthru
      _
    // Predicated region
    $region6: #{forward.1} parent=1 // pred_check
      _
    $region7: #{forward.1} parent=1 // pred_check_branch
      %31 = sbr.rel (0) target = $region9
    $region8: #{forward.1} parent=1 // pred_region
      _
    $region9: #{forward.1} parent=1 // pred_fallthru
      _
    // Predicated region
    $region10: #{forward.1} parent=1 // pred_check
      _
    $region11: #{forward.1} parent=1 // pred_check_branch
      %33 = sbr.rel (0) target = $region13
    $region12: #{forward.1} parent=1 // pred_region
      _
    $region13: #{forward.1} parent=1 // pred_fallthru
      _
    // Predicated region
    $region14: #{forward.1} parent=1 // pred_check
      _
    $region15: #{forward.1} parent=1 // pred_check_branch
      %35 = sbr.rel (0) target = $region17
    $region16: #{forward.1} parent=1 // pred_region
      _
    $region17: #{forward.1} parent=1 // pred_fallthru
      _
    // Predicated region
    $region18: #{forward.1} parent=1 // pred_check
      _
    $region19: #{forward.1} parent=1 // pred_check_branch
      %37 = sbr.rel (0) target = $region21
    $region20: #{forward.1} parent=1 // pred_region
      _
    $region21: #{forward.1} parent=1 // pred_fallthru
      _
    // Predicated region
    $region22: #{forward.1} parent=1 // pred_check
      _
    $region23: #{forward.1} parent=1 // pred_check_branch
      %39 = sbr.rel (0) target = $region25
    $region24: #{forward.1} parent=1 // pred_region
      _
    $region25: #{forward.1} parent=1 // pred_fallthru
      _
    // Predicated region
    $region26: #{forward.1} parent=1 // pred_check
      _
    $region27: #{forward.1} parent=1 // pred_check_branch
      %41 = sbr.rel (0) target = $region29
    $region28: #{forward.1} parent=1 // pred_region
      _
    $region29: #{forward.1} parent=1 // pred_fallthru
      _
    // Predicated region
    $region30: #{forward.1} parent=1 // pred_check
      _
    $region31: #{forward.1} parent=1 // pred_check_branch
      %43 = sbr.rel (0) target = $region33
    $region32: #{forward.1} parent=1 // pred_region
      _
    $region33: #{forward.1} parent=1 // pred_fallthru
      _
    // Predicated region
    $region34: #{forward.1} parent=1 // pred_check
      _
    $region35: #{forward.1} parent=1 // pred_check_branch
      %45 = sbr.rel (0) target = $region37
    $region36: #{forward.1} parent=1 // pred_region
      _
    $region37: #{forward.1} parent=1 // pred_fallthru
      _
    // Predicated region
    $region38: #{forward.1} parent=1 // pred_check
      _
    $region39: #{forward.1} parent=1 // pred_check_branch
      %47 = sbr.rel (0) target = $region41
    $region40: #{forward.1} parent=1 // pred_region
      _
    $region41: #{forward.1} parent=1 // pred_fallthru
      _
    // Predicated region
    $region42: #{forward.1} parent=1 // pred_check
      _
    $region43: #{forward.1} parent=1 // pred_check_branch
      %49 = sbr.rel (0) target = $region45
    $region44: #{forward.1} parent=1 // pred_region
      _
    $region45: #{forward.1} parent=1 // pred_fallthru
      _
    // Predicated region
    $region46: #{forward.1} parent=1 // pred_check
      _
    $region47: #{forward.1} parent=1 // pred_check_branch
      %51 = sbr.rel (0) target = $region49
    $region48: #{forward.1} parent=1 // pred_region
      _
    $region49: #{forward.1} parent=1 // pred_fallthru
      _
    // Predicated region
    $region50: #{forward.1} parent=1 // pred_check
      _
    $region51: #{forward.1} parent=1 // pred_check_branch
      %53 = sbr.rel (0) target = $region53
    $region52: #{forward.1} parent=1 // pred_region
      _
    $region53: #{forward.1} parent=1 // pred_fallthru
      _
    // Predicated region
    $region54: #{forward.1} parent=1 // pred_check
      _
    $region55: #{forward.1} parent=1 // pred_check_branch
      %55 = sbr.rel (0) target = $region57
    $region56: #{forward.1} parent=1 // pred_region
      _
    $region57: #{forward.1} parent=1 // pred_fallthru
      _
    // Predicated region
    $region58: #{forward.1} parent=1 // pred_check
      _
    $region59: #{forward.1} parent=1 // pred_check_branch
      %57 = sbr.rel (0) target = $region61
    $region60: #{forward.1} parent=1 // pred_region
      _
    $region61: #{forward.1} parent=1 // pred_fallthru
      _
    // Predicated region
    $region62: #{forward.1} parent=1 // pred_check
      _
    $region63: #{forward.1} parent=1 // pred_check_branch
      %59 = sbr.rel (0) target = $region65
    $region64: #{forward.1} parent=1 // pred_region
      _
    $region65: #{forward.1} parent=1 // pred_fallthru
      _
    // Predicated region
    $region66: #{forward.1} parent=1 // pred_check
      _
    $region67: #{forward.1} parent=1 // pred_check_branch
      %61 = sbr.rel (0) target = $region69
    $region68: #{forward.1} parent=1 // pred_region
      _
    $region69: #{forward.1} parent=1 // pred_fallthru
      _
    // Predicated region
    $region70: #{forward.1} parent=1 // pred_check
      _
    $region71: #{forward.1} parent=1 // pred_check_branch
      %63 = sbr.rel (0) target = $region73
    $region72: #{forward.1} parent=1 // pred_region
      _
    $region73: #{forward.1} parent=1 // pred_fallthru
      _
    // Predicated region
    $region74: #{forward.1} parent=1 // pred_check
      _
    $region75: #{forward.1} parent=1 // pred_check_branch
      %65 = sbr.rel (0) target = $region77
    $region76: #{forward.1} parent=1 // pred_region
      _
    $region77: #{forward.1} parent=1 // pred_fallthru
      _
    // Predicated region
    $region78: #{forward.1} parent=1 // pred_check
      _
    $region79: #{forward.1} parent=1 // pred_check_branch
      %67 = sbr.rel (0) target = $region81
    $region80: #{forward.1} parent=1 // pred_region
      _
    $region81: #{forward.1} parent=1 // pred_fallthru
      _
    // Predicated region
    $region82: #{forward.1} parent=1 // pred_check
      _
    $region83: #{forward.1} parent=1 // pred_check_branch
      %69 = sbr.rel (0) target = $region85
    $region84: #{forward.1} parent=1 // pred_region
      _
    $region85: #{forward.1} parent=1 // pred_fallthru
      _
    // Predicated region
    $region86: #{forward.1} parent=1 // pred_check
      _
    $region87: #{forward.1} parent=1 // pred_check_branch
      %71 = sbr.rel (0) target = $region89
    $region88: #{forward.1} parent=1 // pred_region
      _
    $region89: #{forward.1} parent=1 // pred_fallthru
      _
    %v73 = vld [vmem:[%s0] sm:$0xff]
    %v74 = vld [vmem:[%s0 + $0x8] sm:$0xff]
    %v75 = vld [vmem:[%s0 + $0x10] sm:$0xff]
    %v76 = vld [vmem:[%s0 + $0x18] sm:$0xff]
    %v77 = vld [vmem:[%s0 + $0x20] sm:$0xff]
    %v78 = vld [vmem:[%s0 + $0x28] sm:$0xff]
    %v79 = vld [vmem:[%s0 + $0x30] sm:$0x3]
    %v80 = vld [vmem:[%s0 + $0x38] sm:$0x3]
    %v81 = vld [vmem:[%s0 + $0x40] sm:$0x3]
    %v82 = vld [vmem:[%s0 + $0x48] sm:$0x3]
    %v83 = vld [vmem:[%s0 + $0x50] sm:$0x3]
    %v84 = vld [vmem:[%s0 + $0x58] sm:$0x3]
    %v85 = vld [vmem:[%s2] sm:$0xf]
    %v86 = vld [vmem:[%s2 + $0x4] sm:$0xf]
    %v87 = vld [vmem:[%s2 + $0x8] sm:$0xf]
    %v88 = vld [vmem:[%s2 + $0xc] sm:$0xf]
    %v89 = vld [vmem:[%s2 + $0x10] sm:$0xf]
    %v90 = vld [vmem:[%s2 + $0x14] sm:$0xf]
    %v91 = vld [vmem:[%s2 + $0x18] sm:$0xf]
    %v92 = vld [vmem:[%s2 + $0x1c] sm:$0xf]
    %v93 = vld [vmem:[%s2 + $0x20] sm:$0xf]
    %v94 = vld [vmem:[%s2 + $0x24] sm:$0xf]
    %v95 = vld [vmem:[%s2 + $0x28] sm:$0xf]
    %v96 = vld [vmem:[%s2 + $0x2c] sm:$0xf]
    %v97 = vld [vmem:[%s2 + $0x30] sm:$0xf]
    %v98 = vld [vmem:[%s2 + $0x34] sm:$0xf]
    %v99 = vld [vmem:[%s2 + $0x38] sm:$0xf]
    %v100 = vld [vmem:[%s2 + $0x3c] sm:$0xf]
    %v101 = vld [vmem:[%s2 + $0x40] sm:$0xf]
    %v102 = vld [vmem:[%s2 + $0x44] sm:$0xf]
    %v103 = vld [vmem:[%s2 + $0x48] sm:$0xf]
    %v104 = vld [vmem:[%s2 + $0x4c] sm:$0xf]
    %v105 = vld [vmem:[%s2 + $0x50] sm:$0xf]
    %v106 = vld [vmem:[%s2 + $0x54] sm:$0xf]
    %v107 = vld [vmem:[%s2 + $0x58] sm:$0xf]
    %v108 = vld [vmem:[%s2 + $0x5c] sm:$0xf]
    %v109 = vld [vmem:[%s2 + $0x60] sm:$0xf]
    %v110 = vld [vmem:[%s2 + $0x64] sm:$0xf]
    %v111 = vld [vmem:[%s2 + $0x68] sm:$0xf]
    %v112 = vld [vmem:[%s2 + $0x6c] sm:$0xf]
    %v113 = vld [vmem:[%s2 + $0x70] sm:$0xf]
    %v114 = vld [vmem:[%s2 + $0x74] sm:$0xf]
    %v115 = vld [vmem:[%s2 + $0x78] sm:$0xf]
    %v116 = vld [vmem:[%s2 + $0x7c] sm:$0xf]
    %v117 = vld [vmem:[%s2 + $0x80] sm:$0xf]
    %v118 = vld [vmem:[%s2 + $0x84] sm:$0xf]
    %v119 = vld [vmem:[%s2 + $0x88] sm:$0xf]
    %v120 = vld [vmem:[%s2 + $0x8c] sm:$0xf]
    %v121 = vld [vmem:[%s2 + $0x90] sm:$0xf]
    %v122 = vld [vmem:[%s2 + $0x94] sm:$0xf]
    %v123 = vld [vmem:[%s2 + $0x98] sm:$0xf]
    %v124 = vld [vmem:[%s2 + $0x9c] sm:$0xf]
    %v125 = vld [vmem:[%s2 + $0xa0] sm:$0xf]
    %v126 = vld [vmem:[%s2 + $0xa4] sm:$0xf]
    %v127 = vld [vmem:[%s2 + $0xa8] sm:$0xf]
    %v128 = vld [vmem:[%s2 + $0xac] sm:$0xf]
    %v129 = vld [vmem:[%s2 + $0xb0] sm:$0xf]
    %v130 = vld [vmem:[%s2 + $0xb4] sm:$0xf]
    %v131 = vld [vmem:[%s2 + $0xb8] sm:$0xf]
    %v132 = vld [vmem:[%s2 + $0xbc] sm:$0xf]
    %v133 = vld [vmem:[%s2 + $0xc0] sm:$0xf]
    %v134 = vld [vmem:[%s2 + $0xc4] sm:$0xf]
    %v135 = vld [vmem:[%s2 + $0xc8] sm:$0xf]
    %v136 = vld [vmem:[%s2 + $0xcc] sm:$0xf]
    %v137 = vld [vmem:[%s2 + $0xd0] sm:$0xf]
    %v138 = vld [vmem:[%s2 + $0xd4] sm:$0xf]
    %v139 = vld [vmem:[%s2 + $0xd8] sm:$0xf]
    %v140 = vld [vmem:[%s2 + $0xdc] sm:$0xf]
    %v141 = vld [vmem:[%s2 + $0xe0] sm:$0xf]
    %v142 = vld [vmem:[%s2 + $0xe4] sm:$0xf]
    %v143 = vld [vmem:[%s2 + $0xe8] sm:$0xf]
    %v144 = vld [vmem:[%s2 + $0xec] sm:$0xf]
    %v145 = vld [vmem:[%s2 + $0xf0] sm:$0xf]
    %v146 = vld [vmem:[%s2 + $0xf4] sm:$0xf]
    %v147 = vld [vmem:[%s2 + $0xf8] sm:$0xf]
    %v148 = vld [vmem:[%s2 + $0xfc] sm:$0xf]
    %v149 = vld [vmem:[%s2 + $0x100] sm:$0xf]
    %v150 = vld [vmem:[%s2 + $0x104] sm:$0xf]
    %v151 = vld [vmem:[%s2 + $0x108] sm:$0xf]
    %v152 = vld [vmem:[%s2 + $0x10c] sm:$0xf]
    %v153 = vld [vmem:[%s2 + $0x110] sm:$0xf]
    %v154 = vld [vmem:[%s2 + $0x114] sm:$0xf]
    %v155 = vld [vmem:[%s2 + $0x118] sm:$0xf]
    %v156 = vld [vmem:[%s2 + $0x11c] sm:$0xf]
    %v157 = vld [vmem:[%s2 + $0x120] sm:$0xf]
    %v158 = vld [vmem:[%s2 + $0x124] sm:$0xf]
    %v159 = vld [vmem:[%s2 + $0x128] sm:$0xf]
    %v160 = vld [vmem:[%s2 + $0x12c] sm:$0xf]
    %v161 = vld [vmem:[%s2 + $0x130] sm:$0xf]
    %v162 = vld [vmem:[%s2 + $0x134] sm:$0xf]
    %v163 = vld [vmem:[%s2 + $0x138] sm:$0xf]
    %v164 = vld [vmem:[%s2 + $0x13c] sm:$0xf]
    %v165 = vld [vmem:[%s2 + $0x140] sm:$0xf]
    %v166 = vld [vmem:[%s2 + $0x144] sm:$0xf]
    %v167 = vld [vmem:[%s2 + $0x148] sm:$0xf]
    %v168 = vld [vmem:[%s2 + $0x14c] sm:$0xf]
    %v169 = vld [vmem:[%s2 + $0x150] sm:$0xf]
    %v170 = vld [vmem:[%s2 + $0x154] sm:$0xf]
    %v171 = vld [vmem:[%s2 + $0x158] sm:$0xf]
    %v172 = vld [vmem:[%s2 + $0x15c] sm:$0xf]
    %v173 = vld [vmem:[%s2 + $0x160] sm:$0xf]
    %v174 = vld [vmem:[%s2 + $0x164] sm:$0xf]
    %v175 = vld [vmem:[%s2 + $0x168] sm:$0xf]
    %v176 = vld [vmem:[%s2 + $0x16c] sm:$0xf]
    %v177 = vld [vmem:[%s2 + $0x170] sm:$0xf]
    %v178 = vld [vmem:[%s2 + $0x174] sm:$0xf]
    %v179 = vld [vmem:[%s2 + $0x178] sm:$0xf]
    %v180 = vld [vmem:[%s2 + $0x17c] sm:$0xf]
    %v181 = vpack.c.bf16 %v79, %v73
    %v182 = vpack.c.bf16 %v80, %v74
    %v183 = vpack.c.bf16 %v81, %v75
    %v184 = vpack.c.bf16 %v82, %v76
    %v185 = vpack.c.bf16 %v83, %v77
    %v186 = vpack.c.bf16 %v84, %v78
    %v187 = vld [vmem:[%s3] sm:$0x1]
    %v189 = vlaneseq
    %v190 = vshrl.u32 %v189, 7
    %v191 = vsub.s32 0, %v190
    %v192 = vrot.slane %v187, %v191
    %v290 = vunpack.c.l.b16 %v85
    %v291 = vunpack.c.l.b16 %v86
    %v292 = vunpack.c.l.b16 %v87
    %v293 = vunpack.c.l.b16 %v88
    %v294 = vunpack.c.l.b16 %v89
    %v295 = vunpack.c.l.b16 %v90
    %v296 = vunpack.c.l.b16 %v91
    %v297 = vunpack.c.l.b16 %v92
    %v298 = vunpack.c.l.b16 %v93
    %v299 = vunpack.c.l.b16 %v94
    %v300 = vunpack.c.l.b16 %v95
    %v301 = vunpack.c.l.b16 %v96
    %v302 = vunpack.c.l.b16 %v97
    %v303 = vunpack.c.l.b16 %v98
    %v304 = vunpack.c.l.b16 %v99
    %v305 = vunpack.c.l.b16 %v100
    %v306 = vunpack.c.l.b16 %v101
    %v307 = vunpack.c.l.b16 %v102
    %v308 = vunpack.c.l.b16 %v103
    %v309 = vunpack.c.l.b16 %v104
    %v310 = vunpack.c.l.b16 %v105
    %v311 = vunpack.c.l.b16 %v106
    %v312 = vunpack.c.l.b16 %v107
    %v313 = vunpack.c.l.b16 %v108
    %v314 = vunpack.c.l.b16 %v109
    %v315 = vunpack.c.l.b16 %v110
    %v316 = vunpack.c.l.b16 %v111
    %v317 = vunpack.c.l.b16 %v112
    %v318 = vunpack.c.l.b16 %v113
    %v319 = vunpack.c.l.b16 %v114
    %v320 = vunpack.c.l.b16 %v115
    %v321 = vunpack.c.l.b16 %v116
    %v322 = vunpack.c.l.b16 %v117
    %v323 = vunpack.c.l.b16 %v118
    %v324 = vunpack.c.l.b16 %v119
    %v325 = vunpack.c.l.b16 %v120
    %v326 = vunpack.c.l.b16 %v121
    %v327 = vunpack.c.l.b16 %v122
    %v328 = vunpack.c.l.b16 %v123
    %v329 = vunpack.c.l.b16 %v124
    %v330 = vunpack.c.l.b16 %v125
    %v331 = vunpack.c.l.b16 %v126
    %v332 = vunpack.c.l.b16 %v127
    %v333 = vunpack.c.l.b16 %v128
    %v334 = vunpack.c.l.b16 %v129
    %v335 = vunpack.c.l.b16 %v130
    %v336 = vunpack.c.l.b16 %v131
    %v337 = vunpack.c.l.b16 %v132
    %v338 = vunpack.c.l.b16 %v133
    %v339 = vunpack.c.l.b16 %v134
    %v340 = vunpack.c.l.b16 %v135
    %v341 = vunpack.c.l.b16 %v136
    %v342 = vunpack.c.l.b16 %v137
    %v343 = vunpack.c.l.b16 %v138
    %v344 = vunpack.c.l.b16 %v139
    %v345 = vunpack.c.l.b16 %v140
    %v346 = vunpack.c.l.b16 %v141
    %v347 = vunpack.c.l.b16 %v142
    %v348 = vunpack.c.l.b16 %v143
    %v349 = vunpack.c.l.b16 %v144
    %v350 = vunpack.c.l.b16 %v145
    %v351 = vunpack.c.l.b16 %v146
    %v352 = vunpack.c.l.b16 %v147
    %v353 = vunpack.c.l.b16 %v148
    %v354 = vunpack.c.l.b16 %v149
    %v355 = vunpack.c.l.b16 %v150
    %v356 = vunpack.c.l.b16 %v151
    %v357 = vunpack.c.l.b16 %v152
    %v358 = vunpack.c.l.b16 %v153
    %v359 = vunpack.c.l.b16 %v154
    %v360 = vunpack.c.l.b16 %v155
    %v361 = vunpack.c.l.b16 %v156
    %v362 = vunpack.c.l.b16 %v157
    %v363 = vunpack.c.l.b16 %v158
    %v364 = vunpack.c.l.b16 %v159
    %v365 = vunpack.c.l.b16 %v160
    %v366 = vunpack.c.l.b16 %v161
    %v367 = vunpack.c.l.b16 %v162
    %v368 = vunpack.c.l.b16 %v163
    %v369 = vunpack.c.l.b16 %v164
    %v370 = vunpack.c.l.b16 %v165
    %v371 = vunpack.c.l.b16 %v166
    %v372 = vunpack.c.l.b16 %v167
    %v373 = vunpack.c.l.b16 %v168
    %v374 = vunpack.c.l.b16 %v169
    %v375 = vunpack.c.l.b16 %v170
    %v376 = vunpack.c.l.b16 %v171
    %v377 = vunpack.c.l.b16 %v172
    %v378 = vunpack.c.l.b16 %v173
    %v379 = vunpack.c.l.b16 %v174
    %v380 = vunpack.c.l.b16 %v175
    %v381 = vunpack.c.l.b16 %v176
    %v382 = vunpack.c.l.b16 %v177
    %v383 = vunpack.c.l.b16 %v178
    %v384 = vunpack.c.l.b16 %v179
    %v385 = vunpack.c.l.b16 %v180
    %v386 = vpack.c.b16 %v291, %v290
    %v387 = vpack.c.b16 %v293, %v292
    %v388 = vpack.c.b16 %v295, %v294
    %v389 = vpack.c.b16 %v297, %v296
    %v390 = vpack.c.b16 %v299, %v298
    %v391 = vpack.c.b16 %v301, %v300
    %v392 = vpack.c.b16 %v303, %v302
    %v393 = vpack.c.b16 %v305, %v304
    %v394 = vpack.c.b16 %v307, %v306
    %v395 = vpack.c.b16 %v309, %v308
    %v396 = vpack.c.b16 %v311, %v310
    %v397 = vpack.c.b16 %v313, %v312
    %v398 = vpack.c.b16 %v315, %v314
    %v399 = vpack.c.b16 %v317, %v316
    %v400 = vpack.c.b16 %v319, %v318
    %v401 = vpack.c.b16 %v321, %v320
    %v402 = vpack.c.b16 %v323, %v322
    %v403 = vpack.c.b16 %v325, %v324
    %v404 = vpack.c.b16 %v327, %v326
    %v405 = vpack.c.b16 %v329, %v328
    %v406 = vpack.c.b16 %v331, %v330
    %v407 = vpack.c.b16 %v333, %v332
    %v408 = vpack.c.b16 %v335, %v334
    %v409 = vpack.c.b16 %v337, %v336
    %v410 = vpack.c.b16 %v339, %v338
    %v411 = vpack.c.b16 %v341, %v340
    %v412 = vpack.c.b16 %v343, %v342
    %v413 = vpack.c.b16 %v345, %v344
    %v414 = vpack.c.b16 %v347, %v346
    %v415 = vpack.c.b16 %v349, %v348
    %v416 = vpack.c.b16 %v351, %v350
    %v417 = vpack.c.b16 %v353, %v352
    %v418 = vpack.c.b16 %v355, %v354
    %v419 = vpack.c.b16 %v357, %v356
    %v420 = vpack.c.b16 %v359, %v358
    %v421 = vpack.c.b16 %v361, %v360
    %v422 = vpack.c.b16 %v363, %v362
    %v423 = vpack.c.b16 %v365, %v364
    %v424 = vpack.c.b16 %v367, %v366
    %v425 = vpack.c.b16 %v369, %v368
    %v426 = vpack.c.b16 %v371, %v370
    %v427 = vpack.c.b16 %v373, %v372
    %v428 = vpack.c.b16 %v375, %v374
    %v429 = vpack.c.b16 %v377, %v376
    %v430 = vpack.c.b16 %v379, %v378
    %v431 = vpack.c.b16 %v381, %v380
    %v432 = vpack.c.b16 %v383, %v382
    %v433 = vpack.c.b16 %v385, %v384
    %482 = vmatprep.subr.bf16.mxu0 0
    %483 = vmatpush1.bf16.msra.mxu0 %v386
    %484 = vmatprep.subr.bf16.mxu0 0
    %485 = vmatpush1.bf16.msra.mxu0 %v387
    %486 = vmatprep.subr.bf16.mxu0 0
    %487 = vmatpush1.bf16.msra.mxu0 %v388
    %488 = vmatprep.subr.bf16.mxu0 0
    %489 = vmatpush1.bf16.msra.mxu0 %v389
    %490 = vmatprep.subr.bf16.mxu0 0
    %491 = vmatpush1.bf16.msra.mxu0 %v390
    %492 = vmatprep.subr.bf16.mxu0 0
    %493 = vmatpush1.bf16.msra.mxu0 %v391
    %494 = vmatprep.subr.bf16.mxu0 0
    %495 = vmatpush1.bf16.msra.mxu0 %v392
    %496 = vmatprep.subr.bf16.mxu0 0
    %497 = vmatpush1.bf16.msra.mxu0 %v393
    %498 = vmatprep.subr.bf16.mxu0 0
    %499 = vmatpush1.bf16.msra.mxu0 %v394
    %500 = vmatprep.subr.bf16.mxu0 0
    %501 = vmatpush1.bf16.msra.mxu0 %v395
    %502 = vmatprep.subr.bf16.mxu0 0
    %503 = vmatpush1.bf16.msra.mxu0 %v396
    %504 = vmatprep.subr.bf16.mxu0 0
    %505 = vmatpush1.bf16.msra.mxu0 %v397
    %506 = vmatprep.subr.bf16.mxu0 0
    %507 = vmatpush1.bf16.msra.mxu0 %v398
    %508 = vmatprep.subr.bf16.mxu0 0
    %509 = vmatpush1.bf16.msra.mxu0 %v399
    %510 = vmatprep.subr.bf16.mxu0 0
    %511 = vmatpush1.bf16.msra.mxu0 %v400
    %512 = vmatprep.subr.bf16.mxu0 0
    %513 = vmatpush1.bf16.msra.mxu0 %v401
    %514 = vmatprep.mubr.bf16.mxu0 %v182
    %515 = vmatmul.mubr.bf16.gmra.mrb[0].mxu0 %v181
    %v516 = vpop.f32.mrb[0].mxu0
    %v517 = vadd.f32 %v192, %v516
    %v518 = vpop.f32.mrb[0].mxu0
    %v519 = vpop.f32.mrb[0].mxu0
    %v520 = vadd.f32 %v192, %v519
    %v521 = vpop.f32.mrb[0].mxu0
    %522 = vdwg.mxu0
    %523 = vmatprep.subr.bf16.mxu0 0
    %524 = vmatpush1.bf16.msra.mxu0 %v402
    %525 = vmatprep.subr.bf16.mxu0 0
    %526 = vmatpush1.bf16.msra.mxu0 %v403
    %527 = vmatprep.subr.bf16.mxu0 0
    %528 = vmatpush1.bf16.msra.mxu0 %v404
    %529 = vmatprep.subr.bf16.mxu0 0
    %530 = vmatpush1.bf16.msra.mxu0 %v405
    %531 = vmatprep.subr.bf16.mxu0 0
    %532 = vmatpush1.bf16.msra.mxu0 %v406
    %533 = vmatprep.subr.bf16.mxu0 0
    %534 = vmatpush1.bf16.msra.mxu0 %v407
    %535 = vmatprep.subr.bf16.mxu0 0
    %536 = vmatpush1.bf16.msra.mxu0 %v408
    %537 = vmatprep.subr.bf16.mxu0 0
    %538 = vmatpush1.bf16.msra.mxu0 %v409
    %539 = vmatprep.subr.bf16.mxu0 0
    %540 = vmatpush1.bf16.msra.mxu0 %v410
    %541 = vmatprep.subr.bf16.mxu0 0
    %542 = vmatpush1.bf16.msra.mxu0 %v411
    %543 = vmatprep.subr.bf16.mxu0 0
    %544 = vmatpush1.bf16.msra.mxu0 %v412
    %545 = vmatprep.subr.bf16.mxu0 0
    %546 = vmatpush1.bf16.msra.mxu0 %v413
    %547 = vmatprep.subr.bf16.mxu0 0
    %548 = vmatpush1.bf16.msra.mxu0 %v414
    %549 = vmatprep.subr.bf16.mxu0 0
    %550 = vmatpush1.bf16.msra.mxu0 %v415
    %551 = vmatprep.subr.bf16.mxu0 0
    %552 = vmatpush1.bf16.msra.mxu0 %v416
    %553 = vmatprep.subr.bf16.mxu0 0
    %554 = vmatpush1.bf16.msra.mxu0 %v417
    %555 = vmatprep.mubr.bf16.mxu0 %v184
    %556 = vmatmul.mubr.bf16.gmra.mrb[0].mxu0 %v183
    %v557 = vpop.f32.mrb[0].mxu0
    %v558 = vadd.f32 %v517, %v557
    %v559 = vpop.f32.mrb[0].mxu0
    %v560 = vpop.f32.mrb[0].mxu0
    %v561 = vadd.f32 %v520, %v560
    %v562 = vpop.f32.mrb[0].mxu0
    %563 = vdwg.mxu0
    %564 = vmatprep.subr.bf16.mxu0 0
    %565 = vmatpush1.bf16.msra.mxu0 %v418
    %566 = vmatprep.subr.bf16.mxu0 0
    %567 = vmatpush1.bf16.msra.mxu0 %v419
    %568 = vmatprep.subr.bf16.mxu0 0
    %569 = vmatpush1.bf16.msra.mxu0 %v420
    %570 = vmatprep.subr.bf16.mxu0 0
    %571 = vmatpush1.bf16.msra.mxu0 %v421
    %572 = vmatprep.subr.bf16.mxu0 0
    %573 = vmatpush1.bf16.msra.mxu0 %v422
    %574 = vmatprep.subr.bf16.mxu0 0
    %575 = vmatpush1.bf16.msra.mxu0 %v423
    %576 = vmatprep.subr.bf16.mxu0 0
    %577 = vmatpush1.bf16.msra.mxu0 %v424
    %578 = vmatprep.subr.bf16.mxu0 0
    %579 = vmatpush1.bf16.msra.mxu0 %v425
    %580 = vmatprep.subr.bf16.mxu0 0
    %581 = vmatpush1.bf16.msra.mxu0 %v426
    %582 = vmatprep.subr.bf16.mxu0 0
    %583 = vmatpush1.bf16.msra.mxu0 %v427
    %584 = vmatprep.subr.bf16.mxu0 0
    %585 = vmatpush1.bf16.msra.mxu0 %v428
    %586 = vmatprep.subr.bf16.mxu0 0
    %587 = vmatpush1.bf16.msra.mxu0 %v429
    %588 = vmatprep.subr.bf16.mxu0 0
    %589 = vmatpush1.bf16.msra.mxu0 %v430
    %590 = vmatprep.subr.bf16.mxu0 0
    %591 = vmatpush1.bf16.msra.mxu0 %v431
    %592 = vmatprep.subr.bf16.mxu0 0
    %593 = vmatpush1.bf16.msra.mxu0 %v432
    %594 = vmatprep.subr.bf16.mxu0 0
    %595 = vmatpush1.bf16.msra.mxu0 %v433
    %596 = vmatprep.mubr.bf16.mxu0 %v186
    %597 = vmatmul.mubr.bf16.gmra.mrb[0].mxu0 %v185
    %v598 = vpop.f32.mrb[0].mxu0
    %v599 = vadd.f32 %v558, %v598
    %v600 = vpop.f32.mrb[0].mxu0
    %v601 = vpop.f32.mrb[0].mxu0
    %v602 = vadd.f32 %v561, %v601
    %v603 = vpop.f32.mrb[0].mxu0
    %604 = vdwg.mxu0
    %v605 = vlaneseq
    %v606 = vshrl.u32 %v605, 7
    %v607 = vadd.s32 %v606, 8
    %vm608 = vcmp.lt.s32.totalorder %v606, 0
    %v609 = vsub.s32 0, %v606
    %v610 = vsel %vm608, %v609, %v606
    %v611 = vmul.u32.u64.compose %v610, 3435973837
    %v612 = vextract.low.u32 %v611
    %v613 = vextract.high.u32 %v611
    %v614 = vshrl.u32 %v613, 2
    %v615 = vmul.u32 %v614, 5
    %v616 = vsub.s32 %v610, %v615
    %v617 = vsub.s32 0, %v616
    %v618 = vsel %vm608, %v617, %v616
    %vm619 = vcmp.lt.s32.totalorder %v607, 0
    %v620 = vsub.s32 0, %v607
    %v621 = vsel %vm619, %v620, %v607
    %v622 = vmul.u32.u64.compose %v621, 3435973837
    %v623 = vextract.low.u32 %v622
    %v624 = vextract.high.u32 %v622
    %v625 = vshrl.u32 %v624, 2
    %v626 = vmul.u32 %v625, 5
    %v627 = vsub.s32 %v621, %v626
    %v628 = vsub.s32 0, %v627
    %v629 = vsel %vm619, %v628, %v627
    %vm630 = vcmp.ne.s32.totalorder %v618, 0
    %vm631 = vcmp.ne.s32.totalorder %v629, 0
    %vm632 = vcmp.lt.s32.totalorder %v618, 0
    %vm633 = vcmp.lt.s32.totalorder %v629, 0
    %vm634 = vmand %vm632, %vm630
    %vm635 = vmand %vm633, %vm631
    %v636 = vadd.s32 %v618, 5
    %v637 = vadd.s32 %v629, 5
    %v638 = vsel %vm634, %v636, %v618
    %v639 = vsel %vm635, %v637, %v629
    %vm640 = vcmp.eq.s32.totalorder %v638, 0
    %vm641 = vcmp.eq.s32.totalorder %v639, 0
    %v642 = vld [vmem:[%s4] sm:$0x1]
    %v643 = vsel %vm640, 1, 0
    %v644 = vsel %vm641, 1, 0
    %vm645 = vcmp.eq.s32.totalorder %v643, 1
    %vm646 = vcmp.eq.s32.totalorder %v644, 1
    %v648 = vlaneseq
    %v649 = vshrl.u32 %v648, 7
    %v650 = vsub.s32 0, %v649
    %v651 = vrot.slane %v642, %v650
    %v653 = vsel %vm645, %v651, %v599
    %v654 = vsel %vm646, %v651, %v602
    %v655 = vld [vmem:[%s5] sm:$0xff]
    %v656 = vld [vmem:[%s5 + $0x8] sm:$0x3]
    %v657 = vadd.f32 %v653, %v655
    %v658 = vadd.f32 %v654, %v656
    %v659 = vld [vmem:[%s1] sm:$0xff]
    %v660 = vld [vmem:[%s1 + $0x8] sm:$0x3]
    %v661 = vld [vmem:[%s6] sm:$0x1]
    %v662 = vld [vmem:[%s7] sm:$0x1]
    %663 = vadd.xlane.f32.xlu0 %v657
    %v664 = vpop.xlane.xlu0 %663
    %vm665 = vcmask 1041408
    %v666 = vsel %vm665, %v658, 0.0
    %667 = vadd.xlane.f32.xlu0 %v666
    %v668 = vpop.xlane.xlu0 %667
    %v669 = vrcp.pop 128.0
    %v670 = vmul.f32 %v664, %v669
    %v671 = vmul.f32 %v668, %v669
    %v672 = vsub.f32 %v657, %v670
    %v673 = vsub.f32 %v658, %v671
    %v674 = vmul.f32 %v672, %v672
    %v675 = vmul.f32 %v673, %v673
    %676 = vadd.xlane.f32.xlu0 %v674
    %v677 = vpop.xlane.xlu0 %676
    %v678 = vsel %vm665, %v675, 0.0
    %679 = vadd.xlane.f32.xlu0 %v678
    %v680 = vpop.xlane.xlu0 %679
    %v681 = vmul.f32 %v677, %v669
    %v682 = vmul.f32 %v680, %v669
    %v683 = vadd.f32 %v681, 1e-06
    %v684 = vadd.f32 %v682, 1e-06
    %v685 = vrsqrt.pop %v683
    %v686 = vrsqrt.pop %v684
    %v687 = vmul.f32 %v672, %v685
    %v688 = vmul.f32 %v673, %v686
    %v690 = vlaneseq
    %v691 = vshrl.u32 %v690, 7
    %v692 = vsub.s32 0, %v691
    %v693 = vrot.slane %v661, %v692
    %v695 = vmul.f32 %v687, %v693
    %v696 = vmul.f32 %v688, %v693
    %v698 = vlaneseq
    %v699 = vshrl.u32 %v698, 7
    %v700 = vsub.s32 0, %v699
    %v701 = vrot.slane %v662, %v700
    %v703 = vadd.f32 %v695, %v701
    %v704 = vadd.f32 %v696, %v701
    %v705 = vld [vmem:[%s8] sm:$0xff]
    %v706 = vld [vmem:[%s8 + $0x8] sm:$0xf]
    %v707 = vld [vmem:[%s8 + $0xc] sm:$0xff]
    %v708 = vld [vmem:[%s8 + $0x14] sm:$0xf]
    %v709 = vld [vmem:[%s8 + $0x18] sm:$0xff]
    %v710 = vld [vmem:[%s8 + $0x20] sm:$0xf]
    %v711 = vld [vmem:[%s8 + $0x24] sm:$0xff]
    %v712 = vld [vmem:[%s8 + $0x2c] sm:$0xf]
    %v713 = vld [vmem:[%s8 + $0x30] sm:$0xff]
    %v714 = vld [vmem:[%s8 + $0x38] sm:$0xf]
    %v715 = vld [vmem:[%s8 + $0x3c] sm:$0xff]
    %v716 = vld [vmem:[%s8 + $0x44] sm:$0xf]
    %v717 = vld [vmem:[%s8 + $0x48] sm:$0xff]
    %v718 = vld [vmem:[%s8 + $0x50] sm:$0xf]
    %v719 = vld [vmem:[%s8 + $0x54] sm:$0xff]
    %v720 = vld [vmem:[%s8 + $0x5c] sm:$0xf]
    %v721 = vld [vmem:[%s8 + $0x60] sm:$0xff]
    %v722 = vld [vmem:[%s8 + $0x68] sm:$0xf]
    %v723 = vld [vmem:[%s8 + $0x6c] sm:$0xff]
    %v724 = vld [vmem:[%s8 + $0x74] sm:$0xf]
    %v725 = vld [vmem:[%s8 + $0x78] sm:$0xff]
    %v726 = vld [vmem:[%s8 + $0x80] sm:$0xf]
    %v727 = vld [vmem:[%s8 + $0x84] sm:$0xff]
    %v728 = vld [vmem:[%s8 + $0x8c] sm:$0xf]
    %v729 = vld [vmem:[%s8 + $0x90] sm:$0xff]
    %v730 = vld [vmem:[%s8 + $0x98] sm:$0xf]
    %v731 = vld [vmem:[%s8 + $0x9c] sm:$0xff]
    %v732 = vld [vmem:[%s8 + $0xa4] sm:$0xf]
    %v733 = vld [vmem:[%s8 + $0xa8] sm:$0xff]
    %v734 = vld [vmem:[%s8 + $0xb0] sm:$0xf]
    %v735 = vld [vmem:[%s8 + $0xb4] sm:$0xff]
    %v736 = vld [vmem:[%s8 + $0xbc] sm:$0xf]
    %v737 = vpack.c.bf16 %v704, %v703
    %v738 = vld [vmem:[%s9] sm:$0x7]
    %v740 = vlaneseq
    %v741 = vshrl.u32 %v740, 7
    %v742 = vsub.s32 0, %v741
    %v743 = vrot.slane %v738, %v742
    %v744 = vlaneseq
    %v745 = vshrl.u32 %v744, 7
    %v746 = vsub.s32 1, %v745
    %v747 = vrot.slane %v738, %v746
    %v748 = vlaneseq
    %v749 = vshrl.u32 %v748, 7
    %v750 = vsub.s32 2, %v749
    %v751 = vrot.slane %v738, %v750
    %v787 = vunpack.c.l.b16 %v705
    %v788 = vunpack.c.h.b16 %v705
    %v789 = vunpack.c.l.b16 %v706
    %v790 = vunpack.c.l.b16 %v707
    %v791 = vunpack.c.h.b16 %v707
    %v792 = vunpack.c.l.b16 %v708
    %v793 = vunpack.c.l.b16 %v709
    %v794 = vunpack.c.h.b16 %v709
    %v795 = vunpack.c.l.b16 %v710
    %v796 = vunpack.c.l.b16 %v711
    %v797 = vunpack.c.h.b16 %v711
    %v798 = vunpack.c.l.b16 %v712
    %v799 = vunpack.c.l.b16 %v713
    %v800 = vunpack.c.h.b16 %v713
    %v801 = vunpack.c.l.b16 %v714
    %v802 = vunpack.c.l.b16 %v715
    %v803 = vunpack.c.h.b16 %v715
    %v804 = vunpack.c.l.b16 %v716
    %v805 = vunpack.c.l.b16 %v717
    %v806 = vunpack.c.h.b16 %v717
    %v807 = vunpack.c.l.b16 %v718
    %v808 = vunpack.c.l.b16 %v719
    %v809 = vunpack.c.h.b16 %v719
    %v810 = vunpack.c.l.b16 %v720
    %v811 = vunpack.c.l.b16 %v721
    %v812 = vunpack.c.h.b16 %v721
    %v813 = vunpack.c.l.b16 %v722
    %v814 = vunpack.c.l.b16 %v723
    %v815 = vunpack.c.h.b16 %v723
    %v816 = vunpack.c.l.b16 %v724
    %v817 = vunpack.c.l.b16 %v725
    %v818 = vunpack.c.h.b16 %v725
    %v819 = vunpack.c.l.b16 %v726
    %v820 = vunpack.c.l.b16 %v727
    %v821 = vunpack.c.h.b16 %v727
    %v822 = vunpack.c.l.b16 %v728
    %v823 = vunpack.c.l.b16 %v729
    %v824 = vunpack.c.h.b16 %v729
    %v825 = vunpack.c.l.b16 %v730
    %v826 = vunpack.c.l.b16 %v731
    %v827 = vunpack.c.h.b16 %v731
    %v828 = vunpack.c.l.b16 %v732
    %v829 = vunpack.c.l.b16 %v733
    %v830 = vunpack.c.h.b16 %v733
    %v831 = vunpack.c.l.b16 %v734
    %v832 = vunpack.c.l.b16 %v735
    %v833 = vunpack.c.h.b16 %v735
    %v834 = vunpack.c.l.b16 %v736
    %v835 = vpack.c.b16 %v790, %v787
    %v836 = vpack.c.b16 %v791, %v788
    %v837 = vpack.c.b16 %v792, %v789
    %v838 = vpack.c.b16 %v796, %v793
    %v839 = vpack.c.b16 %v797, %v794
    %v840 = vpack.c.b16 %v798, %v795
    %v841 = vpack.c.b16 %v802, %v799
    %v842 = vpack.c.b16 %v803, %v800
    %v843 = vpack.c.b16 %v804, %v801
    %v844 = vpack.c.b16 %v808, %v805
    %v845 = vpack.c.b16 %v809, %v806
    %v846 = vpack.c.b16 %v810, %v807
    %v847 = vpack.c.b16 %v814, %v811
    %v848 = vpack.c.b16 %v815, %v812
    %v849 = vpack.c.b16 %v816, %v813
    %v850 = vpack.c.b16 %v820, %v817
    %v851 = vpack.c.b16 %v821, %v818
    %v852 = vpack.c.b16 %v822, %v819
    %v853 = vpack.c.b16 %v826, %v823
    %v854 = vpack.c.b16 %v827, %v824
    %v855 = vpack.c.b16 %v828, %v825
    %v856 = vpack.c.b16 %v832, %v829
    %v857 = vpack.c.b16 %v833, %v830
    %v858 = vpack.c.b16 %v834, %v831
    %883 = vmatprep.subr.bf16.mxu0 %v836
    %884 = vmatpush1.bf16.msra.mxu0 %v835
    %885 = vmatprep.subr.bf16.mxu0 %v839
    %886 = vmatpush1.bf16.msra.mxu0 %v838
    %887 = vmatprep.subr.bf16.mxu0 %v842
    %888 = vmatpush1.bf16.msra.mxu0 %v841
    %889 = vmatprep.subr.bf16.mxu0 %v845
    %890 = vmatpush1.bf16.msra.mxu0 %v844
    %891 = vmatprep.subr.bf16.mxu0 %v848
    %892 = vmatpush1.bf16.msra.mxu0 %v847
    %893 = vmatprep.subr.bf16.mxu0 %v851
    %894 = vmatpush1.bf16.msra.mxu0 %v850
    %895 = vmatprep.subr.bf16.mxu0 %v854
    %896 = vmatpush1.bf16.msra.mxu0 %v853
    %897 = vmatprep.subr.bf16.mxu0 %v857
    %898 = vmatpush1.bf16.msra.mxu0 %v856
    %899 = vmatprep.subr.bf16.mxu0 0
    %900 = vmatpush1.bf16.msra.mxu0 0
    %901 = vmatprep.subr.bf16.mxu0 0
    %902 = vmatpush1.bf16.msra.mxu0 0
    %903 = vmatprep.subr.bf16.mxu0 0
    %904 = vmatpush1.bf16.msra.mxu0 0
    %905 = vmatprep.subr.bf16.mxu0 0
    %906 = vmatpush1.bf16.msra.mxu0 0
    %907 = vmatprep.subr.bf16.mxu0 0
    %908 = vmatpush1.bf16.msra.mxu0 0
    %909 = vmatprep.subr.bf16.mxu0 0
    %910 = vmatpush1.bf16.msra.mxu0 0
    %911 = vmatprep.subr.bf16.mxu0 0
    %912 = vmatpush1.bf16.msra.mxu0 0
    %913 = vmatprep.subr.bf16.mxu0 0
    %914 = vmatpush1.bf16.msra.mxu0 0
    %915 = vmatprep.mubr.bf16.mxu0 0
    %916 = vmatmul.mubr.bf16.gmra.mrb[0].mxu0 %v737
    %v917 = vpop.f32.mrb[0].mxu0
    %v918 = vadd.f32 %v743, %v917
    %v919 = vpop.f32.mrb[0].mxu0
    %v920 = vadd.f32 %v747, %v919
    %v921 = vpop.f32.mrb[0].mxu0
    %v922 = vadd.f32 %v743, %v921
    %v923 = vpop.f32.mrb[0].mxu0
    %v924 = vadd.f32 %v747, %v923
    %925 = vdwg.mxu0
    %926 = vmatprep.subr.bf16.mxu0 0
    %927 = vmatpush1.bf16.msra.mxu0 %v837
    %928 = vmatprep.subr.bf16.mxu0 0
    %929 = vmatpush1.bf16.msra.mxu0 %v840
    %930 = vmatprep.subr.bf16.mxu0 0
    %931 = vmatpush1.bf16.msra.mxu0 %v843
    %932 = vmatprep.subr.bf16.mxu0 0
    %933 = vmatpush1.bf16.msra.mxu0 %v846
    %934 = vmatprep.subr.bf16.mxu0 0
    %935 = vmatpush1.bf16.msra.mxu0 %v849
    %936 = vmatprep.subr.bf16.mxu0 0
    %937 = vmatpush1.bf16.msra.mxu0 %v852
    %938 = vmatprep.subr.bf16.mxu0 0
    %939 = vmatpush1.bf16.msra.mxu0 %v855
    %940 = vmatprep.subr.bf16.mxu0 0
    %941 = vmatpush1.bf16.msra.mxu0 %v858
    %942 = vmatprep.subr.bf16.mxu0 0
    %943 = vmatpush1.bf16.msra.mxu0 0
    %944 = vmatprep.subr.bf16.mxu0 0
    %945 = vmatpush1.bf16.msra.mxu0 0
    %946 = vmatprep.subr.bf16.mxu0 0
    %947 = vmatpush1.bf16.msra.mxu0 0
    %948 = vmatprep.subr.bf16.mxu0 0
    %949 = vmatpush1.bf16.msra.mxu0 0
    %950 = vmatprep.subr.bf16.mxu0 0
    %951 = vmatpush1.bf16.msra.mxu0 0
    %952 = vmatprep.subr.bf16.mxu0 0
    %953 = vmatpush1.bf16.msra.mxu0 0
    %954 = vmatprep.subr.bf16.mxu0 0
    %955 = vmatpush1.bf16.msra.mxu0 0
    %956 = vmatprep.subr.bf16.mxu0 0
    %957 = vmatpush1.bf16.msra.mxu0 0
    %958 = vmatprep.mubr.bf16.mxu0 0
    %959 = vmatmul.mubr.bf16.gmra.mrb[0].mxu0 %v737
    %v960 = vpop.f32.mrb[0].mxu0
    %v961 = vadd.f32 %v751, %v960
    %v962 = vpop.f32.mrb[0].mxu0
    %v963 = vpop.f32.mrb[0].mxu0
    %v964 = vadd.f32 %v751, %v963
    %v965 = vpop.f32.mrb[0].mxu0
    %966 = vdwg.mxu0
    %v967 = vmul.f32 %v918, 0.17677669
    %v968 = vmul.f32 %v922, 0.17677669
    %v969 = vpack.c.bf16 %v968, %v967
    %v970 = vpack.c.bf16 %v924, %v920
    %v971 = vpack.c.bf16 %v964, %v961
    %vm972 = vcmask 261120
    %v974 = vsel %vm972, %v969, 0
    %v977 = vsel %vm972, %v970, 0
    %979 = vmatprep.subr.bf16.mxu0 0
    %980 = vmatpush1.bf16.xpose.msra.mxu0 %v977
    %981 = vmatprep.subr.bf16.mxu0 0
    %982 = vmatpush1.bf16.xpose.msra.mxu0 0
    %983 = vmatprep.subr.bf16.mxu0 0
    %984 = vmatpush1.bf16.xpose.msra.mxu0 0
    %985 = vmatprep.subr.bf16.mxu0 0
    %986 = vmatpush1.bf16.xpose.msra.mxu0 0
    %987 = vmatprep.subr.bf16.mxu0 0
    %988 = vmatpush1.bf16.xpose.msra.mxu0 0
    %989 = vmatprep.subr.bf16.mxu0 0
    %990 = vmatpush1.bf16.xpose.msra.mxu0 0
    %991 = vmatprep.subr.bf16.mxu0 0
    %992 = vmatpush1.bf16.xpose.msra.mxu0 0
    %993 = vmatprep.subr.bf16.mxu0 0
    %994 = vmatpush1.bf16.xpose.msra.mxu0 0
    %995 = vmatprep.subr.bf16.mxu0 0
    %996 = vmatpush1.bf16.xpose.msra.mxu0 0
    %997 = vmatprep.subr.bf16.mxu0 0
    %998 = vmatpush1.bf16.xpose.msra.mxu0 0
    %999 = vmatprep.subr.bf16.mxu0 0
    %1000 = vmatpush1.bf16.xpose.msra.mxu0 0
    %1001 = vmatprep.subr.bf16.mxu0 0
    %1002 = vmatpush1.bf16.xpose.msra.mxu0 0
    %1003 = vmatprep.subr.bf16.mxu0 0
    %1004 = vmatpush1.bf16.xpose.msra.mxu0 0
    %1005 = vmatprep.subr.bf16.mxu0 0
    %1006 = vmatpush1.bf16.xpose.msra.mxu0 0
    %1007 = vmatprep.subr.bf16.mxu0 0
    %1008 = vmatpush1.bf16.xpose.msra.mxu0 0
    %1009 = vmatprep.subr.bf16.mxu0 0
    %1010 = vmatpush1.bf16.xpose.msra.mxu0 0
    %1011 = vmatprep.mubr.bf16.mxu0 0
    %1012 = vmatmul.mubr.bf16.gmra.mrb[0].mxu0 %v974
    %v1013 = vpop.f32.mrb[0].mxu0
    %v1014 = vadd.f32 %v659, %v1013
    %v1015 = vpop.f32.mrb[0].mxu0
    %v1016 = vpop.f32.mrb[0].mxu0
    %v1017 = vadd.f32 %v660, %v1016
    %v1018 = vpop.f32.mrb[0].mxu0
    %1019 = vdwg.mxu0
    %vm1020 = vcmask 80896
    %v1021 = vsel %vm1020, %v1014, -inf
    %1022 = vmax.xlane.f32.xlu0 %v1021
    %v1023 = vpop.xlane.xlu0 %1022
    %vm1024 = vcmask 74752
    %v1025 = vsel %vm1024, %v1017, -inf
    %1026 = vmax.xlane.f32.xlu0 %v1025
    %v1027 = vpop.xlane.xlu0 %1026
    %v1028 = vsub.f32 %v1014, %v1023
    %v1029 = vsub.f32 %v1017, %v1027
    %v1030 = vmul.f32 %v1028, 1.442695
    %v1031 = vpow.pop %v1030
    %v1032 = vmul.f32 %v1029, 1.442695
    %v1033 = vpow.pop %v1032
    %v1034 = vsel %vm1020, %v1031, 0.0
    %1035 = vadd.xlane.f32.xlu0 %v1034
    %v1036 = vpop.xlane.xlu0 %1035
    %v1037 = vsel %vm1024, %v1033, 0.0
    %1038 = vadd.xlane.f32.xlu0 %v1037
    %v1039 = vpop.xlane.xlu0 %1038
    %v1040 = vrcp.pop %v1036
    %v1041 = vrcp.pop %v1039
    %v1042 = vmul.f32 %v1031, %v1040
    %v1043 = vmul.f32 %v1033, %v1041
    %v1044 = vpack.c.bf16 %v1043, %v1042
    %v1046 = vsel %vm1020, %v1044, 0
    %vm1048 = vcmask 1044480
    %v1050 = vsel %vm1048, %v971, 0
    %1052 = vmatprep.subr.bf16.mxu0 0
    %1053 = vmatpush1.bf16.msra.mxu0 %v1050
    %1054 = vmatprep.subr.bf16.mxu0 0
    %1055 = vmatpush1.bf16.msra.mxu0 0
    %1056 = vmatprep.subr.bf16.mxu0 0
    %1057 = vmatpush1.bf16.msra.mxu0 0
    %1058 = vmatprep.subr.bf16.mxu0 0
    %1059 = vmatpush1.bf16.msra.mxu0 0
    %1060 = vmatprep.subr.bf16.mxu0 0
    %1061 = vmatpush1.bf16.msra.mxu0 0
    %1062 = vmatprep.subr.bf16.mxu0 0
    %1063 = vmatpush1.bf16.msra.mxu0 0
    %1064 = vmatprep.subr.bf16.mxu0 0
    %1065 = vmatpush1.bf16.msra.mxu0 0
    %1066 = vmatprep.subr.bf16.mxu0 0
    %1067 = vmatpush1.bf16.msra.mxu0 0
    %1068 = vmatprep.subr.bf16.mxu0 0
    %1069 = vmatpush1.bf16.msra.mxu0 0
    %1070 = vmatprep.subr.bf16.mxu0 0
    %1071 = vmatpush1.bf16.msra.mxu0 0
    %1072 = vmatprep.subr.bf16.mxu0 0
    %1073 = vmatpush1.bf16.msra.mxu0 0
    %1074 = vmatprep.subr.bf16.mxu0 0
    %1075 = vmatpush1.bf16.msra.mxu0 0
    %1076 = vmatprep.subr.bf16.mxu0 0
    %1077 = vmatpush1.bf16.msra.mxu0 0
    %1078 = vmatprep.subr.bf16.mxu0 0
    %1079 = vmatpush1.bf16.msra.mxu0 0
    %1080 = vmatprep.subr.bf16.mxu0 0
    %1081 = vmatpush1.bf16.msra.mxu0 0
    %1082 = vmatprep.subr.bf16.mxu0 0
    %1083 = vmatpush1.bf16.msra.mxu0 0
    %1084 = vmatprep.mubr.bf16.mxu0 0
    %1085 = vmatmul.mubr.bf16.gmra.mrb[0].mxu0 %v1046
    %v1086 = vpop.f32.mrb[0].mxu0
    %v1087 = vadd.f32 0.0, %v1086
    %v1088 = vpop.f32.mrb[0].mxu0
    %v1089 = vpop.f32.mrb[0].mxu0
    %v1090 = vadd.f32 0.0, %v1089
    %v1091 = vpop.f32.mrb[0].mxu0
    %1092 = vdwg.mxu0
    %1094 = vrot.lane.b32.xlu0 %v969, 96
    %v1095 = vpop.permute.xlu0 %1094
    %1097 = vrot.lane.b32.xlu0 %v970, 96
    %v1098 = vpop.permute.xlu0 %1097
    %v1100 = vsel %vm972, %v1095, 0
    %v1103 = vsel %vm972, %v1098, 0
    %1105 = vmatprep.subr.bf16.mxu0 0
    %1106 = vmatpush1.bf16.xpose.msra.mxu0 %v1103
    %1107 = vmatprep.subr.bf16.mxu0 0
    %1108 = vmatpush1.bf16.xpose.msra.mxu0 0
    %1109 = vmatprep.subr.bf16.mxu0 0
    %1110 = vmatpush1.bf16.xpose.msra.mxu0 0
    %1111 = vmatprep.subr.bf16.mxu0 0
    %1112 = vmatpush1.bf16.xpose.msra.mxu0 0
    %1113 = vmatprep.subr.bf16.mxu0 0
    %1114 = vmatpush1.bf16.xpose.msra.mxu0 0
    %1115 = vmatprep.subr.bf16.mxu0 0
    %1116 = vmatpush1.bf16.xpose.msra.mxu0 0
    %1117 = vmatprep.subr.bf16.mxu0 0
    %1118 = vmatpush1.bf16.xpose.msra.mxu0 0
    %1119 = vmatprep.subr.bf16.mxu0 0
    %1120 = vmatpush1.bf16.xpose.msra.mxu0 0
    %1121 = vmatprep.subr.bf16.mxu0 0
    %1122 = vmatpush1.bf16.xpose.msra.mxu0 0
    %1123 = vmatprep.subr.bf16.mxu0 0
    %1124 = vmatpush1.bf16.xpose.msra.mxu0 0
    %1125 = vmatprep.subr.bf16.mxu0 0
    %1126 = vmatpush1.bf16.xpose.msra.mxu0 0
    %1127 = vmatprep.subr.bf16.mxu0 0
    %1128 = vmatpush1.bf16.xpose.msra.mxu0 0
    %1129 = vmatprep.subr.bf16.mxu0 0
    %1130 = vmatpush1.bf16.xpose.msra.mxu0 0
    %1131 = vmatprep.subr.bf16.mxu0 0
    %1132 = vmatpush1.bf16.xpose.msra.mxu0 0
    %1133 = vmatprep.subr.bf16.mxu0 0
    %1134 = vmatpush1.bf16.xpose.msra.mxu0 0
    %1135 = vmatprep.subr.bf16.mxu0 0
    %1136 = vmatpush1.bf16.xpose.msra.mxu0 0
    %1137 = vmatprep.mubr.bf16.mxu0 0
    %1138 = vmatmul.mubr.bf16.gmra.mrb[0].mxu0 %v1100
    %v1139 = vpop.f32.mrb[0].mxu0
    %v1140 = vadd.f32 %v659, %v1139
    %v1141 = vpop.f32.mrb[0].mxu0
    %v1142 = vpop.f32.mrb[0].mxu0
    %v1143 = vadd.f32 %v660, %v1142
    %v1144 = vpop.f32.mrb[0].mxu0
    %1145 = vdwg.mxu0
    %v1146 = vsel %vm1020, %v1140, -inf
    %1147 = vmax.xlane.f32.xlu0 %v1146
    %v1148 = vpop.xlane.xlu0 %1147
    %v1149 = vsel %vm1024, %v1143, -inf
    %1150 = vmax.xlane.f32.xlu0 %v1149
    %v1151 = vpop.xlane.xlu0 %1150
    %v1152 = vsub.f32 %v1140, %v1148
    %v1153 = vsub.f32 %v1143, %v1151
    %v1154 = vmul.f32 %v1152, 1.442695
    %v1155 = vpow.pop %v1154
    %v1156 = vmul.f32 %v1153, 1.442695
    %v1157 = vpow.pop %v1156
    %v1158 = vsel %vm1020, %v1155, 0.0
    %1159 = vadd.xlane.f32.xlu0 %v1158
    %v1160 = vpop.xlane.xlu0 %1159
    %v1161 = vsel %vm1024, %v1157, 0.0
    %1162 = vadd.xlane.f32.xlu0 %v1161
    %v1163 = vpop.xlane.xlu0 %1162
    %v1164 = vrcp.pop %v1160
    %v1165 = vrcp.pop %v1163
    %v1166 = vmul.f32 %v1155, %v1164
    %v1167 = vmul.f32 %v1157, %v1165
    %v1168 = vpack.c.bf16 %v1167, %v1166
    %1170 = vrot.lane.b32.xlu0 %v971, 96
    %v1171 = vpop.permute.xlu0 %1170
    %v1173 = vsel %vm1020, %v1168, 0
    %v1176 = vsel %vm1048, %v1171, 0
    %1178 = vmatprep.subr.bf16.mxu0 0
    %1179 = vmatpush1.bf16.msra.mxu0 %v1176
    %1180 = vmatprep.subr.bf16.mxu0 0
    %1181 = vmatpush1.bf16.msra.mxu0 0
    %1182 = vmatprep.subr.bf16.mxu0 0
    %1183 = vmatpush1.bf16.msra.mxu0 0
    %1184 = vmatprep.subr.bf16.mxu0 0
    %1185 = vmatpush1.bf16.msra.mxu0 0
    %1186 = vmatprep.subr.bf16.mxu0 0
    %1187 = vmatpush1.bf16.msra.mxu0 0
    %1188 = vmatprep.subr.bf16.mxu0 0
    %1189 = vmatpush1.bf16.msra.mxu0 0
    %1190 = vmatprep.subr.bf16.mxu0 0
    %1191 = vmatpush1.bf16.msra.mxu0 0
    %1192 = vmatprep.subr.bf16.mxu0 0
    %1193 = vmatpush1.bf16.msra.mxu0 0
    %1194 = vmatprep.subr.bf16.mxu0 0
    %1195 = vmatpush1.bf16.msra.mxu0 0
    %1196 = vmatprep.subr.bf16.mxu0 0
    %1197 = vmatpush1.bf16.msra.mxu0 0
    %1198 = vmatprep.subr.bf16.mxu0 0
    %1199 = vmatpush1.bf16.msra.mxu0 0
    %1200 = vmatprep.subr.bf16.mxu0 0
    %1201 = vmatpush1.bf16.msra.mxu0 0
    %1202 = vmatprep.subr.bf16.mxu0 0
    %1203 = vmatpush1.bf16.msra.mxu0 0
    %1204 = vmatprep.subr.bf16.mxu0 0
    %1205 = vmatpush1.bf16.msra.mxu0 0
    %1206 = vmatprep.subr.bf16.mxu0 0
    %1207 = vmatpush1.bf16.msra.mxu0 0
    %1208 = vmatprep.subr.bf16.mxu0 0
    %1209 = vmatpush1.bf16.msra.mxu0 0
    %1210 = vmatprep.mubr.bf16.mxu0 0
    %1211 = vmatmul.mubr.bf16.gmra.mrb[0].mxu0 %v1173
    %v1212 = vpop.f32.mrb[0].mxu0
    %v1213 = vadd.f32 0.0, %v1212
    %v1214 = vpop.f32.mrb[0].mxu0
    %v1215 = vpop.f32.mrb[0].mxu0
    %v1216 = vadd.f32 0.0, %v1215
    %v1217 = vpop.f32.mrb[0].mxu0
    %1218 = vdwg.mxu0
    %1219 = vrot.lane.b32.xlu0 %v969, 64
    %v1220 = vpop.permute.xlu0 %1219
    %1221 = vrot.lane.b32.xlu0 %v970, 64
    %v1222 = vpop.permute.xlu0 %1221
    %v1224 = vsel %vm972, %v1220, 0
    %v1227 = vsel %vm972, %v1222, 0
    %1229 = vmatprep.subr.bf16.mxu0 0
    %1230 = vmatpush1.bf16.xpose.msra.mxu0 %v1227
    %1231 = vmatprep.subr.bf16.mxu0 0
    %1232 = vmatpush1.bf16.xpose.msra.mxu0 0
    %1233 = vmatprep.subr.bf16.mxu0 0
    %1234 = vmatpush1.bf16.xpose.msra.mxu0 0
    %1235 = vmatprep.subr.bf16.mxu0 0
    %1236 = vmatpush1.bf16.xpose.msra.mxu0 0
    %1237 = vmatprep.subr.bf16.mxu0 0
    %1238 = vmatpush1.bf16.xpose.msra.mxu0 0
    %1239 = vmatprep.subr.bf16.mxu0 0
    %1240 = vmatpush1.bf16.xpose.msra.mxu0 0
    %1241 = vmatprep.subr.bf16.mxu0 0
    %1242 = vmatpush1.bf16.xpose.msra.mxu0 0
    %1243 = vmatprep.subr.bf16.mxu0 0
    %1244 = vmatpush1.bf16.xpose.msra.mxu0 0
    %1245 = vmatprep.subr.bf16.mxu0 0
    %1246 = vmatpush1.bf16.xpose.msra.mxu0 0
    %1247 = vmatprep.subr.bf16.mxu0 0
    %1248 = vmatpush1.bf16.xpose.msra.mxu0 0
    %1249 = vmatprep.subr.bf16.mxu0 0
    %1250 = vmatpush1.bf16.xpose.msra.mxu0 0
    %1251 = vmatprep.subr.bf16.mxu0 0
    %1252 = vmatpush1.bf16.xpose.msra.mxu0 0
    %1253 = vmatprep.subr.bf16.mxu0 0
    %1254 = vmatpush1.bf16.xpose.msra.mxu0 0
    %1255 = vmatprep.subr.bf16.mxu0 0
    %1256 = vmatpush1.bf16.xpose.msra.mxu0 0
    %1257 = vmatprep.subr.bf16.mxu0 0
    %1258 = vmatpush1.bf16.xpose.msra.mxu0 0
    %1259 = vmatprep.subr.bf16.mxu0 0
    %1260 = vmatpush1.bf16.xpose.msra.mxu0 0
    %1261 = vmatprep.mubr.bf16.mxu0 0
    %1262 = vmatmul.mubr.bf16.gmra.mrb[0].mxu0 %v1224
    %v1263 = vpop.f32.mrb[0].mxu0
    %v1264 = vadd.f32 %v659, %v1263
    %v1265 = vpop.f32.mrb[0].mxu0
    %v1266 = vpop.f32.mrb[0].mxu0
    %v1267 = vadd.f32 %v660, %v1266
    %v1268 = vpop.f32.mrb[0].mxu0
    %1269 = vdwg.mxu0
    %v1270 = vsel %vm1020, %v1264, -inf
    %1271 = vmax.xlane.f32.xlu0 %v1270
    %v1272 = vpop.xlane.xlu0 %1271
    %v1273 = vsel %vm1024, %v1267, -inf
    %1274 = vmax.xlane.f32.xlu0 %v1273
    %v1275 = vpop.xlane.xlu0 %1274
    %v1276 = vsub.f32 %v1264, %v1272
    %v1277 = vsub.f32 %v1267, %v1275
    %v1278 = vmul.f32 %v1276, 1.442695
    %v1279 = vpow.pop %v1278
    %v1280 = vmul.f32 %v1277, 1.442695
    %v1281 = vpow.pop %v1280
    %v1282 = vsel %vm1020, %v1279, 0.0
    %1283 = vadd.xlane.f32.xlu0 %v1282
    %v1284 = vpop.xlane.xlu0 %1283
    %v1285 = vsel %vm1024, %v1281, 0.0
    %1286 = vadd.xlane.f32.xlu0 %v1285
    %v1287 = vpop.xlane.xlu0 %1286
    %v1288 = vrcp.pop %v1284
    %v1289 = vrcp.pop %v1287
    %v1290 = vmul.f32 %v1279, %v1288
    %v1291 = vmul.f32 %v1281, %v1289
    %v1292 = vpack.c.bf16 %v1291, %v1290
    %1293 = vrot.lane.b32.xlu0 %v971, 64
    %v1294 = vpop.permute.xlu0 %1293
    %v1296 = vsel %vm1020, %v1292, 0
    %v1299 = vsel %vm1048, %v1294, 0
    %1301 = vmatprep.subr.bf16.mxu0 0
    %1302 = vmatpush1.bf16.msra.mxu0 %v1299
    %1303 = vmatprep.subr.bf16.mxu0 0
    %1304 = vmatpush1.bf16.msra.mxu0 0
    %1305 = vmatprep.subr.bf16.mxu0 0
    %1306 = vmatpush1.bf16.msra.mxu0 0
    %1307 = vmatprep.subr.bf16.mxu0 0
    %1308 = vmatpush1.bf16.msra.mxu0 0
    %1309 = vmatprep.subr.bf16.mxu0 0
    %1310 = vmatpush1.bf16.msra.mxu0 0
    %1311 = vmatprep.subr.bf16.mxu0 0
    %1312 = vmatpush1.bf16.msra.mxu0 0
    %1313 = vmatprep.subr.bf16.mxu0 0
    %1314 = vmatpush1.bf16.msra.mxu0 0
    %1315 = vmatprep.subr.bf16.mxu0 0
    %1316 = vmatpush1.bf16.msra.mxu0 0
    %1317 = vmatprep.subr.bf16.mxu0 0
    %1318 = vmatpush1.bf16.msra.mxu0 0
    %1319 = vmatprep.subr.bf16.mxu0 0
    %1320 = vmatpush1.bf16.msra.mxu0 0
    %1321 = vmatprep.subr.bf16.mxu0 0
    %1322 = vmatpush1.bf16.msra.mxu0 0
    %1323 = vmatprep.subr.bf16.mxu0 0
    %1324 = vmatpush1.bf16.msra.mxu0 0
    %1325 = vmatprep.subr.bf16.mxu0 0
    %1326 = vmatpush1.bf16.msra.mxu0 0
    %1327 = vmatprep.subr.bf16.mxu0 0
    %1328 = vmatpush1.bf16.msra.mxu0 0
    %1329 = vmatprep.subr.bf16.mxu0 0
    %1330 = vmatpush1.bf16.msra.mxu0 0
    %1331 = vmatprep.subr.bf16.mxu0 0
    %1332 = vmatpush1.bf16.msra.mxu0 0
    %1333 = vmatprep.mubr.bf16.mxu0 0
    %1334 = vmatmul.mubr.bf16.gmra.mrb[0].mxu0 %v1296
    %v1335 = vpop.f32.mrb[0].mxu0
    %v1336 = vadd.f32 0.0, %v1335
    %v1337 = vpop.f32.mrb[0].mxu0
    %v1338 = vpop.f32.mrb[0].mxu0
    %v1339 = vadd.f32 0.0, %v1338
    %v1340 = vpop.f32.mrb[0].mxu0
    %1341 = vdwg.mxu0
    %1342 = vrot.lane.b32.xlu0 %v969, 32
    %v1343 = vpop.permute.xlu0 %1342
    %1344 = vrot.lane.b32.xlu0 %v970, 32
    %v1345 = vpop.permute.xlu0 %1344
    %v1347 = vsel %vm972, %v1343, 0
    %v1350 = vsel %vm972, %v1345, 0
    %1352 = vmatprep.subr.bf16.mxu0 0
    %1353 = vmatpush1.bf16.xpose.msra.mxu0 %v1350
    %1354 = vmatprep.subr.bf16.mxu0 0
    %1355 = vmatpush1.bf16.xpose.msra.mxu0 0
    %1356 = vmatprep.subr.bf16.mxu0 0
    %1357 = vmatpush1.bf16.xpose.msra.mxu0 0
    %1358 = vmatprep.subr.bf16.mxu0 0
    %1359 = vmatpush1.bf16.xpose.msra.mxu0 0
    %1360 = vmatprep.subr.bf16.mxu0 0
    %1361 = vmatpush1.bf16.xpose.msra.mxu0 0
    %1362 = vmatprep.subr.bf16.mxu0 0
    %1363 = vmatpush1.bf16.xpose.msra.mxu0 0
    %1364 = vmatprep.subr.bf16.mxu0 0
    %1365 = vmatpush1.bf16.xpose.msra.mxu0 0
    %1366 = vmatprep.subr.bf16.mxu0 0
    %1367 = vmatpush1.bf16.xpose.msra.mxu0 0
    %1368 = vmatprep.subr.bf16.mxu0 0
    %1369 = vmatpush1.bf16.xpose.msra.mxu0 0
    %1370 = vmatprep.subr.bf16.mxu0 0
    %1371 = vmatpush1.bf16.xpose.msra.mxu0 0
    %1372 = vmatprep.subr.bf16.mxu0 0
    %1373 = vmatpush1.bf16.xpose.msra.mxu0 0
    %1374 = vmatprep.subr.bf16.mxu0 0
    %1375 = vmatpush1.bf16.xpose.msra.mxu0 0
    %1376 = vmatprep.subr.bf16.mxu0 0
    %1377 = vmatpush1.bf16.xpose.msra.mxu0 0
    %1378 = vmatprep.subr.bf16.mxu0 0
    %1379 = vmatpush1.bf16.xpose.msra.mxu0 0
    %1380 = vmatprep.subr.bf16.mxu0 0
    %1381 = vmatpush1.bf16.xpose.msra.mxu0 0
    %1382 = vmatprep.subr.bf16.mxu0 0
    %1383 = vmatpush1.bf16.xpose.msra.mxu0 0
    %1384 = vmatprep.mubr.bf16.mxu0 0
    %1385 = vmatmul.mubr.bf16.gmra.mrb[0].mxu0 %v1347
    %v1386 = vpop.f32.mrb[0].mxu0
    %v1387 = vadd.f32 %v659, %v1386
    %v1388 = vpop.f32.mrb[0].mxu0
    %v1389 = vpop.f32.mrb[0].mxu0
    %v1390 = vadd.f32 %v660, %v1389
    %v1391 = vpop.f32.mrb[0].mxu0
    %1392 = vdwg.mxu0
    %v1393 = vsel %vm1020, %v1387, -inf
    %1394 = vmax.xlane.f32.xlu0 %v1393
    %v1395 = vpop.xlane.xlu0 %1394
    %v1396 = vsel %vm1024, %v1390, -inf
    %1397 = vmax.xlane.f32.xlu0 %v1396
    %v1398 = vpop.xlane.xlu0 %1397
    %v1399 = vsub.f32 %v1387, %v1395
    %v1400 = vsub.f32 %v1390, %v1398
    %v1401 = vmul.f32 %v1399, 1.442695
    %v1402 = vpow.pop %v1401
    %v1403 = vmul.f32 %v1400, 1.442695
    %v1404 = vpow.pop %v1403
    %v1405 = vsel %vm1020, %v1402, 0.0
    %1406 = vadd.xlane.f32.xlu0 %v1405
    %v1407 = vpop.xlane.xlu0 %1406
    %v1408 = vsel %vm1024, %v1404, 0.0
    %1409 = vadd.xlane.f32.xlu0 %v1408
    %v1410 = vpop.xlane.xlu0 %1409
    %v1411 = vrcp.pop %v1407
    %v1412 = vrcp.pop %v1410
    %v1413 = vmul.f32 %v1402, %v1411
    %v1414 = vmul.f32 %v1404, %v1412
    %v1415 = vpack.c.bf16 %v1414, %v1413
    %1416 = vrot.lane.b32.xlu0 %v971, 32
    %v1417 = vpop.permute.xlu0 %1416
    %v1419 = vsel %vm1020, %v1415, 0
    %v1422 = vsel %vm1048, %v1417, 0
    %1424 = vmatprep.subr.bf16.mxu0 0
    %1425 = vmatpush1.bf16.msra.mxu0 %v1422
    %1426 = vmatprep.subr.bf16.mxu0 0
    %1427 = vmatpush1.bf16.msra.mxu0 0
    %1428 = vmatprep.subr.bf16.mxu0 0
    %1429 = vmatpush1.bf16.msra.mxu0 0
    %1430 = vmatprep.subr.bf16.mxu0 0
    %1431 = vmatpush1.bf16.msra.mxu0 0
    %1432 = vmatprep.subr.bf16.mxu0 0
    %1433 = vmatpush1.bf16.msra.mxu0 0
    %1434 = vmatprep.subr.bf16.mxu0 0
    %1435 = vmatpush1.bf16.msra.mxu0 0
    %1436 = vmatprep.subr.bf16.mxu0 0
    %1437 = vmatpush1.bf16.msra.mxu0 0
    %1438 = vmatprep.subr.bf16.mxu0 0
    %1439 = vmatpush1.bf16.msra.mxu0 0
    %1440 = vmatprep.subr.bf16.mxu0 0
    %1441 = vmatpush1.bf16.msra.mxu0 0
    %1442 = vmatprep.subr.bf16.mxu0 0
    %1443 = vmatpush1.bf16.msra.mxu0 0
    %1444 = vmatprep.subr.bf16.mxu0 0
    %1445 = vmatpush1.bf16.msra.mxu0 0
    %1446 = vmatprep.subr.bf16.mxu0 0
    %1447 = vmatpush1.bf16.msra.mxu0 0
    %1448 = vmatprep.subr.bf16.mxu0 0
    %1449 = vmatpush1.bf16.msra.mxu0 0
    %1450 = vmatprep.subr.bf16.mxu0 0
    %1451 = vmatpush1.bf16.msra.mxu0 0
    %1452 = vmatprep.subr.bf16.mxu0 0
    %1453 = vmatpush1.bf16.msra.mxu0 0
    %1454 = vmatprep.subr.bf16.mxu0 0
    %1455 = vmatpush1.bf16.msra.mxu0 0
    %1456 = vmatprep.mubr.bf16.mxu0 0
    %1457 = vmatmul.mubr.bf16.gmra.mrb[0].mxu0 %v1419
    %v1458 = vpop.f32.mrb[0].mxu0
    %v1459 = vadd.f32 0.0, %v1458
    %v1460 = vpop.f32.mrb[0].mxu0
    %v1461 = vpop.f32.mrb[0].mxu0
    %v1462 = vadd.f32 0.0, %v1461
    %v1463 = vpop.f32.mrb[0].mxu0
    %1464 = vdwg.mxu0
    %1467 = vrot.lane.b32.xlu0 %v1213, 32
    %v1468 = vpop.permute.xlu0 %1467
    %1469 = vrot.lane.b32.xlu0 %v1216, 32
    %v1470 = vpop.permute.xlu0 %1469
    %1475 = vrot.lane.b32.xlu0 %v1336, 64
    %v1476 = vpop.permute.xlu0 %1475
    %1477 = vrot.lane.b32.xlu0 %v1339, 64
    %v1478 = vpop.permute.xlu0 %1477
    %1483 = vrot.lane.b32.xlu0 %v1459, 96
    %v1484 = vpop.permute.xlu0 %1483
    %1485 = vrot.lane.b32.xlu0 %v1462, 96
    %v1486 = vpop.permute.xlu0 %1485
    %v1489 = vsel %vm972, %v1087, %v1468
    %v1490 = vsel %vm972, %v1090, %v1470
    %vm1491 = vcmask 523264
    %v1492 = vsel %vm1491, %v1489, %v1476
    %v1493 = vsel %vm1491, %v1490, %v1478
    %vm1494 = vcmask 785408
    %v1495 = vsel %vm1494, %v1492, %v1484
    %v1496 = vsel %vm1494, %v1493, %v1486
    %v1497 = vld [vmem:[%s10] sm:$0xf]
    %v1498 = vld [vmem:[%s10 + $0x4] sm:$0xf]
    %v1499 = vld [vmem:[%s10 + $0x8] sm:$0xf]
    %v1500 = vld [vmem:[%s10 + $0xc] sm:$0xf]
    %v1501 = vld [vmem:[%s10 + $0x10] sm:$0xf]
    %v1502 = vld [vmem:[%s10 + $0x14] sm:$0xf]
    %v1503 = vld [vmem:[%s10 + $0x18] sm:$0xf]
    %v1504 = vld [vmem:[%s10 + $0x1c] sm:$0xf]
    %v1505 = vld [vmem:[%s10 + $0x20] sm:$0xf]
    %v1506 = vld [vmem:[%s10 + $0x24] sm:$0xf]
    %v1507 = vld [vmem:[%s10 + $0x28] sm:$0xf]
    %v1508 = vld [vmem:[%s10 + $0x2c] sm:$0xf]
    %v1509 = vld [vmem:[%s10 + $0x30] sm:$0xf]
    %v1510 = vld [vmem:[%s10 + $0x34] sm:$0xf]
    %v1511 = vld [vmem:[%s10 + $0x38] sm:$0xf]
    %v1512 = vld [vmem:[%s10 + $0x3c] sm:$0xf]
    %v1513 = vpack.c.bf16 %v1496, %v1495
    %v1530 = vunpack.c.l.b16 %v1497
    %v1531 = vunpack.c.l.b16 %v1498
    %v1532 = vunpack.c.l.b16 %v1499
    %v1533 = vunpack.c.l.b16 %v1500
    %v1534 = vunpack.c.l.b16 %v1501
    %v1535 = vunpack.c.l.b16 %v1502
    %v1536 = vunpack.c.l.b16 %v1503
    %v1537 = vunpack.c.l.b16 %v1504
    %v1538 = vunpack.c.l.b16 %v1505
    %v1539 = vunpack.c.l.b16 %v1506
    %v1540 = vunpack.c.l.b16 %v1507
    %v1541 = vunpack.c.l.b16 %v1508
    %v1542 = vunpack.c.l.b16 %v1509
    %v1543 = vunpack.c.l.b16 %v1510
    %v1544 = vunpack.c.l.b16 %v1511
    %v1545 = vunpack.c.l.b16 %v1512
    %v1546 = vpack.c.b16 %v1531, %v1530
    %v1547 = vpack.c.b16 %v1533, %v1532
    %v1548 = vpack.c.b16 %v1535, %v1534
    %v1549 = vpack.c.b16 %v1537, %v1536
    %v1550 = vpack.c.b16 %v1539, %v1538
    %v1551 = vpack.c.b16 %v1541, %v1540
    %v1552 = vpack.c.b16 %v1543, %v1542
    %v1553 = vpack.c.b16 %v1545, %v1544
    %1562 = vmatprep.subr.bf16.mxu0 0
    %1563 = vmatpush1.bf16.msra.mxu0 %v1546
    %1564 = vmatprep.subr.bf16.mxu0 0
    %1565 = vmatpush1.bf16.msra.mxu0 %v1547
    %1566 = vmatprep.subr.bf16.mxu0 0
    %1567 = vmatpush1.bf16.msra.mxu0 %v1548
    %1568 = vmatprep.subr.bf16.mxu0 0
    %1569 = vmatpush1.bf16.msra.mxu0 %v1549
    %1570 = vmatprep.subr.bf16.mxu0 0
    %1571 = vmatpush1.bf16.msra.mxu0 %v1550
    %1572 = vmatprep.subr.bf16.mxu0 0
    %1573 = vmatpush1.bf16.msra.mxu0 %v1551
    %1574 = vmatprep.subr.bf16.mxu0 0
    %1575 = vmatpush1.bf16.msra.mxu0 %v1552
    %1576 = vmatprep.subr.bf16.mxu0 0
    %1577 = vmatpush1.bf16.msra.mxu0 %v1553
    %1578 = vmatprep.subr.bf16.mxu0 0
    %1579 = vmatpush1.bf16.msra.mxu0 0
    %1580 = vmatprep.subr.bf16.mxu0 0
    %1581 = vmatpush1.bf16.msra.mxu0 0
    %1582 = vmatprep.subr.bf16.mxu0 0
    %1583 = vmatpush1.bf16.msra.mxu0 0
    %1584 = vmatprep.subr.bf16.mxu0 0
    %1585 = vmatpush1.bf16.msra.mxu0 0
    %1586 = vmatprep.subr.bf16.mxu0 0
    %1587 = vmatpush1.bf16.msra.mxu0 0
    %1588 = vmatprep.subr.bf16.mxu0 0
    %1589 = vmatpush1.bf16.msra.mxu0 0
    %1590 = vmatprep.subr.bf16.mxu0 0
    %1591 = vmatpush1.bf16.msra.mxu0 0
    %1592 = vmatprep.subr.bf16.mxu0 0
    %1593 = vmatpush1.bf16.msra.mxu0 0
    %1594 = vmatprep.mubr.bf16.mxu0 0
    %1595 = vmatmul.mubr.bf16.gmra.mrb[0].mxu0 %v1513
    %v1596 = vpop.f32.mrb[0].mxu0
    %v1597 = vadd.f32 0.0, %v1596
    %v1598 = vpop.f32.mrb[0].mxu0
    %v1599 = vpop.f32.mrb[0].mxu0
    %v1600 = vadd.f32 0.0, %v1599
    %v1601 = vpop.f32.mrb[0].mxu0
    %1602 = vdwg.mxu0
    %v1603 = vadd.f32 %v657, %v1597
    %v1604 = vadd.f32 %v658, %v1600
    %v1605 = vld [vmem:[%s11] sm:$0x1]
    %v1607 = vlaneseq
    %v1608 = vshrl.u32 %v1607, 7
    %v1609 = vsub.s32 0, %v1608
    %v1610 = vrot.slane %v1605, %v1609
    %v1612 = vadd.f32 %v1603, %v1610
    %v1613 = vadd.f32 %v1604, %v1610
    %v1614 = vld [vmem:[%s12] sm:$0x1]
    %v1615 = vld [vmem:[%s13] sm:$0x1]
    %1616 = vadd.xlane.f32.xlu0 %v1612
    %v1617 = vpop.xlane.xlu0 %1616
    %v1618 = vsel %vm665, %v1613, 0.0
    %1619 = vadd.xlane.f32.xlu0 %v1618
    %v1620 = vpop.xlane.xlu0 %1619
    %v1621 = vmul.f32 %v1617, %v669
    %v1622 = vmul.f32 %v1620, %v669
    %v1623 = vsub.f32 %v1612, %v1621
    %v1624 = vsub.f32 %v1613, %v1622
    %v1625 = vmul.f32 %v1623, %v1623
    %v1626 = vmul.f32 %v1624, %v1624
    %1627 = vadd.xlane.f32.xlu0 %v1625
    %v1628 = vpop.xlane.xlu0 %1627
    %v1629 = vsel %vm665, %v1626, 0.0
    %1630 = vadd.xlane.f32.xlu0 %v1629
    %v1631 = vpop.xlane.xlu0 %1630
    %v1632 = vmul.f32 %v1628, %v669
    %v1633 = vmul.f32 %v1631, %v669
    %v1634 = vadd.f32 %v1632, 1e-06
    %v1635 = vadd.f32 %v1633, 1e-06
    %v1636 = vrsqrt.pop %v1634
    %v1637 = vrsqrt.pop %v1635
    %v1638 = vmul.f32 %v1623, %v1636
    %v1639 = vmul.f32 %v1624, %v1637
    %v1641 = vlaneseq
    %v1642 = vshrl.u32 %v1641, 7
    %v1643 = vsub.s32 0, %v1642
    %v1644 = vrot.slane %v1614, %v1643
    %v1646 = vmul.f32 %v1638, %v1644
    %v1647 = vmul.f32 %v1639, %v1644
    %v1649 = vlaneseq
    %v1650 = vshrl.u32 %v1649, 7
    %v1651 = vsub.s32 0, %v1650
    %v1652 = vrot.slane %v1615, %v1651
    %v1654 = vadd.f32 %v1646, %v1652
    %v1655 = vadd.f32 %v1647, %v1652
    %v1656 = vld [vmem:[%s14] sm:$0xff]
    %v1657 = vld [vmem:[%s14 + $0x8] sm:$0xff]
    %v1658 = vld [vmem:[%s14 + $0x10] sm:$0xff]
    %v1659 = vld [vmem:[%s14 + $0x18] sm:$0xff]
    %v1660 = vld [vmem:[%s14 + $0x20] sm:$0xff]
    %v1661 = vld [vmem:[%s14 + $0x28] sm:$0xff]
    %v1662 = vld [vmem:[%s14 + $0x30] sm:$0xff]
    %v1663 = vld [vmem:[%s14 + $0x38] sm:$0xff]
    %v1664 = vld [vmem:[%s14 + $0x40] sm:$0xff]
    %v1665 = vld [vmem:[%s14 + $0x48] sm:$0xff]
    %v1666 = vld [vmem:[%s14 + $0x50] sm:$0xff]
    %v1667 = vld [vmem:[%s14 + $0x58] sm:$0xff]
    %v1668 = vld [vmem:[%s14 + $0x60] sm:$0xff]
    %v1669 = vld [vmem:[%s14 + $0x68] sm:$0xff]
    %v1670 = vld [vmem:[%s14 + $0x70] sm:$0xff]
    %v1671 = vld [vmem:[%s14 + $0x78] sm:$0xff]
    %v1672 = vld [vmem:[%s14 + $0x80] sm:$0xff]
    %v1673 = vld [vmem:[%s14 + $0x88] sm:$0xff]
    %v1674 = vld [vmem:[%s14 + $0x90] sm:$0xff]
    %v1675 = vld [vmem:[%s14 + $0x98] sm:$0xff]
    %v1676 = vld [vmem:[%s14 + $0xa0] sm:$0xff]
    %v1677 = vld [vmem:[%s14 + $0xa8] sm:$0xff]
    %v1678 = vld [vmem:[%s14 + $0xb0] sm:$0xff]
    %v1679 = vld [vmem:[%s14 + $0xb8] sm:$0xff]
    %v1680 = vld [vmem:[%s14 + $0xc0] sm:$0xff]
    %v1681 = vld [vmem:[%s14 + $0xc8] sm:$0xff]
    %v1682 = vld [vmem:[%s14 + $0xd0] sm:$0xff]
    %v1683 = vld [vmem:[%s14 + $0xd8] sm:$0xff]
    %v1684 = vld [vmem:[%s14 + $0xe0] sm:$0xff]
    %v1685 = vld [vmem:[%s14 + $0xe8] sm:$0xff]
    %v1686 = vld [vmem:[%s14 + $0xf0] sm:$0xff]
    %v1687 = vld [vmem:[%s14 + $0xf8] sm:$0xff]
    %v1688 = vpack.c.bf16 %v1655, %v1654
    %v1689 = vld [vmem:[%s15] sm:$0xf]
    %v1691 = vlaneseq
    %v1692 = vshrl.u32 %v1691, 7
    %v1693 = vsub.s32 0, %v1692
    %v1694 = vrot.slane %v1689, %v1693
    %v1695 = vlaneseq
    %v1696 = vshrl.u32 %v1695, 7
    %v1697 = vsub.s32 1, %v1696
    %v1698 = vrot.slane %v1689, %v1697
    %v1699 = vlaneseq
    %v1700 = vshrl.u32 %v1699, 7
    %v1701 = vsub.s32 2, %v1700
    %v1702 = vrot.slane %v1689, %v1701
    %v1703 = vlaneseq
    %v1704 = vshrl.u32 %v1703, 7
    %v1705 = vsub.s32 3, %v1704
    %v1706 = vrot.slane %v1689, %v1705
    %v1743 = vunpack.c.l.b16 %v1656
    %v1744 = vunpack.c.h.b16 %v1656
    %v1745 = vunpack.c.l.b16 %v1657
    %v1746 = vunpack.c.h.b16 %v1657
    %v1747 = vunpack.c.l.b16 %v1658
    %v1748 = vunpack.c.h.b16 %v1658
    %v1749 = vunpack.c.l.b16 %v1659
    %v1750 = vunpack.c.h.b16 %v1659
    %v1751 = vunpack.c.l.b16 %v1660
    %v1752 = vunpack.c.h.b16 %v1660
    %v1753 = vunpack.c.l.b16 %v1661
    %v1754 = vunpack.c.h.b16 %v1661
    %v1755 = vunpack.c.l.b16 %v1662
    %v1756 = vunpack.c.h.b16 %v1662
    %v1757 = vunpack.c.l.b16 %v1663
    %v1758 = vunpack.c.h.b16 %v1663
    %v1759 = vunpack.c.l.b16 %v1664
    %v1760 = vunpack.c.h.b16 %v1664
    %v1761 = vunpack.c.l.b16 %v1665
    %v1762 = vunpack.c.h.b16 %v1665
    %v1763 = vunpack.c.l.b16 %v1666
    %v1764 = vunpack.c.h.b16 %v1666
    %v1765 = vunpack.c.l.b16 %v1667
    %v1766 = vunpack.c.h.b16 %v1667
    %v1767 = vunpack.c.l.b16 %v1668
    %v1768 = vunpack.c.h.b16 %v1668
    %v1769 = vunpack.c.l.b16 %v1669
    %v1770 = vunpack.c.h.b16 %v1669
    %v1771 = vunpack.c.l.b16 %v1670
    %v1772 = vunpack.c.h.b16 %v1670
    %v1773 = vunpack.c.l.b16 %v1671
    %v1774 = vunpack.c.h.b16 %v1671
    %v1775 = vunpack.c.l.b16 %v1672
    %v1776 = vunpack.c.h.b16 %v1672
    %v1777 = vunpack.c.l.b16 %v1673
    %v1778 = vunpack.c.h.b16 %v1673
    %v1779 = vunpack.c.l.b16 %v1674
    %v1780 = vunpack.c.h.b16 %v1674
    %v1781 = vunpack.c.l.b16 %v1675
    %v1782 = vunpack.c.h.b16 %v1675
    %v1783 = vunpack.c.l.b16 %v1676
    %v1784 = vunpack.c.h.b16 %v1676
    %v1785 = vunpack.c.l.b16 %v1677
    %v1786 = vunpack.c.h.b16 %v1677
    %v1787 = vunpack.c.l.b16 %v1678
    %v1788 = vunpack.c.h.b16 %v1678
    %v1789 = vunpack.c.l.b16 %v1679
    %v1790 = vunpack.c.h.b16 %v1679
    %v1791 = vunpack.c.l.b16 %v1680
    %v1792 = vunpack.c.h.b16 %v1680
    %v1793 = vunpack.c.l.b16 %v1681
    %v1794 = vunpack.c.h.b16 %v1681
    %v1795 = vunpack.c.l.b16 %v1682
    %v1796 = vunpack.c.h.b16 %v1682
    %v1797 = vunpack.c.l.b16 %v1683
    %v1798 = vunpack.c.h.b16 %v1683
    %v1799 = vunpack.c.l.b16 %v1684
    %v1800 = vunpack.c.h.b16 %v1684
    %v1801 = vunpack.c.l.b16 %v1685
    %v1802 = vunpack.c.h.b16 %v1685
    %v1803 = vunpack.c.l.b16 %v1686
    %v1804 = vunpack.c.h.b16 %v1686
    %v1805 = vunpack.c.l.b16 %v1687
    %v1806 = vunpack.c.h.b16 %v1687
    %v1807 = vpack.c.b16 %v1747, %v1743
    %v1808 = vpack.c.b16 %v1748, %v1744
    %v1809 = vpack.c.b16 %v1749, %v1745
    %v1810 = vpack.c.b16 %v1750, %v1746
    %v1811 = vpack.c.b16 %v1755, %v1751
    %v1812 = vpack.c.b16 %v1756, %v1752
    %v1813 = vpack.c.b16 %v1757, %v1753
    %v1814 = vpack.c.b16 %v1758, %v1754
    %v1815 = vpack.c.b16 %v1763, %v1759
    %v1816 = vpack.c.b16 %v1764, %v1760
    %v1817 = vpack.c.b16 %v1765, %v1761
    %v1818 = vpack.c.b16 %v1766, %v1762
    %v1819 = vpack.c.b16 %v1771, %v1767
    %v1820 = vpack.c.b16 %v1772, %v1768
    %v1821 = vpack.c.b16 %v1773, %v1769
    %v1822 = vpack.c.b16 %v1774, %v1770
    %v1823 = vpack.c.b16 %v1779, %v1775
    %v1824 = vpack.c.b16 %v1780, %v1776
    %v1825 = vpack.c.b16 %v1781, %v1777
    %v1826 = vpack.c.b16 %v1782, %v1778
    %v1827 = vpack.c.b16 %v1787, %v1783
    %v1828 = vpack.c.b16 %v1788, %v1784
    %v1829 = vpack.c.b16 %v1789, %v1785
    %v1830 = vpack.c.b16 %v1790, %v1786
    %v1831 = vpack.c.b16 %v1795, %v1791
    %v1832 = vpack.c.b16 %v1796, %v1792
    %v1833 = vpack.c.b16 %v1797, %v1793
    %v1834 = vpack.c.b16 %v1798, %v1794
    %v1835 = vpack.c.b16 %v1803, %v1799
    %v1836 = vpack.c.b16 %v1804, %v1800
    %v1837 = vpack.c.b16 %v1805, %v1801
    %v1838 = vpack.c.b16 %v1806, %v1802
    %1871 = vmatprep.subr.bf16.mxu0 %v1808
    %1872 = vmatpush1.bf16.msra.mxu0 %v1807
    %1873 = vmatprep.subr.bf16.mxu0 %v1812
    %1874 = vmatpush1.bf16.msra.mxu0 %v1811
    %1875 = vmatprep.subr.bf16.mxu0 %v1816
    %1876 = vmatpush1.bf16.msra.mxu0 %v1815
    %1877 = vmatprep.subr.bf16.mxu0 %v1820
    %1878 = vmatpush1.bf16.msra.mxu0 %v1819
    %1879 = vmatprep.subr.bf16.mxu0 %v1824
    %1880 = vmatpush1.bf16.msra.mxu0 %v1823
    %1881 = vmatprep.subr.bf16.mxu0 %v1828
    %1882 = vmatpush1.bf16.msra.mxu0 %v1827
    %1883 = vmatprep.subr.bf16.mxu0 %v1832
    %1884 = vmatpush1.bf16.msra.mxu0 %v1831
    %1885 = vmatprep.subr.bf16.mxu0 %v1836
    %1886 = vmatpush1.bf16.msra.mxu0 %v1835
    %1887 = vmatprep.subr.bf16.mxu0 0
    %1888 = vmatpush1.bf16.msra.mxu0 0
    %1889 = vmatprep.subr.bf16.mxu0 0
    %1890 = vmatpush1.bf16.msra.mxu0 0
    %1891 = vmatprep.subr.bf16.mxu0 0
    %1892 = vmatpush1.bf16.msra.mxu0 0
    %1893 = vmatprep.subr.bf16.mxu0 0
    %1894 = vmatpush1.bf16.msra.mxu0 0
    %1895 = vmatprep.subr.bf16.mxu0 0
    %1896 = vmatpush1.bf16.msra.mxu0 0
    %1897 = vmatprep.subr.bf16.mxu0 0
    %1898 = vmatpush1.bf16.msra.mxu0 0
    %1899 = vmatprep.subr.bf16.mxu0 0
    %1900 = vmatpush1.bf16.msra.mxu0 0
    %1901 = vmatprep.subr.bf16.mxu0 0
    %1902 = vmatpush1.bf16.msra.mxu0 0
    %1903 = vmatprep.mubr.bf16.mxu0 0
    %1904 = vmatmul.mubr.bf16.gmra.mrb[0].mxu0 %v1688
    %v1905 = vpop.f32.mrb[0].mxu0
    %v1906 = vadd.f32 %v1694, %v1905
    %v1907 = vpop.f32.mrb[0].mxu0
    %v1908 = vadd.f32 %v1698, %v1907
    %v1909 = vpop.f32.mrb[0].mxu0
    %v1910 = vadd.f32 %v1694, %v1909
    %v1911 = vpop.f32.mrb[0].mxu0
    %v1912 = vadd.f32 %v1698, %v1911
    %1913 = vdwg.mxu0
    %1914 = vmatprep.subr.bf16.mxu0 %v1810
    %1915 = vmatpush1.bf16.msra.mxu0 %v1809
    %1916 = vmatprep.subr.bf16.mxu0 %v1814
    %1917 = vmatpush1.bf16.msra.mxu0 %v1813
    %1918 = vmatprep.subr.bf16.mxu0 %v1818
    %1919 = vmatpush1.bf16.msra.mxu0 %v1817
    %1920 = vmatprep.subr.bf16.mxu0 %v1822
    %1921 = vmatpush1.bf16.msra.mxu0 %v1821
    %1922 = vmatprep.subr.bf16.mxu0 %v1826
    %1923 = vmatpush1.bf16.msra.mxu0 %v1825
    %1924 = vmatprep.subr.bf16.mxu0 %v1830
    %1925 = vmatpush1.bf16.msra.mxu0 %v1829
    %1926 = vmatprep.subr.bf16.mxu0 %v1834
    %1927 = vmatpush1.bf16.msra.mxu0 %v1833
    %1928 = vmatprep.subr.bf16.mxu0 %v1838
    %1929 = vmatpush1.bf16.msra.mxu0 %v1837
    %1930 = vmatprep.subr.bf16.mxu0 0
    %1931 = vmatpush1.bf16.msra.mxu0 0
    %1932 = vmatprep.subr.bf16.mxu0 0
    %1933 = vmatpush1.bf16.msra.mxu0 0
    %1934 = vmatprep.subr.bf16.mxu0 0
    %1935 = vmatpush1.bf16.msra.mxu0 0
    %1936 = vmatprep.subr.bf16.mxu0 0
    %1937 = vmatpush1.bf16.msra.mxu0 0
    %1938 = vmatprep.subr.bf16.mxu0 0
    %1939 = vmatpush1.bf16.msra.mxu0 0
    %1940 = vmatprep.subr.bf16.mxu0 0
    %1941 = vmatpush1.bf16.msra.mxu0 0
    %1942 = vmatprep.subr.bf16.mxu0 0
    %1943 = vmatpush1.bf16.msra.mxu0 0
    %1944 = vmatprep.subr.bf16.mxu0 0
    %1945 = vmatpush1.bf16.msra.mxu0 0
    %1946 = vmatprep.mubr.bf16.mxu0 0
    %1947 = vmatmul.mubr.bf16.gmra.mrb[0].mxu0 %v1688
    %v1948 = vpop.f32.mrb[0].mxu0
    %v1949 = vadd.f32 %v1702, %v1948
    %v1950 = vpop.f32.mrb[0].mxu0
    %v1951 = vadd.f32 %v1706, %v1950
    %v1952 = vpop.f32.mrb[0].mxu0
    %v1953 = vadd.f32 %v1702, %v1952
    %v1954 = vpop.f32.mrb[0].mxu0
    %v1955 = vadd.f32 %v1706, %v1954
    %1956 = vdwg.mxu0
    %v1957 = vmul.f32 %v1906, 0.5
    %v1958 = vmul.f32 %v1908, 0.5
    %v1959 = vmul.f32 %v1949, 0.5
    %v1960 = vmul.f32 %v1951, 0.5
    %v1961 = vmul.f32 %v1910, 0.5
    %v1962 = vmul.f32 %v1912, 0.5
    %v1963 = vmul.f32 %v1953, 0.5
    %v1964 = vmul.f32 %v1955, 0.5
    %v1965 = vmul.f32 %v1906, 0.70710677
    %v1966 = vmul.f32 %v1908, 0.70710677
    %v1967 = vmul.f32 %v1949, 0.70710677
    %v1968 = vmul.f32 %v1951, 0.70710677
    %v1969 = vmul.f32 %v1910, 0.70710677
    %v1970 = vmul.f32 %v1912, 0.70710677
    %v1971 = vmul.f32 %v1953, 0.70710677
    %v1972 = vmul.f32 %v1955, 0.70710677
    %v1973 = verf.f32.pop %v1965
    %v1974 = verf.f32.pop %v1966
    %v1975 = verf.f32.pop %v1967
    %v1976 = verf.f32.pop %v1968
    %v1977 = verf.f32.pop %v1969
    %v1978 = verf.f32.pop %v1970
    %v1979 = verf.f32.pop %v1971
    %v1980 = verf.f32.pop %v1972
    %v1981 = vadd.f32 %v1973, 1.0
    %v1982 = vadd.f32 %v1974, 1.0
    %v1983 = vadd.f32 %v1975, 1.0
    %v1984 = vadd.f32 %v1976, 1.0
    %v1985 = vadd.f32 %v1977, 1.0
    %v1986 = vadd.f32 %v1978, 1.0
    %v1987 = vadd.f32 %v1979, 1.0
    %v1988 = vadd.f32 %v1980, 1.0
    %v1989 = vmul.f32 %v1957, %v1981
    %v1990 = vmul.f32 %v1958, %v1982
    %v1991 = vmul.f32 %v1959, %v1983
    %v1992 = vmul.f32 %v1960, %v1984
    %v1993 = vmul.f32 %v1961, %v1985
    %v1994 = vmul.f32 %v1962, %v1986
    %v1995 = vmul.f32 %v1963, %v1987
    %v1996 = vmul.f32 %v1964, %v1988
    %v1997 = vld [vmem:[%s16] sm:$0xf]
    %v1998 = vld [vmem:[%s16 + $0x4] sm:$0xf]
    %v1999 = vld [vmem:[%s16 + $0x8] sm:$0xf]
    %v2000 = vld [vmem:[%s16 + $0xc] sm:$0xf]
    %v2001 = vld [vmem:[%s16 + $0x10] sm:$0xf]
    %v2002 = vld [vmem:[%s16 + $0x14] sm:$0xf]
    %v2003 = vld [vmem:[%s16 + $0x18] sm:$0xf]
    %v2004 = vld [vmem:[%s16 + $0x1c] sm:$0xf]
    %v2005 = vld [vmem:[%s16 + $0x20] sm:$0xf]
    %v2006 = vld [vmem:[%s16 + $0x24] sm:$0xf]
    %v2007 = vld [vmem:[%s16 + $0x28] sm:$0xf]
    %v2008 = vld [vmem:[%s16 + $0x2c] sm:$0xf]
    %v2009 = vld [vmem:[%s16 + $0x30] sm:$0xf]
    %v2010 = vld [vmem:[%s16 + $0x34] sm:$0xf]
    %v2011 = vld [vmem:[%s16 + $0x38] sm:$0xf]
    %v2012 = vld [vmem:[%s16 + $0x3c] sm:$0xf]
    %v2013 = vld [vmem:[%s16 + $0x40] sm:$0xf]
    %v2014 = vld [vmem:[%s16 + $0x44] sm:$0xf]
    %v2015 = vld [vmem:[%s16 + $0x48] sm:$0xf]
    %v2016 = vld [vmem:[%s16 + $0x4c] sm:$0xf]
    %v2017 = vld [vmem:[%s16 + $0x50] sm:$0xf]
    %v2018 = vld [vmem:[%s16 + $0x54] sm:$0xf]
    %v2019 = vld [vmem:[%s16 + $0x58] sm:$0xf]
    %v2020 = vld [vmem:[%s16 + $0x5c] sm:$0xf]
    %v2021 = vld [vmem:[%s16 + $0x60] sm:$0xf]
    %v2022 = vld [vmem:[%s16 + $0x64] sm:$0xf]
    %v2023 = vld [vmem:[%s16 + $0x68] sm:$0xf]
    %v2024 = vld [vmem:[%s16 + $0x6c] sm:$0xf]
    %v2025 = vld [vmem:[%s16 + $0x70] sm:$0xf]
    %v2026 = vld [vmem:[%s16 + $0x74] sm:$0xf]
    %v2027 = vld [vmem:[%s16 + $0x78] sm:$0xf]
    %v2028 = vld [vmem:[%s16 + $0x7c] sm:$0xf]
    %v2029 = vld [vmem:[%s16 + $0x80] sm:$0xf]
    %v2030 = vld [vmem:[%s16 + $0x84] sm:$0xf]
    %v2031 = vld [vmem:[%s16 + $0x88] sm:$0xf]
    %v2032 = vld [vmem:[%s16 + $0x8c] sm:$0xf]
    %v2033 = vld [vmem:[%s16 + $0x90] sm:$0xf]
    %v2034 = vld [vmem:[%s16 + $0x94] sm:$0xf]
    %v2035 = vld [vmem:[%s16 + $0x98] sm:$0xf]
    %v2036 = vld [vmem:[%s16 + $0x9c] sm:$0xf]
    %v2037 = vld [vmem:[%s16 + $0xa0] sm:$0xf]
    %v2038 = vld [vmem:[%s16 + $0xa4] sm:$0xf]
    %v2039 = vld [vmem:[%s16 + $0xa8] sm:$0xf]
    %v2040 = vld [vmem:[%s16 + $0xac] sm:$0xf]
    %v2041 = vld [vmem:[%s16 + $0xb0] sm:$0xf]
    %v2042 = vld [vmem:[%s16 + $0xb4] sm:$0xf]
    %v2043 = vld [vmem:[%s16 + $0xb8] sm:$0xf]
    %v2044 = vld [vmem:[%s16 + $0xbc] sm:$0xf]
    %v2045 = vld [vmem:[%s16 + $0xc0] sm:$0xf]
    %v2046 = vld [vmem:[%s16 + $0xc4] sm:$0xf]
    %v2047 = vld [vmem:[%s16 + $0xc8] sm:$0xf]
    %v2048 = vld [vmem:[%s16 + $0xcc] sm:$0xf]
    %v2049 = vld [vmem:[%s16 + $0xd0] sm:$0xf]
    %v2050 = vld [vmem:[%s16 + $0xd4] sm:$0xf]
    %v2051 = vld [vmem:[%s16 + $0xd8] sm:$0xf]
    %v2052 = vld [vmem:[%s16 + $0xdc] sm:$0xf]
    %v2053 = vld [vmem:[%s16 + $0xe0] sm:$0xf]
    %v2054 = vld [vmem:[%s16 + $0xe4] sm:$0xf]
    %v2055 = vld [vmem:[%s16 + $0xe8] sm:$0xf]
    %v2056 = vld [vmem:[%s16 + $0xec] sm:$0xf]
    %v2057 = vld [vmem:[%s16 + $0xf0] sm:$0xf]
    %v2058 = vld [vmem:[%s16 + $0xf4] sm:$0xf]
    %v2059 = vld [vmem:[%s16 + $0xf8] sm:$0xf]
    %v2060 = vld [vmem:[%s16 + $0xfc] sm:$0xf]
    %v2061 = vpack.c.bf16 %v1993, %v1989
    %v2062 = vpack.c.bf16 %v1994, %v1990
    %v2063 = vpack.c.bf16 %v1995, %v1991
    %v2064 = vpack.c.bf16 %v1996, %v1992
    %v2129 = vunpack.c.l.b16 %v1997
    %v2130 = vunpack.c.l.b16 %v1998
    %v2131 = vunpack.c.l.b16 %v1999
    %v2132 = vunpack.c.l.b16 %v2000
    %v2133 = vunpack.c.l.b16 %v2001
    %v2134 = vunpack.c.l.b16 %v2002
    %v2135 = vunpack.c.l.b16 %v2003
    %v2136 = vunpack.c.l.b16 %v2004
    %v2137 = vunpack.c.l.b16 %v2005
    %v2138 = vunpack.c.l.b16 %v2006
    %v2139 = vunpack.c.l.b16 %v2007
    %v2140 = vunpack.c.l.b16 %v2008
    %v2141 = vunpack.c.l.b16 %v2009
    %v2142 = vunpack.c.l.b16 %v2010
    %v2143 = vunpack.c.l.b16 %v2011
    %v2144 = vunpack.c.l.b16 %v2012
    %v2145 = vunpack.c.l.b16 %v2013
    %v2146 = vunpack.c.l.b16 %v2014
    %v2147 = vunpack.c.l.b16 %v2015
    %v2148 = vunpack.c.l.b16 %v2016
    %v2149 = vunpack.c.l.b16 %v2017
    %v2150 = vunpack.c.l.b16 %v2018
    %v2151 = vunpack.c.l.b16 %v2019
    %v2152 = vunpack.c.l.b16 %v2020
    %v2153 = vunpack.c.l.b16 %v2021
    %v2154 = vunpack.c.l.b16 %v2022
    %v2155 = vunpack.c.l.b16 %v2023
    %v2156 = vunpack.c.l.b16 %v2024
    %v2157 = vunpack.c.l.b16 %v2025
    %v2158 = vunpack.c.l.b16 %v2026
    %v2159 = vunpack.c.l.b16 %v2027
    %v2160 = vunpack.c.l.b16 %v2028
    %v2161 = vunpack.c.l.b16 %v2029
    %v2162 = vunpack.c.l.b16 %v2030
    %v2163 = vunpack.c.l.b16 %v2031
    %v2164 = vunpack.c.l.b16 %v2032
    %v2165 = vunpack.c.l.b16 %v2033
    %v2166 = vunpack.c.l.b16 %v2034
    %v2167 = vunpack.c.l.b16 %v2035
    %v2168 = vunpack.c.l.b16 %v2036
    %v2169 = vunpack.c.l.b16 %v2037
    %v2170 = vunpack.c.l.b16 %v2038
    %v2171 = vunpack.c.l.b16 %v2039
    %v2172 = vunpack.c.l.b16 %v2040
    %v2173 = vunpack.c.l.b16 %v2041
    %v2174 = vunpack.c.l.b16 %v2042
    %v2175 = vunpack.c.l.b16 %v2043
    %v2176 = vunpack.c.l.b16 %v2044
    %v2177 = vunpack.c.l.b16 %v2045
    %v2178 = vunpack.c.l.b16 %v2046
    %v2179 = vunpack.c.l.b16 %v2047
    %v2180 = vunpack.c.l.b16 %v2048
    %v2181 = vunpack.c.l.b16 %v2049
    %v2182 = vunpack.c.l.b16 %v2050
    %v2183 = vunpack.c.l.b16 %v2051
    %v2184 = vunpack.c.l.b16 %v2052
    %v2185 = vunpack.c.l.b16 %v2053
    %v2186 = vunpack.c.l.b16 %v2054
    %v2187 = vunpack.c.l.b16 %v2055
    %v2188 = vunpack.c.l.b16 %v2056
    %v2189 = vunpack.c.l.b16 %v2057
    %v2190 = vunpack.c.l.b16 %v2058
    %v2191 = vunpack.c.l.b16 %v2059
    %v2192 = vunpack.c.l.b16 %v2060
    %v2193 = vpack.c.b16 %v2130, %v2129
    %v2194 = vpack.c.b16 %v2132, %v2131
    %v2195 = vpack.c.b16 %v2134, %v2133
    %v2196 = vpack.c.b16 %v2136, %v2135
    %v2197 = vpack.c.b16 %v2138, %v2137
    %v2198 = vpack.c.b16 %v2140, %v2139
    %v2199 = vpack.c.b16 %v2142, %v2141
    %v2200 = vpack.c.b16 %v2144, %v2143
    %v2201 = vpack.c.b16 %v2146, %v2145
    %v2202 = vpack.c.b16 %v2148, %v2147
    %v2203 = vpack.c.b16 %v2150, %v2149
    %v2204 = vpack.c.b16 %v2152, %v2151
    %v2205 = vpack.c.b16 %v2154, %v2153
    %v2206 = vpack.c.b16 %v2156, %v2155
    %v2207 = vpack.c.b16 %v2158, %v2157
    %v2208 = vpack.c.b16 %v2160, %v2159
    %v2209 = vpack.c.b16 %v2162, %v2161
    %v2210 = vpack.c.b16 %v2164, %v2163
    %v2211 = vpack.c.b16 %v2166, %v2165
    %v2212 = vpack.c.b16 %v2168, %v2167
    %v2213 = vpack.c.b16 %v2170, %v2169
    %v2214 = vpack.c.b16 %v2172, %v2171
    %v2215 = vpack.c.b16 %v2174, %v2173
    %v2216 = vpack.c.b16 %v2176, %v2175
    %v2217 = vpack.c.b16 %v2178, %v2177
    %v2218 = vpack.c.b16 %v2180, %v2179
    %v2219 = vpack.c.b16 %v2182, %v2181
    %v2220 = vpack.c.b16 %v2184, %v2183
    %v2221 = vpack.c.b16 %v2186, %v2185
    %v2222 = vpack.c.b16 %v2188, %v2187
    %v2223 = vpack.c.b16 %v2190, %v2189
    %v2224 = vpack.c.b16 %v2192, %v2191
    %2257 = vmatprep.subr.bf16.mxu0 0
    %2258 = vmatpush1.bf16.msra.mxu0 %v2193
    %2259 = vmatprep.subr.bf16.mxu0 0
    %2260 = vmatpush1.bf16.msra.mxu0 %v2194
    %2261 = vmatprep.subr.bf16.mxu0 0
    %2262 = vmatpush1.bf16.msra.mxu0 %v2195
    %2263 = vmatprep.subr.bf16.mxu0 0
    %2264 = vmatpush1.bf16.msra.mxu0 %v2196
    %2265 = vmatprep.subr.bf16.mxu0 0
    %2266 = vmatpush1.bf16.msra.mxu0 %v2197
    %2267 = vmatprep.subr.bf16.mxu0 0
    %2268 = vmatpush1.bf16.msra.mxu0 %v2198
    %2269 = vmatprep.subr.bf16.mxu0 0
    %2270 = vmatpush1.bf16.msra.mxu0 %v2199
    %2271 = vmatprep.subr.bf16.mxu0 0
    %2272 = vmatpush1.bf16.msra.mxu0 %v2200
    %2273 = vmatprep.subr.bf16.mxu0 0
    %2274 = vmatpush1.bf16.msra.mxu0 %v2201
    %2275 = vmatprep.subr.bf16.mxu0 0
    %2276 = vmatpush1.bf16.msra.mxu0 %v2202
    %2277 = vmatprep.subr.bf16.mxu0 0
    %2278 = vmatpush1.bf16.msra.mxu0 %v2203
    %2279 = vmatprep.subr.bf16.mxu0 0
    %2280 = vmatpush1.bf16.msra.mxu0 %v2204
    %2281 = vmatprep.subr.bf16.mxu0 0
    %2282 = vmatpush1.bf16.msra.mxu0 %v2205
    %2283 = vmatprep.subr.bf16.mxu0 0
    %2284 = vmatpush1.bf16.msra.mxu0 %v2206
    %2285 = vmatprep.subr.bf16.mxu0 0
    %2286 = vmatpush1.bf16.msra.mxu0 %v2207
    %2287 = vmatprep.subr.bf16.mxu0 0
    %2288 = vmatpush1.bf16.msra.mxu0 %v2208
    %2289 = vmatprep.mubr.bf16.mxu0 %v2062
    %2290 = vmatmul.mubr.bf16.gmra.mrb[0].mxu0 %v2061
    %v2291 = vpop.f32.mrb[0].mxu0
    %v2292 = vadd.f32 0.0, %v2291
    %v2293 = vpop.f32.mrb[0].mxu0
    %v2294 = vpop.f32.mrb[0].mxu0
    %v2295 = vadd.f32 0.0, %v2294
    %v2296 = vpop.f32.mrb[0].mxu0
    %2297 = vdwg.mxu0
    %2298 = vmatprep.subr.bf16.mxu0 0
    %2299 = vmatpush1.bf16.msra.mxu0 %v2209
    %2300 = vmatprep.subr.bf16.mxu0 0
    %2301 = vmatpush1.bf16.msra.mxu0 %v2210
    %2302 = vmatprep.subr.bf16.mxu0 0
    %2303 = vmatpush1.bf16.msra.mxu0 %v2211
    %2304 = vmatprep.subr.bf16.mxu0 0
    %2305 = vmatpush1.bf16.msra.mxu0 %v2212
    %2306 = vmatprep.subr.bf16.mxu0 0
    %2307 = vmatpush1.bf16.msra.mxu0 %v2213
    %2308 = vmatprep.subr.bf16.mxu0 0
    %2309 = vmatpush1.bf16.msra.mxu0 %v2214
    %2310 = vmatprep.subr.bf16.mxu0 0
    %2311 = vmatpush1.bf16.msra.mxu0 %v2215
    %2312 = vmatprep.subr.bf16.mxu0 0
    %2313 = vmatpush1.bf16.msra.mxu0 %v2216
    %2314 = vmatprep.subr.bf16.mxu0 0
    %2315 = vmatpush1.bf16.msra.mxu0 %v2217
    %2316 = vmatprep.subr.bf16.mxu0 0
    %2317 = vmatpush1.bf16.msra.mxu0 %v2218
    %2318 = vmatprep.subr.bf16.mxu0 0
    %2319 = vmatpush1.bf16.msra.mxu0 %v2219
    %2320 = vmatprep.subr.bf16.mxu0 0
    %2321 = vmatpush1.bf16.msra.mxu0 %v2220
    %2322 = vmatprep.subr.bf16.mxu0 0
    %2323 = vmatpush1.bf16.msra.mxu0 %v2221
    %2324 = vmatprep.subr.bf16.mxu0 0
    %2325 = vmatpush1.bf16.msra.mxu0 %v2222
    %2326 = vmatprep.subr.bf16.mxu0 0
    %2327 = vmatpush1.bf16.msra.mxu0 %v2223
    %2328 = vmatprep.subr.bf16.mxu0 0
    %2329 = vmatpush1.bf16.msra.mxu0 %v2224
    %2330 = vmatprep.mubr.bf16.mxu0 %v2064
    %2331 = vmatmul.mubr.bf16.gmra.mrb[0].mxu0 %v2063
    %v2332 = vpop.f32.mrb[0].mxu0
    %v2333 = vadd.f32 %v2292, %v2332
    %v2334 = vpop.f32.mrb[0].mxu0
    %v2335 = vpop.f32.mrb[0].mxu0
    %v2336 = vadd.f32 %v2295, %v2335
    %v2337 = vpop.f32.mrb[0].mxu0
    %2338 = vdwg.mxu0
    %v2339 = vadd.f32 %v1612, %v2333
    %v2340 = vadd.f32 %v1613, %v2336
    %v2341 = vld [vmem:[%s17] sm:$0x1]
    %v2343 = vlaneseq
    %v2344 = vshrl.u32 %v2343, 7
    %v2345 = vsub.s32 0, %v2344
    %v2346 = vrot.slane %v2341, %v2345
    %v2348 = vadd.f32 %v2339, %v2346
    %v2349 = vadd.f32 %v2340, %v2346
    %s2350 = scalar_lea.vmem %s6, 1
    %v2351 = vld [vmem:[%s2350] sm:$0x1]
    %s2352 = scalar_lea.vmem %s7, 1
    %v2353 = vld [vmem:[%s2352] sm:$0x1]
    %2354 = vadd.xlane.f32.xlu0 %v2348
    %v2355 = vpop.xlane.xlu0 %2354
    %v2356 = vsel %vm665, %v2349, 0.0
    %2357 = vadd.xlane.f32.xlu0 %v2356
    %v2358 = vpop.xlane.xlu0 %2357
    %v2359 = vmul.f32 %v2355, %v669
    %v2360 = vmul.f32 %v2358, %v669
    %v2361 = vsub.f32 %v2348, %v2359
    %v2362 = vsub.f32 %v2349, %v2360
    %v2363 = vmul.f32 %v2361, %v2361
    %v2364 = vmul.f32 %v2362, %v2362
    %2365 = vadd.xlane.f32.xlu0 %v2363
    %v2366 = vpop.xlane.xlu0 %2365
    %v2367 = vsel %vm665, %v2364, 0.0
    %2368 = vadd.xlane.f32.xlu0 %v2367
    %v2369 = vpop.xlane.xlu0 %2368
    %v2370 = vmul.f32 %v2366, %v669
    %v2371 = vmul.f32 %v2369, %v669
    %v2372 = vadd.f32 %v2370, 1e-06
    %v2373 = vadd.f32 %v2371, 1e-06
    %v2374 = vrsqrt.pop %v2372
    %v2375 = vrsqrt.pop %v2373
    %v2376 = vmul.f32 %v2361, %v2374
    %v2377 = vmul.f32 %v2362, %v2375
    %v2379 = vlaneseq
    %v2380 = vshrl.u32 %v2379, 7
    %v2381 = vsub.s32 0, %v2380
    %v2382 = vrot.slane %v2351, %v2381
    %v2384 = vmul.f32 %v2376, %v2382
    %v2385 = vmul.f32 %v2377, %v2382
    %v2387 = vlaneseq
    %v2388 = vshrl.u32 %v2387, 7
    %v2389 = vsub.s32 0, %v2388
    %v2390 = vrot.slane %v2353, %v2389
    %v2392 = vadd.f32 %v2384, %v2390
    %v2393 = vadd.f32 %v2385, %v2390
    %s2394 = scalar_lea.vmem %s8, 192
    %v2395 = vld [vmem:[%s2394] sm:$0xff]
    %v2396 = vld [vmem:[%s2394 + $0x8] sm:$0xf]
    %v2397 = vld [vmem:[%s2394 + $0xc] sm:$0xff]
    %v2398 = vld [vmem:[%s2394 + $0x14] sm:$0xf]
    %v2399 = vld [vmem:[%s2394 + $0x18] sm:$0xff]
    %v2400 = vld [vmem:[%s2394 + $0x20] sm:$0xf]
    %v2401 = vld [vmem:[%s2394 + $0x24] sm:$0xff]
    %v2402 = vld [vmem:[%s2394 + $0x2c] sm:$0xf]
    %v2403 = vld [vmem:[%s2394 + $0x30] sm:$0xff]
    %v2404 = vld [vmem:[%s2394 + $0x38] sm:$0xf]
    %v2405 = vld [vmem:[%s2394 + $0x3c] sm:$0xff]
    %v2406 = vld [vmem:[%s2394 + $0x44] sm:$0xf]
    %v2407 = vld [vmem:[%s2394 + $0x48] sm:$0xff]
    %v2408 = vld [vmem:[%s2394 + $0x50] sm:$0xf]
    %v2409 = vld [vmem:[%s2394 + $0x54] sm:$0xff]
    %v2410 = vld [vmem:[%s2394 + $0x5c] sm:$0xf]
    %v2411 = vld [vmem:[%s2394 + $0x60] sm:$0xff]
    %v2412 = vld [vmem:[%s2394 + $0x68] sm:$0xf]
    %v2413 = vld [vmem:[%s2394 + $0x6c] sm:$0xff]
    %v2414 = vld [vmem:[%s2394 + $0x74] sm:$0xf]
    %v2415 = vld [vmem:[%s2394 + $0x78] sm:$0xff]
    %v2416 = vld [vmem:[%s2394 + $0x80] sm:$0xf]
    %v2417 = vld [vmem:[%s2394 + $0x84] sm:$0xff]
    %v2418 = vld [vmem:[%s2394 + $0x8c] sm:$0xf]
    %v2419 = vld [vmem:[%s2394 + $0x90] sm:$0xff]
    %v2420 = vld [vmem:[%s2394 + $0x98] sm:$0xf]
    %v2421 = vld [vmem:[%s2394 + $0x9c] sm:$0xff]
    %v2422 = vld [vmem:[%s2394 + $0xa4] sm:$0xf]
    %v2423 = vld [vmem:[%s2394 + $0xa8] sm:$0xff]
    %v2424 = vld [vmem:[%s2394 + $0xb0] sm:$0xf]
    %v2425 = vld [vmem:[%s2394 + $0xb4] sm:$0xff]
    %v2426 = vld [vmem:[%s2394 + $0xbc] sm:$0xf]
    %v2427 = vpack.c.bf16 %v2393, %v2392
    %s2428 = scalar_lea.vmem %s9, 3
    %v2429 = vld [vmem:[%s2428] sm:$0x7]
    %v2431 = vlaneseq
    %v2432 = vshrl.u32 %v2431, 7
    %v2433 = vsub.s32 0, %v2432
    %v2434 = vrot.slane %v2429, %v2433
    %v2435 = vlaneseq
    %v2436 = vshrl.u32 %v2435, 7
    %v2437 = vsub.s32 1, %v2436
    %v2438 = vrot.slane %v2429, %v2437
    %v2439 = vlaneseq
    %v2440 = vshrl.u32 %v2439, 7
    %v2441 = vsub.s32 2, %v2440
    %v2442 = vrot.slane %v2429, %v2441
    %v2478 = vunpack.c.l.b16 %v2395
    %v2479 = vunpack.c.h.b16 %v2395
    %v2480 = vunpack.c.l.b16 %v2396
    %v2481 = vunpack.c.l.b16 %v2397
    %v2482 = vunpack.c.h.b16 %v2397
    %v2483 = vunpack.c.l.b16 %v2398
    %v2484 = vunpack.c.l.b16 %v2399
    %v2485 = vunpack.c.h.b16 %v2399
    %v2486 = vunpack.c.l.b16 %v2400
    %v2487 = vunpack.c.l.b16 %v2401
    %v2488 = vunpack.c.h.b16 %v2401
    %v2489 = vunpack.c.l.b16 %v2402
    %v2490 = vunpack.c.l.b16 %v2403
    %v2491 = vunpack.c.h.b16 %v2403
    %v2492 = vunpack.c.l.b16 %v2404
    %v2493 = vunpack.c.l.b16 %v2405
    %v2494 = vunpack.c.h.b16 %v2405
    %v2495 = vunpack.c.l.b16 %v2406
    %v2496 = vunpack.c.l.b16 %v2407
    %v2497 = vunpack.c.h.b16 %v2407
    %v2498 = vunpack.c.l.b16 %v2408
    %v2499 = vunpack.c.l.b16 %v2409
    %v2500 = vunpack.c.h.b16 %v2409
    %v2501 = vunpack.c.l.b16 %v2410
    %v2502 = vunpack.c.l.b16 %v2411
    %v2503 = vunpack.c.h.b16 %v2411
    %v2504 = vunpack.c.l.b16 %v2412
    %v2505 = vunpack.c.l.b16 %v2413
    %v2506 = vunpack.c.h.b16 %v2413
    %v2507 = vunpack.c.l.b16 %v2414
    %v2508 = vunpack.c.l.b16 %v2415
    %v2509 = vunpack.c.h.b16 %v2415
    %v2510 = vunpack.c.l.b16 %v2416
    %v2511 = vunpack.c.l.b16 %v2417
    %v2512 = vunpack.c.h.b16 %v2417
    %v2513 = vunpack.c.l.b16 %v2418
    %v2514 = vunpack.c.l.b16 %v2419
    %v2515 = vunpack.c.h.b16 %v2419
    %v2516 = vunpack.c.l.b16 %v2420
    %v2517 = vunpack.c.l.b16 %v2421
    %v2518 = vunpack.c.h.b16 %v2421
    %v2519 = vunpack.c.l.b16 %v2422
    %v2520 = vunpack.c.l.b16 %v2423
    %v2521 = vunpack.c.h.b16 %v2423
    %v2522 = vunpack.c.l.b16 %v2424
    %v2523 = vunpack.c.l.b16 %v2425
    %v2524 = vunpack.c.h.b16 %v2425
    %v2525 = vunpack.c.l.b16 %v2426
    %v2526 = vpack.c.b16 %v2481, %v2478
    %v2527 = vpack.c.b16 %v2482, %v2479
    %v2528 = vpack.c.b16 %v2483, %v2480
    %v2529 = vpack.c.b16 %v2487, %v2484
    %v2530 = vpack.c.b16 %v2488, %v2485
    %v2531 = vpack.c.b16 %v2489, %v2486
    %v2532 = vpack.c.b16 %v2493, %v2490
    %v2533 = vpack.c.b16 %v2494, %v2491
    %v2534 = vpack.c.b16 %v2495, %v2492
    %v2535 = vpack.c.b16 %v2499, %v2496
    %v2536 = vpack.c.b16 %v2500, %v2497
    %v2537 = vpack.c.b16 %v2501, %v2498
    %v2538 = vpack.c.b16 %v2505, %v2502
    %v2539 = vpack.c.b16 %v2506, %v2503
    %v2540 = vpack.c.b16 %v2507, %v2504
    %v2541 = vpack.c.b16 %v2511, %v2508
    %v2542 = vpack.c.b16 %v2512, %v2509
    %v2543 = vpack.c.b16 %v2513, %v2510
    %v2544 = vpack.c.b16 %v2517, %v2514
    %v2545 = vpack.c.b16 %v2518, %v2515
    %v2546 = vpack.c.b16 %v2519, %v2516
    %v2547 = vpack.c.b16 %v2523, %v2520
    %v2548 = vpack.c.b16 %v2524, %v2521
    %v2549 = vpack.c.b16 %v2525, %v2522
    %2574 = vmatprep.subr.bf16.mxu0 %v2527
    %2575 = vmatpush1.bf16.msra.mxu0 %v2526
    %2576 = vmatprep.subr.bf16.mxu0 %v2530
    %2577 = vmatpush1.bf16.msra.mxu0 %v2529
    %2578 = vmatprep.subr.bf16.mxu0 %v2533
    %2579 = vmatpush1.bf16.msra.mxu0 %v2532
    %2580 = vmatprep.subr.bf16.mxu0 %v2536
    %2581 = vmatpush1.bf16.msra.mxu0 %v2535
    %2582 = vmatprep.subr.bf16.mxu0 %v2539
    %2583 = vmatpush1.bf16.msra.mxu0 %v2538
    %2584 = vmatprep.subr.bf16.mxu0 %v2542
    %2585 = vmatpush1.bf16.msra.mxu0 %v2541
    %2586 = vmatprep.subr.bf16.mxu0 %v2545
    %2587 = vmatpush1.bf16.msra.mxu0 %v2544
    %2588 = vmatprep.subr.bf16.mxu0 %v2548
    %2589 = vmatpush1.bf16.msra.mxu0 %v2547
    %2590 = vmatprep.subr.bf16.mxu0 0
    %2591 = vmatpush1.bf16.msra.mxu0 0
    %2592 = vmatprep.subr.bf16.mxu0 0
    %2593 = vmatpush1.bf16.msra.mxu0 0
    %2594 = vmatprep.subr.bf16.mxu0 0
    %2595 = vmatpush1.bf16.msra.mxu0 0
    %2596 = vmatprep.subr.bf16.mxu0 0
    %2597 = vmatpush1.bf16.msra.mxu0 0
    %2598 = vmatprep.subr.bf16.mxu0 0
    %2599 = vmatpush1.bf16.msra.mxu0 0
    %2600 = vmatprep.subr.bf16.mxu0 0
    %2601 = vmatpush1.bf16.msra.mxu0 0
    %2602 = vmatprep.subr.bf16.mxu0 0
    %2603 = vmatpush1.bf16.msra.mxu0 0
    %2604 = vmatprep.subr.bf16.mxu0 0
    %2605 = vmatpush1.bf16.msra.mxu0 0
    %2606 = vmatprep.mubr.bf16.mxu0 0
    %2607 = vmatmul.mubr.bf16.gmra.mrb[0].mxu0 %v2427
    %v2608 = vpop.f32.mrb[0].mxu0
    %v2609 = vadd.f32 %v2434, %v2608
    %v2610 = vpop.f32.mrb[0].mxu0
    %v2611 = vadd.f32 %v2438, %v2610
    %v2612 = vpop.f32.mrb[0].mxu0
    %v2613 = vadd.f32 %v2434, %v2612
    %v2614 = vpop.f32.mrb[0].mxu0
    %v2615 = vadd.f32 %v2438, %v2614
    %2616 = vdwg.mxu0
    %2617 = vmatprep.subr.bf16.mxu0 0
    %2618 = vmatpush1.bf16.msra.mxu0 %v2528
    %2619 = vmatprep.subr.bf16.mxu0 0
    %2620 = vmatpush1.bf16.msra.mxu0 %v2531
    %2621 = vmatprep.subr.bf16.mxu0 0
    %2622 = vmatpush1.bf16.msra.mxu0 %v2534
    %2623 = vmatprep.subr.bf16.mxu0 0
    %2624 = vmatpush1.bf16.msra.mxu0 %v2537
    %2625 = vmatprep.subr.bf16.mxu0 0
    %2626 = vmatpush1.bf16.msra.mxu0 %v2540
    %2627 = vmatprep.subr.bf16.mxu0 0
    %2628 = vmatpush1.bf16.msra.mxu0 %v2543
    %2629 = vmatprep.subr.bf16.mxu0 0
    %2630 = vmatpush1.bf16.msra.mxu0 %v2546
    %2631 = vmatprep.subr.bf16.mxu0 0
    %2632 = vmatpush1.bf16.msra.mxu0 %v2549
    %2633 = vmatprep.subr.bf16.mxu0 0
    %2634 = vmatpush1.bf16.msra.mxu0 0
    %2635 = vmatprep.subr.bf16.mxu0 0
    %2636 = vmatpush1.bf16.msra.mxu0 0
    %2637 = vmatprep.subr.bf16.mxu0 0
    %2638 = vmatpush1.bf16.msra.mxu0 0
    %2639 = vmatprep.subr.bf16.mxu0 0
    %2640 = vmatpush1.bf16.msra.mxu0 0
    %2641 = vmatprep.subr.bf16.mxu0 0
    %2642 = vmatpush1.bf16.msra.mxu0 0
    %2643 = vmatprep.subr.bf16.mxu0 0
    %2644 = vmatpush1.bf16.msra.mxu0 0
    %2645 = vmatprep.subr.bf16.mxu0 0
    %2646 = vmatpush1.bf16.msra.mxu0 0
    %2647 = vmatprep.subr.bf16.mxu0 0
    %2648 = vmatpush1.bf16.msra.mxu0 0
    %2649 = vmatprep.mubr.bf16.mxu0 0
    %2650 = vmatmul.mubr.bf16.gmra.mrb[0].mxu0 %v2427
    %v2651 = vpop.f32.mrb[0].mxu0
    %v2652 = vadd.f32 %v2442, %v2651
    %v2653 = vpop.f32.mrb[0].mxu0
    %v2654 = vpop.f32.mrb[0].mxu0
    %v2655 = vadd.f32 %v2442, %v2654
    %v2656 = vpop.f32.mrb[0].mxu0
    %2657 = vdwg.mxu0
    %v2658 = vmul.f32 %v2609, 0.17677669
    %v2659 = vmul.f32 %v2613, 0.17677669
    %v2660 = vpack.c.bf16 %v2659, %v2658
    %v2661 = vpack.c.bf16 %v2615, %v2611
    %v2662 = vpack.c.bf16 %v2655, %v2652
    %v2664 = vsel %vm972, %v2660, 0
    %v2667 = vsel %vm972, %v2661, 0
    %2669 = vmatprep.subr.bf16.mxu0 0
    %2670 = vmatpush1.bf16.xpose.msra.mxu0 %v2667
    %2671 = vmatprep.subr.bf16.mxu0 0
    %2672 = vmatpush1.bf16.xpose.msra.mxu0 0
    %2673 = vmatprep.subr.bf16.mxu0 0
    %2674 = vmatpush1.bf16.xpose.msra.mxu0 0
    %2675 = vmatprep.subr.bf16.mxu0 0
    %2676 = vmatpush1.bf16.xpose.msra.mxu0 0
    %2677 = vmatprep.subr.bf16.mxu0 0
    %2678 = vmatpush1.bf16.xpose.msra.mxu0 0
    %2679 = vmatprep.subr.bf16.mxu0 0
    %2680 = vmatpush1.bf16.xpose.msra.mxu0 0
    %2681 = vmatprep.subr.bf16.mxu0 0
    %2682 = vmatpush1.bf16.xpose.msra.mxu0 0
    %2683 = vmatprep.subr.bf16.mxu0 0
    %2684 = vmatpush1.bf16.xpose.msra.mxu0 0
    %2685 = vmatprep.subr.bf16.mxu0 0
    %2686 = vmatpush1.bf16.xpose.msra.mxu0 0
    %2687 = vmatprep.subr.bf16.mxu0 0
    %2688 = vmatpush1.bf16.xpose.msra.mxu0 0
    %2689 = vmatprep.subr.bf16.mxu0 0
    %2690 = vmatpush1.bf16.xpose.msra.mxu0 0
    %2691 = vmatprep.subr.bf16.mxu0 0
    %2692 = vmatpush1.bf16.xpose.msra.mxu0 0
    %2693 = vmatprep.subr.bf16.mxu0 0
    %2694 = vmatpush1.bf16.xpose.msra.mxu0 0
    %2695 = vmatprep.subr.bf16.mxu0 0
    %2696 = vmatpush1.bf16.xpose.msra.mxu0 0
    %2697 = vmatprep.subr.bf16.mxu0 0
    %2698 = vmatpush1.bf16.xpose.msra.mxu0 0
    %2699 = vmatprep.subr.bf16.mxu0 0
    %2700 = vmatpush1.bf16.xpose.msra.mxu0 0
    %2701 = vmatprep.mubr.bf16.mxu0 0
    %2702 = vmatmul.mubr.bf16.gmra.mrb[0].mxu0 %v2664
    %v2703 = vpop.f32.mrb[0].mxu0
    %v2704 = vadd.f32 %v659, %v2703
    %v2705 = vpop.f32.mrb[0].mxu0
    %v2706 = vpop.f32.mrb[0].mxu0
    %v2707 = vadd.f32 %v660, %v2706
    %v2708 = vpop.f32.mrb[0].mxu0
    %2709 = vdwg.mxu0
    %v2710 = vsel %vm1020, %v2704, -inf
    %2711 = vmax.xlane.f32.xlu0 %v2710
    %v2712 = vpop.xlane.xlu0 %2711
    %v2713 = vsel %vm1024, %v2707, -inf
    %2714 = vmax.xlane.f32.xlu0 %v2713
    %v2715 = vpop.xlane.xlu0 %2714
    %v2716 = vsub.f32 %v2704, %v2712
    %v2717 = vsub.f32 %v2707, %v2715
    %v2718 = vmul.f32 %v2716, 1.442695
    %v2719 = vpow.pop %v2718
    %v2720 = vmul.f32 %v2717, 1.442695
    %v2721 = vpow.pop %v2720
    %v2722 = vsel %vm1020, %v2719, 0.0
    %2723 = vadd.xlane.f32.xlu0 %v2722
    %v2724 = vpop.xlane.xlu0 %2723
    %v2725 = vsel %vm1024, %v2721, 0.0
    %2726 = vadd.xlane.f32.xlu0 %v2725
    %v2727 = vpop.xlane.xlu0 %2726
    %v2728 = vrcp.pop %v2724
    %v2729 = vrcp.pop %v2727
    %v2730 = vmul.f32 %v2719, %v2728
    %v2731 = vmul.f32 %v2721, %v2729
    %v2732 = vpack.c.bf16 %v2731, %v2730
    %v2734 = vsel %vm1020, %v2732, 0
    %v2737 = vsel %vm1048, %v2662, 0
    %2739 = vmatprep.subr.bf16.mxu0 0
    %2740 = vmatpush1.bf16.msra.mxu0 %v2737
    %2741 = vmatprep.subr.bf16.mxu0 0
    %2742 = vmatpush1.bf16.msra.mxu0 0
    %2743 = vmatprep.subr.bf16.mxu0 0
    %2744 = vmatpush1.bf16.msra.mxu0 0
    %2745 = vmatprep.subr.bf16.mxu0 0
    %2746 = vmatpush1.bf16.msra.mxu0 0
    %2747 = vmatprep.subr.bf16.mxu0 0
    %2748 = vmatpush1.bf16.msra.mxu0 0
    %2749 = vmatprep.subr.bf16.mxu0 0
    %2750 = vmatpush1.bf16.msra.mxu0 0
    %2751 = vmatprep.subr.bf16.mxu0 0
    %2752 = vmatpush1.bf16.msra.mxu0 0
    %2753 = vmatprep.subr.bf16.mxu0 0
    %2754 = vmatpush1.bf16.msra.mxu0 0
    %2755 = vmatprep.subr.bf16.mxu0 0
    %2756 = vmatpush1.bf16.msra.mxu0 0
    %2757 = vmatprep.subr.bf16.mxu0 0
    %2758 = vmatpush1.bf16.msra.mxu0 0
    %2759 = vmatprep.subr.bf16.mxu0 0
    %2760 = vmatpush1.bf16.msra.mxu0 0
    %2761 = vmatprep.subr.bf16.mxu0 0
    %2762 = vmatpush1.bf16.msra.mxu0 0
    %2763 = vmatprep.subr.bf16.mxu0 0
    %2764 = vmatpush1.bf16.msra.mxu0 0
    %2765 = vmatprep.subr.bf16.mxu0 0
    %2766 = vmatpush1.bf16.msra.mxu0 0
    %2767 = vmatprep.subr.bf16.mxu0 0
    %2768 = vmatpush1.bf16.msra.mxu0 0
    %2769 = vmatprep.subr.bf16.mxu0 0
    %2770 = vmatpush1.bf16.msra.mxu0 0
    %2771 = vmatprep.mubr.bf16.mxu0 0
    %2772 = vmatmul.mubr.bf16.gmra.mrb[0].mxu0 %v2734
    %v2773 = vpop.f32.mrb[0].mxu0
    %v2774 = vadd.f32 0.0, %v2773
    %v2775 = vpop.f32.mrb[0].mxu0
    %v2776 = vpop.f32.mrb[0].mxu0
    %v2777 = vadd.f32 0.0, %v2776
    %v2778 = vpop.f32.mrb[0].mxu0
    %2779 = vdwg.mxu0
    %2781 = vrot.lane.b32.xlu0 %v2660, 96
    %v2782 = vpop.permute.xlu0 %2781
    %2784 = vrot.lane.b32.xlu0 %v2661, 96
    %v2785 = vpop.permute.xlu0 %2784
    %v2787 = vsel %vm972, %v2782, 0
    %v2790 = vsel %vm972, %v2785, 0
    %2792 = vmatprep.subr.bf16.mxu0 0
    %2793 = vmatpush1.bf16.xpose.msra.mxu0 %v2790
    %2794 = vmatprep.subr.bf16.mxu0 0
    %2795 = vmatpush1.bf16.xpose.msra.mxu0 0
    %2796 = vmatprep.subr.bf16.mxu0 0
    %2797 = vmatpush1.bf16.xpose.msra.mxu0 0
    %2798 = vmatprep.subr.bf16.mxu0 0
    %2799 = vmatpush1.bf16.xpose.msra.mxu0 0
    %2800 = vmatprep.subr.bf16.mxu0 0
    %2801 = vmatpush1.bf16.xpose.msra.mxu0 0
    %2802 = vmatprep.subr.bf16.mxu0 0
    %2803 = vmatpush1.bf16.xpose.msra.mxu0 0
    %2804 = vmatprep.subr.bf16.mxu0 0
    %2805 = vmatpush1.bf16.xpose.msra.mxu0 0
    %2806 = vmatprep.subr.bf16.mxu0 0
    %2807 = vmatpush1.bf16.xpose.msra.mxu0 0
    %2808 = vmatprep.subr.bf16.mxu0 0
    %2809 = vmatpush1.bf16.xpose.msra.mxu0 0
    %2810 = vmatprep.subr.bf16.mxu0 0
    %2811 = vmatpush1.bf16.xpose.msra.mxu0 0
    %2812 = vmatprep.subr.bf16.mxu0 0
    %2813 = vmatpush1.bf16.xpose.msra.mxu0 0
    %2814 = vmatprep.subr.bf16.mxu0 0
    %2815 = vmatpush1.bf16.xpose.msra.mxu0 0
    %2816 = vmatprep.subr.bf16.mxu0 0
    %2817 = vmatpush1.bf16.xpose.msra.mxu0 0
    %2818 = vmatprep.subr.bf16.mxu0 0
    %2819 = vmatpush1.bf16.xpose.msra.mxu0 0
    %2820 = vmatprep.subr.bf16.mxu0 0
    %2821 = vmatpush1.bf16.xpose.msra.mxu0 0
    %2822 = vmatprep.subr.bf16.mxu0 0
    %2823 = vmatpush1.bf16.xpose.msra.mxu0 0
    %2824 = vmatprep.mubr.bf16.mxu0 0
    %2825 = vmatmul.mubr.bf16.gmra.mrb[0].mxu0 %v2787
    %v2826 = vpop.f32.mrb[0].mxu0
    %v2827 = vadd.f32 %v659, %v2826
    %v2828 = vpop.f32.mrb[0].mxu0
    %v2829 = vpop.f32.mrb[0].mxu0
    %v2830 = vadd.f32 %v660, %v2829
    %v2831 = vpop.f32.mrb[0].mxu0
    %2832 = vdwg.mxu0
    %v2833 = vsel %vm1020, %v2827, -inf
    %2834 = vmax.xlane.f32.xlu0 %v2833
    %v2835 = vpop.xlane.xlu0 %2834
    %v2836 = vsel %vm1024, %v2830, -inf
    %2837 = vmax.xlane.f32.xlu0 %v2836
    %v2838 = vpop.xlane.xlu0 %2837
    %v2839 = vsub.f32 %v2827, %v2835
    %v2840 = vsub.f32 %v2830, %v2838
    %v2841 = vmul.f32 %v2839, 1.442695
    %v2842 = vpow.pop %v2841
    %v2843 = vmul.f32 %v2840, 1.442695
    %v2844 = vpow.pop %v2843
    %v2845 = vsel %vm1020, %v2842, 0.0
    %2846 = vadd.xlane.f32.xlu0 %v2845
    %v2847 = vpop.xlane.xlu0 %2846
    %v2848 = vsel %vm1024, %v2844, 0.0
    %2849 = vadd.xlane.f32.xlu0 %v2848
    %v2850 = vpop.xlane.xlu0 %2849
    %v2851 = vrcp.pop %v2847
    %v2852 = vrcp.pop %v2850
    %v2853 = vmul.f32 %v2842, %v2851
    %v2854 = vmul.f32 %v2844, %v2852
    %v2855 = vpack.c.bf16 %v2854, %v2853
    %2857 = vrot.lane.b32.xlu0 %v2662, 96
    %v2858 = vpop.permute.xlu0 %2857
    %v2860 = vsel %vm1020, %v2855, 0
    %v2863 = vsel %vm1048, %v2858, 0
    %2865 = vmatprep.subr.bf16.mxu0 0
    %2866 = vmatpush1.bf16.msra.mxu0 %v2863
    %2867 = vmatprep.subr.bf16.mxu0 0
    %2868 = vmatpush1.bf16.msra.mxu0 0
    %2869 = vmatprep.subr.bf16.mxu0 0
    %2870 = vmatpush1.bf16.msra.mxu0 0
    %2871 = vmatprep.subr.bf16.mxu0 0
    %2872 = vmatpush1.bf16.msra.mxu0 0
    %2873 = vmatprep.subr.bf16.mxu0 0
    %2874 = vmatpush1.bf16.msra.mxu0 0
    %2875 = vmatprep.subr.bf16.mxu0 0
    %2876 = vmatpush1.bf16.msra.mxu0 0
    %2877 = vmatprep.subr.bf16.mxu0 0
    %2878 = vmatpush1.bf16.msra.mxu0 0
    %2879 = vmatprep.subr.bf16.mxu0 0
    %2880 = vmatpush1.bf16.msra.mxu0 0
    %2881 = vmatprep.subr.bf16.mxu0 0
    %2882 = vmatpush1.bf16.msra.mxu0 0
    %2883 = vmatprep.subr.bf16.mxu0 0
    %2884 = vmatpush1.bf16.msra.mxu0 0
    %2885 = vmatprep.subr.bf16.mxu0 0
    %2886 = vmatpush1.bf16.msra.mxu0 0
    %2887 = vmatprep.subr.bf16.mxu0 0
    %2888 = vmatpush1.bf16.msra.mxu0 0
    %2889 = vmatprep.subr.bf16.mxu0 0
    %2890 = vmatpush1.bf16.msra.mxu0 0
    %2891 = vmatprep.subr.bf16.mxu0 0
    %2892 = vmatpush1.bf16.msra.mxu0 0
    %2893 = vmatprep.subr.bf16.mxu0 0
    %2894 = vmatpush1.bf16.msra.mxu0 0
    %2895 = vmatprep.subr.bf16.mxu0 0
    %2896 = vmatpush1.bf16.msra.mxu0 0
    %2897 = vmatprep.mubr.bf16.mxu0 0
    %2898 = vmatmul.mubr.bf16.gmra.mrb[0].mxu0 %v2860
    %v2899 = vpop.f32.mrb[0].mxu0
    %v2900 = vadd.f32 0.0, %v2899
    %v2901 = vpop.f32.mrb[0].mxu0
    %v2902 = vpop.f32.mrb[0].mxu0
    %v2903 = vadd.f32 0.0, %v2902
    %v2904 = vpop.f32.mrb[0].mxu0
    %2905 = vdwg.mxu0
    %2906 = vrot.lane.b32.xlu0 %v2660, 64
    %v2907 = vpop.permute.xlu0 %2906
    %2908 = vrot.lane.b32.xlu0 %v2661, 64
    %v2909 = vpop.permute.xlu0 %2908
    %v2911 = vsel %vm972, %v2907, 0
    %v2914 = vsel %vm972, %v2909, 0
    %2916 = vmatprep.subr.bf16.mxu0 0
    %2917 = vmatpush1.bf16.xpose.msra.mxu0 %v2914
    %2918 = vmatprep.subr.bf16.mxu0 0
    %2919 = vmatpush1.bf16.xpose.msra.mxu0 0
    %2920 = vmatprep.subr.bf16.mxu0 0
    %2921 = vmatpush1.bf16.xpose.msra.mxu0 0
    %2922 = vmatprep.subr.bf16.mxu0 0
    %2923 = vmatpush1.bf16.xpose.msra.mxu0 0
    %2924 = vmatprep.subr.bf16.mxu0 0
    %2925 = vmatpush1.bf16.xpose.msra.mxu0 0
    %2926 = vmatprep.subr.bf16.mxu0 0
    %2927 = vmatpush1.bf16.xpose.msra.mxu0 0
    %2928 = vmatprep.subr.bf16.mxu0 0
    %2929 = vmatpush1.bf16.xpose.msra.mxu0 0
    %2930 = vmatprep.subr.bf16.mxu0 0
    %2931 = vmatpush1.bf16.xpose.msra.mxu0 0
    %2932 = vmatprep.subr.bf16.mxu0 0
    %2933 = vmatpush1.bf16.xpose.msra.mxu0 0
    %2934 = vmatprep.subr.bf16.mxu0 0
    %2935 = vmatpush1.bf16.xpose.msra.mxu0 0
    %2936 = vmatprep.subr.bf16.mxu0 0
    %2937 = vmatpush1.bf16.xpose.msra.mxu0 0
    %2938 = vmatprep.subr.bf16.mxu0 0
    %2939 = vmatpush1.bf16.xpose.msra.mxu0 0
    %2940 = vmatprep.subr.bf16.mxu0 0
    %2941 = vmatpush1.bf16.xpose.msra.mxu0 0
    %2942 = vmatprep.subr.bf16.mxu0 0
    %2943 = vmatpush1.bf16.xpose.msra.mxu0 0
    %2944 = vmatprep.subr.bf16.mxu0 0
    %2945 = vmatpush1.bf16.xpose.msra.mxu0 0
    %2946 = vmatprep.subr.bf16.mxu0 0
    %2947 = vmatpush1.bf16.xpose.msra.mxu0 0
    %2948 = vmatprep.mubr.bf16.mxu0 0
    %2949 = vmatmul.mubr.bf16.gmra.mrb[0].mxu0 %v2911
    %v2950 = vpop.f32.mrb[0].mxu0
    %v2951 = vadd.f32 %v659, %v2950
    %v2952 = vpop.f32.mrb[0].mxu0
    %v2953 = vpop.f32.mrb[0].mxu0
    %v2954 = vadd.f32 %v660, %v2953
    %v2955 = vpop.f32.mrb[0].mxu0
    %2956 = vdwg.mxu0
    %v2957 = vsel %vm1020, %v2951, -inf
    %2958 = vmax.xlane.f32.xlu0 %v2957
    %v2959 = vpop.xlane.xlu0 %2958
    %v2960 = vsel %vm1024, %v2954, -inf
    %2961 = vmax.xlane.f32.xlu0 %v2960
    %v2962 = vpop.xlane.xlu0 %2961
    %v2963 = vsub.f32 %v2951, %v2959
    %v2964 = vsub.f32 %v2954, %v2962
    %v2965 = vmul.f32 %v2963, 1.442695
    %v2966 = vpow.pop %v2965
    %v2967 = vmul.f32 %v2964, 1.442695
    %v2968 = vpow.pop %v2967
    %v2969 = vsel %vm1020, %v2966, 0.0
    %2970 = vadd.xlane.f32.xlu0 %v2969
    %v2971 = vpop.xlane.xlu0 %2970
    %v2972 = vsel %vm1024, %v2968, 0.0
    %2973 = vadd.xlane.f32.xlu0 %v2972
    %v2974 = vpop.xlane.xlu0 %2973
    %v2975 = vrcp.pop %v2971
    %v2976 = vrcp.pop %v2974
    %v2977 = vmul.f32 %v2966, %v2975
    %v2978 = vmul.f32 %v2968, %v2976
    %v2979 = vpack.c.bf16 %v2978, %v2977
    %2980 = vrot.lane.b32.xlu0 %v2662, 64
    %v2981 = vpop.permute.xlu0 %2980
    %v2983 = vsel %vm1020, %v2979, 0
    %v2986 = vsel %vm1048, %v2981, 0
    %2988 = vmatprep.subr.bf16.mxu0 0
    %2989 = vmatpush1.bf16.msra.mxu0 %v2986
    %2990 = vmatprep.subr.bf16.mxu0 0
    %2991 = vmatpush1.bf16.msra.mxu0 0
    %2992 = vmatprep.subr.bf16.mxu0 0
    %2993 = vmatpush1.bf16.msra.mxu0 0
    %2994 = vmatprep.subr.bf16.mxu0 0
    %2995 = vmatpush1.bf16.msra.mxu0 0
    %2996 = vmatprep.subr.bf16.mxu0 0
    %2997 = vmatpush1.bf16.msra.mxu0 0
    %2998 = vmatprep.subr.bf16.mxu0 0
    %2999 = vmatpush1.bf16.msra.mxu0 0
    %3000 = vmatprep.subr.bf16.mxu0 0
    %3001 = vmatpush1.bf16.msra.mxu0 0
    %3002 = vmatprep.subr.bf16.mxu0 0
    %3003 = vmatpush1.bf16.msra.mxu0 0
    %3004 = vmatprep.subr.bf16.mxu0 0
    %3005 = vmatpush1.bf16.msra.mxu0 0
    %3006 = vmatprep.subr.bf16.mxu0 0
    %3007 = vmatpush1.bf16.msra.mxu0 0
    %3008 = vmatprep.subr.bf16.mxu0 0
    %3009 = vmatpush1.bf16.msra.mxu0 0
    %3010 = vmatprep.subr.bf16.mxu0 0
    %3011 = vmatpush1.bf16.msra.mxu0 0
    %3012 = vmatprep.subr.bf16.mxu0 0
    %3013 = vmatpush1.bf16.msra.mxu0 0
    %3014 = vmatprep.subr.bf16.mxu0 0
    %3015 = vmatpush1.bf16.msra.mxu0 0
    %3016 = vmatprep.subr.bf16.mxu0 0
    %3017 = vmatpush1.bf16.msra.mxu0 0
    %3018 = vmatprep.subr.bf16.mxu0 0
    %3019 = vmatpush1.bf16.msra.mxu0 0
    %3020 = vmatprep.mubr.bf16.mxu0 0
    %3021 = vmatmul.mubr.bf16.gmra.mrb[0].mxu0 %v2983
    %v3022 = vpop.f32.mrb[0].mxu0
    %v3023 = vadd.f32 0.0, %v3022
    %v3024 = vpop.f32.mrb[0].mxu0
    %v3025 = vpop.f32.mrb[0].mxu0
    %v3026 = vadd.f32 0.0, %v3025
    %v3027 = vpop.f32.mrb[0].mxu0
    %3028 = vdwg.mxu0
    %3029 = vrot.lane.b32.xlu0 %v2660, 32
    %v3030 = vpop.permute.xlu0 %3029
    %3031 = vrot.lane.b32.xlu0 %v2661, 32
    %v3032 = vpop.permute.xlu0 %3031
    %v3034 = vsel %vm972, %v3030, 0
    %v3037 = vsel %vm972, %v3032, 0
    %3039 = vmatprep.subr.bf16.mxu0 0
    %3040 = vmatpush1.bf16.xpose.msra.mxu0 %v3037
    %3041 = vmatprep.subr.bf16.mxu0 0
    %3042 = vmatpush1.bf16.xpose.msra.mxu0 0
    %3043 = vmatprep.subr.bf16.mxu0 0
    %3044 = vmatpush1.bf16.xpose.msra.mxu0 0
    %3045 = vmatprep.subr.bf16.mxu0 0
    %3046 = vmatpush1.bf16.xpose.msra.mxu0 0
    %3047 = vmatprep.subr.bf16.mxu0 0
    %3048 = vmatpush1.bf16.xpose.msra.mxu0 0
    %3049 = vmatprep.subr.bf16.mxu0 0
    %3050 = vmatpush1.bf16.xpose.msra.mxu0 0
    %3051 = vmatprep.subr.bf16.mxu0 0
    %3052 = vmatpush1.bf16.xpose.msra.mxu0 0
    %3053 = vmatprep.subr.bf16.mxu0 0
    %3054 = vmatpush1.bf16.xpose.msra.mxu0 0
    %3055 = vmatprep.subr.bf16.mxu0 0
    %3056 = vmatpush1.bf16.xpose.msra.mxu0 0
    %3057 = vmatprep.subr.bf16.mxu0 0
    %3058 = vmatpush1.bf16.xpose.msra.mxu0 0
    %3059 = vmatprep.subr.bf16.mxu0 0
    %3060 = vmatpush1.bf16.xpose.msra.mxu0 0
    %3061 = vmatprep.subr.bf16.mxu0 0
    %3062 = vmatpush1.bf16.xpose.msra.mxu0 0
    %3063 = vmatprep.subr.bf16.mxu0 0
    %3064 = vmatpush1.bf16.xpose.msra.mxu0 0
    %3065 = vmatprep.subr.bf16.mxu0 0
    %3066 = vmatpush1.bf16.xpose.msra.mxu0 0
    %3067 = vmatprep.subr.bf16.mxu0 0
    %3068 = vmatpush1.bf16.xpose.msra.mxu0 0
    %3069 = vmatprep.subr.bf16.mxu0 0
    %3070 = vmatpush1.bf16.xpose.msra.mxu0 0
    %3071 = vmatprep.mubr.bf16.mxu0 0
    %3072 = vmatmul.mubr.bf16.gmra.mrb[0].mxu0 %v3034
    %v3073 = vpop.f32.mrb[0].mxu0
    %v3074 = vadd.f32 %v659, %v3073
    %v3075 = vpop.f32.mrb[0].mxu0
    %v3076 = vpop.f32.mrb[0].mxu0
    %v3077 = vadd.f32 %v660, %v3076
    %v3078 = vpop.f32.mrb[0].mxu0
    %3079 = vdwg.mxu0
    %v3080 = vsel %vm1020, %v3074, -inf
    %3081 = vmax.xlane.f32.xlu0 %v3080
    %v3082 = vpop.xlane.xlu0 %3081
    %v3083 = vsel %vm1024, %v3077, -inf
    %3084 = vmax.xlane.f32.xlu0 %v3083
    %v3085 = vpop.xlane.xlu0 %3084
    %v3086 = vsub.f32 %v3074, %v3082
    %v3087 = vsub.f32 %v3077, %v3085
    %v3088 = vmul.f32 %v3086, 1.442695
    %v3089 = vpow.pop %v3088
    %v3090 = vmul.f32 %v3087, 1.442695
    %v3091 = vpow.pop %v3090
    %v3092 = vsel %vm1020, %v3089, 0.0
    %3093 = vadd.xlane.f32.xlu0 %v3092
    %v3094 = vpop.xlane.xlu0 %3093
    %v3095 = vsel %vm1024, %v3091, 0.0
    %3096 = vadd.xlane.f32.xlu0 %v3095
    %v3097 = vpop.xlane.xlu0 %3096
    %v3098 = vrcp.pop %v3094
    %v3099 = vrcp.pop %v3097
    %v3100 = vmul.f32 %v3089, %v3098
    %v3101 = vmul.f32 %v3091, %v3099
    %v3102 = vpack.c.bf16 %v3101, %v3100
    %3103 = vrot.lane.b32.xlu0 %v2662, 32
    %v3104 = vpop.permute.xlu0 %3103
    %v3106 = vsel %vm1020, %v3102, 0
    %v3109 = vsel %vm1048, %v3104, 0
    %3111 = vmatprep.subr.bf16.mxu0 0
    %3112 = vmatpush1.bf16.msra.mxu0 %v3109
    %3113 = vmatprep.subr.bf16.mxu0 0
    %3114 = vmatpush1.bf16.msra.mxu0 0
    %3115 = vmatprep.subr.bf16.mxu0 0
    %3116 = vmatpush1.bf16.msra.mxu0 0
    %3117 = vmatprep.subr.bf16.mxu0 0
    %3118 = vmatpush1.bf16.msra.mxu0 0
    %3119 = vmatprep.subr.bf16.mxu0 0
    %3120 = vmatpush1.bf16.msra.mxu0 0
    %3121 = vmatprep.subr.bf16.mxu0 0
    %3122 = vmatpush1.bf16.msra.mxu0 0
    %3123 = vmatprep.subr.bf16.mxu0 0
    %3124 = vmatpush1.bf16.msra.mxu0 0
    %3125 = vmatprep.subr.bf16.mxu0 0
    %3126 = vmatpush1.bf16.msra.mxu0 0
    %3127 = vmatprep.subr.bf16.mxu0 0
    %3128 = vmatpush1.bf16.msra.mxu0 0
    %3129 = vmatprep.subr.bf16.mxu0 0
    %3130 = vmatpush1.bf16.msra.mxu0 0
    %3131 = vmatprep.subr.bf16.mxu0 0
    %3132 = vmatpush1.bf16.msra.mxu0 0
    %3133 = vmatprep.subr.bf16.mxu0 0
    %3134 = vmatpush1.bf16.msra.mxu0 0
    %3135 = vmatprep.subr.bf16.mxu0 0
    %3136 = vmatpush1.bf16.msra.mxu0 0
    %3137 = vmatprep.subr.bf16.mxu0 0
    %3138 = vmatpush1.bf16.msra.mxu0 0
    %3139 = vmatprep.subr.bf16.mxu0 0
    %3140 = vmatpush1.bf16.msra.mxu0 0
    %3141 = vmatprep.subr.bf16.mxu0 0
    %3142 = vmatpush1.bf16.msra.mxu0 0
    %3143 = vmatprep.mubr.bf16.mxu0 0
    %3144 = vmatmul.mubr.bf16.gmra.mrb[0].mxu0 %v3106
    %v3145 = vpop.f32.mrb[0].mxu0
    %v3146 = vadd.f32 0.0, %v3145
    %v3147 = vpop.f32.mrb[0].mxu0
    %v3148 = vpop.f32.mrb[0].mxu0
    %v3149 = vadd.f32 0.0, %v3148
    %v3150 = vpop.f32.mrb[0].mxu0
    %3151 = vdwg.mxu0
    %3154 = vrot.lane.b32.xlu0 %v2900, 32
    %v3155 = vpop.permute.xlu0 %3154
    %3156 = vrot.lane.b32.xlu0 %v2903, 32
    %v3157 = vpop.permute.xlu0 %3156
    %3162 = vrot.lane.b32.xlu0 %v3023, 64
    %v3163 = vpop.permute.xlu0 %3162
    %3164 = vrot.lane.b32.xlu0 %v3026, 64
    %v3165 = vpop.permute.xlu0 %3164
    %3170 = vrot.lane.b32.xlu0 %v3146, 96
    %v3171 = vpop.permute.xlu0 %3170
    %3172 = vrot.lane.b32.xlu0 %v3149, 96
    %v3173 = vpop.permute.xlu0 %3172
    %v3176 = vsel %vm972, %v2774, %v3155
    %v3177 = vsel %vm972, %v2777, %v3157
    %v3178 = vsel %vm1491, %v3176, %v3163
    %v3179 = vsel %vm1491, %v3177, %v3165
    %v3180 = vsel %vm1494, %v3178, %v3171
    %v3181 = vsel %vm1494, %v3179, %v3173
    %s3182 = scalar_lea.vmem %s10, 64
    %v3183 = vld [vmem:[%s3182] sm:$0xf]
    %v3184 = vld [vmem:[%s3182 + $0x4] sm:$0xf]
    %v3185 = vld [vmem:[%s3182 + $0x8] sm:$0xf]
    %v3186 = vld [vmem:[%s3182 + $0xc] sm:$0xf]
    %v3187 = vld [vmem:[%s3182 + $0x10] sm:$0xf]
    %v3188 = vld [vmem:[%s3182 + $0x14] sm:$0xf]
    %v3189 = vld [vmem:[%s3182 + $0x18] sm:$0xf]
    %v3190 = vld [vmem:[%s3182 + $0x1c] sm:$0xf]
    %v3191 = vld [vmem:[%s3182 + $0x20] sm:$0xf]
    %v3192 = vld [vmem:[%s3182 + $0x24] sm:$0xf]
    %v3193 = vld [vmem:[%s3182 + $0x28] sm:$0xf]
    %v3194 = vld [vmem:[%s3182 + $0x2c] sm:$0xf]
    %v3195 = vld [vmem:[%s3182 + $0x30] sm:$0xf]
    %v3196 = vld [vmem:[%s3182 + $0x34] sm:$0xf]
    %v3197 = vld [vmem:[%s3182 + $0x38] sm:$0xf]
    %v3198 = vld [vmem:[%s3182 + $0x3c] sm:$0xf]
    %v3199 = vpack.c.bf16 %v3181, %v3180
    %v3216 = vunpack.c.l.b16 %v3183
    %v3217 = vunpack.c.l.b16 %v3184
    %v3218 = vunpack.c.l.b16 %v3185
    %v3219 = vunpack.c.l.b16 %v3186
    %v3220 = vunpack.c.l.b16 %v3187
    %v3221 = vunpack.c.l.b16 %v3188
    %v3222 = vunpack.c.l.b16 %v3189
    %v3223 = vunpack.c.l.b16 %v3190
    %v3224 = vunpack.c.l.b16 %v3191
    %v3225 = vunpack.c.l.b16 %v3192
    %v3226 = vunpack.c.l.b16 %v3193
    %v3227 = vunpack.c.l.b16 %v3194
    %v3228 = vunpack.c.l.b16 %v3195
    %v3229 = vunpack.c.l.b16 %v3196
    %v3230 = vunpack.c.l.b16 %v3197
    %v3231 = vunpack.c.l.b16 %v3198
    %v3232 = vpack.c.b16 %v3217, %v3216
    %v3233 = vpack.c.b16 %v3219, %v3218
    %v3234 = vpack.c.b16 %v3221, %v3220
    %v3235 = vpack.c.b16 %v3223, %v3222
    %v3236 = vpack.c.b16 %v3225, %v3224
    %v3237 = vpack.c.b16 %v3227, %v3226
    %v3238 = vpack.c.b16 %v3229, %v3228
    %v3239 = vpack.c.b16 %v3231, %v3230
    %3248 = vmatprep.subr.bf16.mxu0 0
    %3249 = vmatpush1.bf16.msra.mxu0 %v3232
    %3250 = vmatprep.subr.bf16.mxu0 0
    %3251 = vmatpush1.bf16.msra.mxu0 %v3233
    %3252 = vmatprep.subr.bf16.mxu0 0
    %3253 = vmatpush1.bf16.msra.mxu0 %v3234
    %3254 = vmatprep.subr.bf16.mxu0 0
    %3255 = vmatpush1.bf16.msra.mxu0 %v3235
    %3256 = vmatprep.subr.bf16.mxu0 0
    %3257 = vmatpush1.bf16.msra.mxu0 %v3236
    %3258 = vmatprep.subr.bf16.mxu0 0
    %3259 = vmatpush1.bf16.msra.mxu0 %v3237
    %3260 = vmatprep.subr.bf16.mxu0 0
    %3261 = vmatpush1.bf16.msra.mxu0 %v3238
    %3262 = vmatprep.subr.bf16.mxu0 0
    %3263 = vmatpush1.bf16.msra.mxu0 %v3239
    %3264 = vmatprep.subr.bf16.mxu0 0
    %3265 = vmatpush1.bf16.msra.mxu0 0
    %3266 = vmatprep.subr.bf16.mxu0 0
    %3267 = vmatpush1.bf16.msra.mxu0 0
    %3268 = vmatprep.subr.bf16.mxu0 0
    %3269 = vmatpush1.bf16.msra.mxu0 0
    %3270 = vmatprep.subr.bf16.mxu0 0
    %3271 = vmatpush1.bf16.msra.mxu0 0
    %3272 = vmatprep.subr.bf16.mxu0 0
    %3273 = vmatpush1.bf16.msra.mxu0 0
    %3274 = vmatprep.subr.bf16.mxu0 0
    %3275 = vmatpush1.bf16.msra.mxu0 0
    %3276 = vmatprep.subr.bf16.mxu0 0
    %3277 = vmatpush1.bf16.msra.mxu0 0
    %3278 = vmatprep.subr.bf16.mxu0 0
    %3279 = vmatpush1.bf16.msra.mxu0 0
    %3280 = vmatprep.mubr.bf16.mxu0 0
    %3281 = vmatmul.mubr.bf16.gmra.mrb[0].mxu0 %v3199
    %v3282 = vpop.f32.mrb[0].mxu0
    %v3283 = vadd.f32 0.0, %v3282
    %v3284 = vpop.f32.mrb[0].mxu0
    %v3285 = vpop.f32.mrb[0].mxu0
    %v3286 = vadd.f32 0.0, %v3285
    %v3287 = vpop.f32.mrb[0].mxu0
    %3288 = vdwg.mxu0
    %v3289 = vadd.f32 %v2348, %v3283
    %v3290 = vadd.f32 %v2349, %v3286
    %s3291 = scalar_lea.vmem %s11, 1
    %v3292 = vld [vmem:[%s3291] sm:$0x1]
    %v3294 = vlaneseq
    %v3295 = vshrl.u32 %v3294, 7
    %v3296 = vsub.s32 0, %v3295
    %v3297 = vrot.slane %v3292, %v3296
    %v3299 = vadd.f32 %v3289, %v3297
    %v3300 = vadd.f32 %v3290, %v3297
    %s3301 = scalar_lea.vmem %s12, 1
    %v3302 = vld [vmem:[%s3301] sm:$0x1]
    %s3303 = scalar_lea.vmem %s13, 1
    %v3304 = vld [vmem:[%s3303] sm:$0x1]
    %3305 = vadd.xlane.f32.xlu0 %v3299
    %v3306 = vpop.xlane.xlu0 %3305
    %v3307 = vsel %vm665, %v3300, 0.0
    %3308 = vadd.xlane.f32.xlu0 %v3307
    %v3309 = vpop.xlane.xlu0 %3308
    %v3310 = vmul.f32 %v3306, %v669
    %v3311 = vmul.f32 %v3309, %v669
    %v3312 = vsub.f32 %v3299, %v3310
    %v3313 = vsub.f32 %v3300, %v3311
    %v3314 = vmul.f32 %v3312, %v3312
    %v3315 = vmul.f32 %v3313, %v3313
    %3316 = vadd.xlane.f32.xlu0 %v3314
    %v3317 = vpop.xlane.xlu0 %3316
    %v3318 = vsel %vm665, %v3315, 0.0
    %3319 = vadd.xlane.f32.xlu0 %v3318
    %v3320 = vpop.xlane.xlu0 %3319
    %v3321 = vmul.f32 %v3317, %v669
    %v3322 = vmul.f32 %v3320, %v669
    %v3323 = vadd.f32 %v3321, 1e-06
    %v3324 = vadd.f32 %v3322, 1e-06
    %v3325 = vrsqrt.pop %v3323
    %v3326 = vrsqrt.pop %v3324
    %v3327 = vmul.f32 %v3312, %v3325
    %v3328 = vmul.f32 %v3313, %v3326
    %v3330 = vlaneseq
    %v3331 = vshrl.u32 %v3330, 7
    %v3332 = vsub.s32 0, %v3331
    %v3333 = vrot.slane %v3302, %v3332
    %v3335 = vmul.f32 %v3327, %v3333
    %v3336 = vmul.f32 %v3328, %v3333
    %v3338 = vlaneseq
    %v3339 = vshrl.u32 %v3338, 7
    %v3340 = vsub.s32 0, %v3339
    %v3341 = vrot.slane %v3304, %v3340
    %v3343 = vadd.f32 %v3335, %v3341
    %v3344 = vadd.f32 %v3336, %v3341
    %s3345 = scalar_lea.vmem %s14, 256
    %v3346 = vld [vmem:[%s3345] sm:$0xff]
    %v3347 = vld [vmem:[%s3345 + $0x8] sm:$0xff]
    %v3348 = vld [vmem:[%s3345 + $0x10] sm:$0xff]
    %v3349 = vld [vmem:[%s3345 + $0x18] sm:$0xff]
    %v3350 = vld [vmem:[%s3345 + $0x20] sm:$0xff]
    %v3351 = vld [vmem:[%s3345 + $0x28] sm:$0xff]
    %v3352 = vld [vmem:[%s3345 + $0x30] sm:$0xff]
    %v3353 = vld [vmem:[%s3345 + $0x38] sm:$0xff]
    %v3354 = vld [vmem:[%s3345 + $0x40] sm:$0xff]
    %v3355 = vld [vmem:[%s3345 + $0x48] sm:$0xff]
    %v3356 = vld [vmem:[%s3345 + $0x50] sm:$0xff]
    %v3357 = vld [vmem:[%s3345 + $0x58] sm:$0xff]
    %v3358 = vld [vmem:[%s3345 + $0x60] sm:$0xff]
    %v3359 = vld [vmem:[%s3345 + $0x68] sm:$0xff]
    %v3360 = vld [vmem:[%s3345 + $0x70] sm:$0xff]
    %v3361 = vld [vmem:[%s3345 + $0x78] sm:$0xff]
    %v3362 = vld [vmem:[%s3345 + $0x80] sm:$0xff]
    %v3363 = vld [vmem:[%s3345 + $0x88] sm:$0xff]
    %v3364 = vld [vmem:[%s3345 + $0x90] sm:$0xff]
    %v3365 = vld [vmem:[%s3345 + $0x98] sm:$0xff]
    %v3366 = vld [vmem:[%s3345 + $0xa0] sm:$0xff]
    %v3367 = vld [vmem:[%s3345 + $0xa8] sm:$0xff]
    %v3368 = vld [vmem:[%s3345 + $0xb0] sm:$0xff]
    %v3369 = vld [vmem:[%s3345 + $0xb8] sm:$0xff]
    %v3370 = vld [vmem:[%s3345 + $0xc0] sm:$0xff]
    %v3371 = vld [vmem:[%s3345 + $0xc8] sm:$0xff]
    %v3372 = vld [vmem:[%s3345 + $0xd0] sm:$0xff]
    %v3373 = vld [vmem:[%s3345 + $0xd8] sm:$0xff]
    %v3374 = vld [vmem:[%s3345 + $0xe0] sm:$0xff]
    %v3375 = vld [vmem:[%s3345 + $0xe8] sm:$0xff]
    %v3376 = vld [vmem:[%s3345 + $0xf0] sm:$0xff]
    %v3377 = vld [vmem:[%s3345 + $0xf8] sm:$0xff]
    %v3378 = vpack.c.bf16 %v3344, %v3343
    %s3379 = scalar_lea.vmem %s15, 4
    %v3380 = vld [vmem:[%s3379] sm:$0xf]
    %v3382 = vlaneseq
    %v3383 = vshrl.u32 %v3382, 7
    %v3384 = vsub.s32 0, %v3383
    %v3385 = vrot.slane %v3380, %v3384
    %v3386 = vlaneseq
    %v3387 = vshrl.u32 %v3386, 7
    %v3388 = vsub.s32 1, %v3387
    %v3389 = vrot.slane %v3380, %v3388
    %v3390 = vlaneseq
    %v3391 = vshrl.u32 %v3390, 7
    %v3392 = vsub.s32 2, %v3391
    %v3393 = vrot.slane %v3380, %v3392
    %v3394 = vlaneseq
    %v3395 = vshrl.u32 %v3394, 7
    %v3396 = vsub.s32 3, %v3395
    %v3397 = vrot.slane %v3380, %v3396
    %v3434 = vunpack.c.l.b16 %v3346
    %v3435 = vunpack.c.h.b16 %v3346
    %v3436 = vunpack.c.l.b16 %v3347
    %v3437 = vunpack.c.h.b16 %v3347
    %v3438 = vunpack.c.l.b16 %v3348
    %v3439 = vunpack.c.h.b16 %v3348
    %v3440 = vunpack.c.l.b16 %v3349
    %v3441 = vunpack.c.h.b16 %v3349
    %v3442 = vunpack.c.l.b16 %v3350
    %v3443 = vunpack.c.h.b16 %v3350
    %v3444 = vunpack.c.l.b16 %v3351
    %v3445 = vunpack.c.h.b16 %v3351
    %v3446 = vunpack.c.l.b16 %v3352
    %v3447 = vunpack.c.h.b16 %v3352
    %v3448 = vunpack.c.l.b16 %v3353
    %v3449 = vunpack.c.h.b16 %v3353
    %v3450 = vunpack.c.l.b16 %v3354
    %v3451 = vunpack.c.h.b16 %v3354
    %v3452 = vunpack.c.l.b16 %v3355
    %v3453 = vunpack.c.h.b16 %v3355
    %v3454 = vunpack.c.l.b16 %v3356
    %v3455 = vunpack.c.h.b16 %v3356
    %v3456 = vunpack.c.l.b16 %v3357
    %v3457 = vunpack.c.h.b16 %v3357
    %v3458 = vunpack.c.l.b16 %v3358
    %v3459 = vunpack.c.h.b16 %v3358
    %v3460 = vunpack.c.l.b16 %v3359
    %v3461 = vunpack.c.h.b16 %v3359
    %v3462 = vunpack.c.l.b16 %v3360
    %v3463 = vunpack.c.h.b16 %v3360
    %v3464 = vunpack.c.l.b16 %v3361
    %v3465 = vunpack.c.h.b16 %v3361
    %v3466 = vunpack.c.l.b16 %v3362
    %v3467 = vunpack.c.h.b16 %v3362
    %v3468 = vunpack.c.l.b16 %v3363
    %v3469 = vunpack.c.h.b16 %v3363
    %v3470 = vunpack.c.l.b16 %v3364
    %v3471 = vunpack.c.h.b16 %v3364
    %v3472 = vunpack.c.l.b16 %v3365
    %v3473 = vunpack.c.h.b16 %v3365
    %v3474 = vunpack.c.l.b16 %v3366
    %v3475 = vunpack.c.h.b16 %v3366
    %v3476 = vunpack.c.l.b16 %v3367
    %v3477 = vunpack.c.h.b16 %v3367
    %v3478 = vunpack.c.l.b16 %v3368
    %v3479 = vunpack.c.h.b16 %v3368
    %v3480 = vunpack.c.l.b16 %v3369
    %v3481 = vunpack.c.h.b16 %v3369
    %v3482 = vunpack.c.l.b16 %v3370
    %v3483 = vunpack.c.h.b16 %v3370
    %v3484 = vunpack.c.l.b16 %v3371
    %v3485 = vunpack.c.h.b16 %v3371
    %v3486 = vunpack.c.l.b16 %v3372
    %v3487 = vunpack.c.h.b16 %v3372
    %v3488 = vunpack.c.l.b16 %v3373
    %v3489 = vunpack.c.h.b16 %v3373
    %v3490 = vunpack.c.l.b16 %v3374
    %v3491 = vunpack.c.h.b16 %v3374
    %v3492 = vunpack.c.l.b16 %v3375
    %v3493 = vunpack.c.h.b16 %v3375
    %v3494 = vunpack.c.l.b16 %v3376
    %v3495 = vunpack.c.h.b16 %v3376
    %v3496 = vunpack.c.l.b16 %v3377
    %v3497 = vunpack.c.h.b16 %v3377
    %v3498 = vpack.c.b16 %v3438, %v3434
    %v3499 = vpack.c.b16 %v3439, %v3435
    %v3500 = vpack.c.b16 %v3440, %v3436
    %v3501 = vpack.c.b16 %v3441, %v3437
    %v3502 = vpack.c.b16 %v3446, %v3442
    %v3503 = vpack.c.b16 %v3447, %v3443
    %v3504 = vpack.c.b16 %v3448, %v3444
    %v3505 = vpack.c.b16 %v3449, %v3445
    %v3506 = vpack.c.b16 %v3454, %v3450
    %v3507 = vpack.c.b16 %v3455, %v3451
    %v3508 = vpack.c.b16 %v3456, %v3452
    %v3509 = vpack.c.b16 %v3457, %v3453
    %v3510 = vpack.c.b16 %v3462, %v3458
    %v3511 = vpack.c.b16 %v3463, %v3459
    %v3512 = vpack.c.b16 %v3464, %v3460
    %v3513 = vpack.c.b16 %v3465, %v3461
    %v3514 = vpack.c.b16 %v3470, %v3466
    %v3515 = vpack.c.b16 %v3471, %v3467
    %v3516 = vpack.c.b16 %v3472, %v3468
    %v3517 = vpack.c.b16 %v3473, %v3469
    %v3518 = vpack.c.b16 %v3478, %v3474
    %v3519 = vpack.c.b16 %v3479, %v3475
    %v3520 = vpack.c.b16 %v3480, %v3476
    %v3521 = vpack.c.b16 %v3481, %v3477
    %v3522 = vpack.c.b16 %v3486, %v3482
    %v3523 = vpack.c.b16 %v3487, %v3483
    %v3524 = vpack.c.b16 %v3488, %v3484
    %v3525 = vpack.c.b16 %v3489, %v3485
    %v3526 = vpack.c.b16 %v3494, %v3490
    %v3527 = vpack.c.b16 %v3495, %v3491
    %v3528 = vpack.c.b16 %v3496, %v3492
    %v3529 = vpack.c.b16 %v3497, %v3493
    %3562 = vmatprep.subr.bf16.mxu0 %v3499
    %3563 = vmatpush1.bf16.msra.mxu0 %v3498
    %3564 = vmatprep.subr.bf16.mxu0 %v3503
    %3565 = vmatpush1.bf16.msra.mxu0 %v3502
    %3566 = vmatprep.subr.bf16.mxu0 %v3507
    %3567 = vmatpush1.bf16.msra.mxu0 %v3506
    %3568 = vmatprep.subr.bf16.mxu0 %v3511
    %3569 = vmatpush1.bf16.msra.mxu0 %v3510
    %3570 = vmatprep.subr.bf16.mxu0 %v3515
    %3571 = vmatpush1.bf16.msra.mxu0 %v3514
    %3572 = vmatprep.subr.bf16.mxu0 %v3519
    %3573 = vmatpush1.bf16.msra.mxu0 %v3518
    %3574 = vmatprep.subr.bf16.mxu0 %v3523
    %3575 = vmatpush1.bf16.msra.mxu0 %v3522
    %3576 = vmatprep.subr.bf16.mxu0 %v3527
    %3577 = vmatpush1.bf16.msra.mxu0 %v3526
    %3578 = vmatprep.subr.bf16.mxu0 0
    %3579 = vmatpush1.bf16.msra.mxu0 0
    %3580 = vmatprep.subr.bf16.mxu0 0
    %3581 = vmatpush1.bf16.msra.mxu0 0
    %3582 = vmatprep.subr.bf16.mxu0 0
    %3583 = vmatpush1.bf16.msra.mxu0 0
    %3584 = vmatprep.subr.bf16.mxu0 0
    %3585 = vmatpush1.bf16.msra.mxu0 0
    %3586 = vmatprep.subr.bf16.mxu0 0
    %3587 = vmatpush1.bf16.msra.mxu0 0
    %3588 = vmatprep.subr.bf16.mxu0 0
    %3589 = vmatpush1.bf16.msra.mxu0 0
    %3590 = vmatprep.subr.bf16.mxu0 0
    %3591 = vmatpush1.bf16.msra.mxu0 0
    %3592 = vmatprep.subr.bf16.mxu0 0
    %3593 = vmatpush1.bf16.msra.mxu0 0
    %3594 = vmatprep.mubr.bf16.mxu0 0
    %3595 = vmatmul.mubr.bf16.gmra.mrb[0].mxu0 %v3378
    %v3596 = vpop.f32.mrb[0].mxu0
    %v3597 = vadd.f32 %v3385, %v3596
    %v3598 = vpop.f32.mrb[0].mxu0
    %v3599 = vadd.f32 %v3389, %v3598
    %v3600 = vpop.f32.mrb[0].mxu0
    %v3601 = vadd.f32 %v3385, %v3600
    %v3602 = vpop.f32.mrb[0].mxu0
    %v3603 = vadd.f32 %v3389, %v3602
    %3604 = vdwg.mxu0
    %3605 = vmatprep.subr.bf16.mxu0 %v3501
    %3606 = vmatpush1.bf16.msra.mxu0 %v3500
    %3607 = vmatprep.subr.bf16.mxu0 %v3505
    %3608 = vmatpush1.bf16.msra.mxu0 %v3504
    %3609 = vmatprep.subr.bf16.mxu0 %v3509
    %3610 = vmatpush1.bf16.msra.mxu0 %v3508
    %3611 = vmatprep.subr.bf16.mxu0 %v3513
    %3612 = vmatpush1.bf16.msra.mxu0 %v3512
    %3613 = vmatprep.subr.bf16.mxu0 %v3517
    %3614 = vmatpush1.bf16.msra.mxu0 %v3516
    %3615 = vmatprep.subr.bf16.mxu0 %v3521
    %3616 = vmatpush1.bf16.msra.mxu0 %v3520
    %3617 = vmatprep.subr.bf16.mxu0 %v3525
    %3618 = vmatpush1.bf16.msra.mxu0 %v3524
    %3619 = vmatprep.subr.bf16.mxu0 %v3529
    %3620 = vmatpush1.bf16.msra.mxu0 %v3528
    %3621 = vmatprep.subr.bf16.mxu0 0
    %3622 = vmatpush1.bf16.msra.mxu0 0
    %3623 = vmatprep.subr.bf16.mxu0 0
    %3624 = vmatpush1.bf16.msra.mxu0 0
    %3625 = vmatprep.subr.bf16.mxu0 0
    %3626 = vmatpush1.bf16.msra.mxu0 0
    %3627 = vmatprep.subr.bf16.mxu0 0
    %3628 = vmatpush1.bf16.msra.mxu0 0
    %3629 = vmatprep.subr.bf16.mxu0 0
    %3630 = vmatpush1.bf16.msra.mxu0 0
    %3631 = vmatprep.subr.bf16.mxu0 0
    %3632 = vmatpush1.bf16.msra.mxu0 0
    %3633 = vmatprep.subr.bf16.mxu0 0
    %3634 = vmatpush1.bf16.msra.mxu0 0
    %3635 = vmatprep.subr.bf16.mxu0 0
    %3636 = vmatpush1.bf16.msra.mxu0 0
    %3637 = vmatprep.mubr.bf16.mxu0 0
    %3638 = vmatmul.mubr.bf16.gmra.mrb[0].mxu0 %v3378
    %v3639 = vpop.f32.mrb[0].mxu0
    %v3640 = vadd.f32 %v3393, %v3639
    %v3641 = vpop.f32.mrb[0].mxu0
    %v3642 = vadd.f32 %v3397, %v3641
    %v3643 = vpop.f32.mrb[0].mxu0
    %v3644 = vadd.f32 %v3393, %v3643
    %v3645 = vpop.f32.mrb[0].mxu0
    %v3646 = vadd.f32 %v3397, %v3645
    %3647 = vdwg.mxu0
    %v3648 = vmul.f32 %v3597, 0.5
    %v3649 = vmul.f32 %v3599, 0.5
    %v3650 = vmul.f32 %v3640, 0.5
    %v3651 = vmul.f32 %v3642, 0.5
    %v3652 = vmul.f32 %v3601, 0.5
    %v3653 = vmul.f32 %v3603, 0.5
    %v3654 = vmul.f32 %v3644, 0.5
    %v3655 = vmul.f32 %v3646, 0.5
    %v3656 = vmul.f32 %v3597, 0.70710677
    %v3657 = vmul.f32 %v3599, 0.70710677
    %v3658 = vmul.f32 %v3640, 0.70710677
    %v3659 = vmul.f32 %v3642, 0.70710677
    %v3660 = vmul.f32 %v3601, 0.70710677
    %v3661 = vmul.f32 %v3603, 0.70710677
    %v3662 = vmul.f32 %v3644, 0.70710677
    %v3663 = vmul.f32 %v3646, 0.70710677
    %v3664 = verf.f32.pop %v3656
    %v3665 = verf.f32.pop %v3657
    %v3666 = verf.f32.pop %v3658
    %v3667 = verf.f32.pop %v3659
    %v3668 = verf.f32.pop %v3660
    %v3669 = verf.f32.pop %v3661
    %v3670 = verf.f32.pop %v3662
    %v3671 = verf.f32.pop %v3663
    %v3672 = vadd.f32 %v3664, 1.0
    %v3673 = vadd.f32 %v3665, 1.0
    %v3674 = vadd.f32 %v3666, 1.0
    %v3675 = vadd.f32 %v3667, 1.0
    %v3676 = vadd.f32 %v3668, 1.0
    %v3677 = vadd.f32 %v3669, 1.0
    %v3678 = vadd.f32 %v3670, 1.0
    %v3679 = vadd.f32 %v3671, 1.0
    %v3680 = vmul.f32 %v3648, %v3672
    %v3681 = vmul.f32 %v3649, %v3673
    %v3682 = vmul.f32 %v3650, %v3674
    %v3683 = vmul.f32 %v3651, %v3675
    %v3684 = vmul.f32 %v3652, %v3676
    %v3685 = vmul.f32 %v3653, %v3677
    %v3686 = vmul.f32 %v3654, %v3678
    %v3687 = vmul.f32 %v3655, %v3679
    %s3688 = scalar_lea.vmem %s16, 256
    %v3689 = vld [vmem:[%s3688] sm:$0xf]
    %v3690 = vld [vmem:[%s3688 + $0x4] sm:$0xf]
    %v3691 = vld [vmem:[%s3688 + $0x8] sm:$0xf]
    %v3692 = vld [vmem:[%s3688 + $0xc] sm:$0xf]
    %v3693 = vld [vmem:[%s3688 + $0x10] sm:$0xf]
    %v3694 = vld [vmem:[%s3688 + $0x14] sm:$0xf]
    %v3695 = vld [vmem:[%s3688 + $0x18] sm:$0xf]
    %v3696 = vld [vmem:[%s3688 + $0x1c] sm:$0xf]
    %v3697 = vld [vmem:[%s3688 + $0x20] sm:$0xf]
    %v3698 = vld [vmem:[%s3688 + $0x24] sm:$0xf]
    %v3699 = vld [vmem:[%s3688 + $0x28] sm:$0xf]
    %v3700 = vld [vmem:[%s3688 + $0x2c] sm:$0xf]
    %v3701 = vld [vmem:[%s3688 + $0x30] sm:$0xf]
    %v3702 = vld [vmem:[%s3688 + $0x34] sm:$0xf]
    %v3703 = vld [vmem:[%s3688 + $0x38] sm:$0xf]
    %v3704 = vld [vmem:[%s3688 + $0x3c] sm:$0xf]
    %v3705 = vld [vmem:[%s3688 + $0x40] sm:$0xf]
    %v3706 = vld [vmem:[%s3688 + $0x44] sm:$0xf]
    %v3707 = vld [vmem:[%s3688 + $0x48] sm:$0xf]
    %v3708 = vld [vmem:[%s3688 + $0x4c] sm:$0xf]
    %v3709 = vld [vmem:[%s3688 + $0x50] sm:$0xf]
    %v3710 = vld [vmem:[%s3688 + $0x54] sm:$0xf]
    %v3711 = vld [vmem:[%s3688 + $0x58] sm:$0xf]
    %v3712 = vld [vmem:[%s3688 + $0x5c] sm:$0xf]
    %v3713 = vld [vmem:[%s3688 + $0x60] sm:$0xf]
    %v3714 = vld [vmem:[%s3688 + $0x64] sm:$0xf]
    %v3715 = vld [vmem:[%s3688 + $0x68] sm:$0xf]
    %v3716 = vld [vmem:[%s3688 + $0x6c] sm:$0xf]
    %v3717 = vld [vmem:[%s3688 + $0x70] sm:$0xf]
    %v3718 = vld [vmem:[%s3688 + $0x74] sm:$0xf]
    %v3719 = vld [vmem:[%s3688 + $0x78] sm:$0xf]
    %v3720 = vld [vmem:[%s3688 + $0x7c] sm:$0xf]
    %v3721 = vld [vmem:[%s3688 + $0x80] sm:$0xf]
    %v3722 = vld [vmem:[%s3688 + $0x84] sm:$0xf]
    %v3723 = vld [vmem:[%s3688 + $0x88] sm:$0xf]
    %v3724 = vld [vmem:[%s3688 + $0x8c] sm:$0xf]
    %v3725 = vld [vmem:[%s3688 + $0x90] sm:$0xf]
    %v3726 = vld [vmem:[%s3688 + $0x94] sm:$0xf]
    %v3727 = vld [vmem:[%s3688 + $0x98] sm:$0xf]
    %v3728 = vld [vmem:[%s3688 + $0x9c] sm:$0xf]
    %v3729 = vld [vmem:[%s3688 + $0xa0] sm:$0xf]
    %v3730 = vld [vmem:[%s3688 + $0xa4] sm:$0xf]
    %v3731 = vld [vmem:[%s3688 + $0xa8] sm:$0xf]
    %v3732 = vld [vmem:[%s3688 + $0xac] sm:$0xf]
    %v3733 = vld [vmem:[%s3688 + $0xb0] sm:$0xf]
    %v3734 = vld [vmem:[%s3688 + $0xb4] sm:$0xf]
    %v3735 = vld [vmem:[%s3688 + $0xb8] sm:$0xf]
    %v3736 = vld [vmem:[%s3688 + $0xbc] sm:$0xf]
    %v3737 = vld [vmem:[%s3688 + $0xc0] sm:$0xf]
    %v3738 = vld [vmem:[%s3688 + $0xc4] sm:$0xf]
    %v3739 = vld [vmem:[%s3688 + $0xc8] sm:$0xf]
    %v3740 = vld [vmem:[%s3688 + $0xcc] sm:$0xf]
    %v3741 = vld [vmem:[%s3688 + $0xd0] sm:$0xf]
    %v3742 = vld [vmem:[%s3688 + $0xd4] sm:$0xf]
    %v3743 = vld [vmem:[%s3688 + $0xd8] sm:$0xf]
    %v3744 = vld [vmem:[%s3688 + $0xdc] sm:$0xf]
    %v3745 = vld [vmem:[%s3688 + $0xe0] sm:$0xf]
    %v3746 = vld [vmem:[%s3688 + $0xe4] sm:$0xf]
    %v3747 = vld [vmem:[%s3688 + $0xe8] sm:$0xf]
    %v3748 = vld [vmem:[%s3688 + $0xec] sm:$0xf]
    %v3749 = vld [vmem:[%s3688 + $0xf0] sm:$0xf]
    %v3750 = vld [vmem:[%s3688 + $0xf4] sm:$0xf]
    %v3751 = vld [vmem:[%s3688 + $0xf8] sm:$0xf]
    %v3752 = vld [vmem:[%s3688 + $0xfc] sm:$0xf]
    %v3753 = vpack.c.bf16 %v3684, %v3680
    %v3754 = vpack.c.bf16 %v3685, %v3681
    %v3755 = vpack.c.bf16 %v3686, %v3682
    %v3756 = vpack.c.bf16 %v3687, %v3683
    %v3821 = vunpack.c.l.b16 %v3689
    %v3822 = vunpack.c.l.b16 %v3690
    %v3823 = vunpack.c.l.b16 %v3691
    %v3824 = vunpack.c.l.b16 %v3692
    %v3825 = vunpack.c.l.b16 %v3693
    %v3826 = vunpack.c.l.b16 %v3694
    %v3827 = vunpack.c.l.b16 %v3695
    %v3828 = vunpack.c.l.b16 %v3696
    %v3829 = vunpack.c.l.b16 %v3697
    %v3830 = vunpack.c.l.b16 %v3698
    %v3831 = vunpack.c.l.b16 %v3699
    %v3832 = vunpack.c.l.b16 %v3700
    %v3833 = vunpack.c.l.b16 %v3701
    %v3834 = vunpack.c.l.b16 %v3702
    %v3835 = vunpack.c.l.b16 %v3703
    %v3836 = vunpack.c.l.b16 %v3704
    %v3837 = vunpack.c.l.b16 %v3705
    %v3838 = vunpack.c.l.b16 %v3706
    %v3839 = vunpack.c.l.b16 %v3707
    %v3840 = vunpack.c.l.b16 %v3708
    %v3841 = vunpack.c.l.b16 %v3709
    %v3842 = vunpack.c.l.b16 %v3710
    %v3843 = vunpack.c.l.b16 %v3711
    %v3844 = vunpack.c.l.b16 %v3712
    %v3845 = vunpack.c.l.b16 %v3713
    %v3846 = vunpack.c.l.b16 %v3714
    %v3847 = vunpack.c.l.b16 %v3715
    %v3848 = vunpack.c.l.b16 %v3716
    %v3849 = vunpack.c.l.b16 %v3717
    %v3850 = vunpack.c.l.b16 %v3718
    %v3851 = vunpack.c.l.b16 %v3719
    %v3852 = vunpack.c.l.b16 %v3720
    %v3853 = vunpack.c.l.b16 %v3721
    %v3854 = vunpack.c.l.b16 %v3722
    %v3855 = vunpack.c.l.b16 %v3723
    %v3856 = vunpack.c.l.b16 %v3724
    %v3857 = vunpack.c.l.b16 %v3725
    %v3858 = vunpack.c.l.b16 %v3726
    %v3859 = vunpack.c.l.b16 %v3727
    %v3860 = vunpack.c.l.b16 %v3728
    %v3861 = vunpack.c.l.b16 %v3729
    %v3862 = vunpack.c.l.b16 %v3730
    %v3863 = vunpack.c.l.b16 %v3731
    %v3864 = vunpack.c.l.b16 %v3732
    %v3865 = vunpack.c.l.b16 %v3733
    %v3866 = vunpack.c.l.b16 %v3734
    %v3867 = vunpack.c.l.b16 %v3735
    %v3868 = vunpack.c.l.b16 %v3736
    %v3869 = vunpack.c.l.b16 %v3737
    %v3870 = vunpack.c.l.b16 %v3738
    %v3871 = vunpack.c.l.b16 %v3739
    %v3872 = vunpack.c.l.b16 %v3740
    %v3873 = vunpack.c.l.b16 %v3741
    %v3874 = vunpack.c.l.b16 %v3742
    %v3875 = vunpack.c.l.b16 %v3743
    %v3876 = vunpack.c.l.b16 %v3744
    %v3877 = vunpack.c.l.b16 %v3745
    %v3878 = vunpack.c.l.b16 %v3746
    %v3879 = vunpack.c.l.b16 %v3747
    %v3880 = vunpack.c.l.b16 %v3748
    %v3881 = vunpack.c.l.b16 %v3749
    %v3882 = vunpack.c.l.b16 %v3750
    %v3883 = vunpack.c.l.b16 %v3751
    %v3884 = vunpack.c.l.b16 %v3752
    %v3885 = vpack.c.b16 %v3822, %v3821
    %v3886 = vpack.c.b16 %v3824, %v3823
    %v3887 = vpack.c.b16 %v3826, %v3825
    %v3888 = vpack.c.b16 %v3828, %v3827
    %v3889 = vpack.c.b16 %v3830, %v3829
    %v3890 = vpack.c.b16 %v3832, %v3831
    %v3891 = vpack.c.b16 %v3834, %v3833
    %v3892 = vpack.c.b16 %v3836, %v3835
    %v3893 = vpack.c.b16 %v3838, %v3837
    %v3894 = vpack.c.b16 %v3840, %v3839
    %v3895 = vpack.c.b16 %v3842, %v3841
    %v3896 = vpack.c.b16 %v3844, %v3843
    %v3897 = vpack.c.b16 %v3846, %v3845
    %v3898 = vpack.c.b16 %v3848, %v3847
    %v3899 = vpack.c.b16 %v3850, %v3849
    %v3900 = vpack.c.b16 %v3852, %v3851
    %v3901 = vpack.c.b16 %v3854, %v3853
    %v3902 = vpack.c.b16 %v3856, %v3855
    %v3903 = vpack.c.b16 %v3858, %v3857
    %v3904 = vpack.c.b16 %v3860, %v3859
    %v3905 = vpack.c.b16 %v3862, %v3861
    %v3906 = vpack.c.b16 %v3864, %v3863
    %v3907 = vpack.c.b16 %v3866, %v3865
    %v3908 = vpack.c.b16 %v3868, %v3867
    %v3909 = vpack.c.b16 %v3870, %v3869
    %v3910 = vpack.c.b16 %v3872, %v3871
    %v3911 = vpack.c.b16 %v3874, %v3873
    %v3912 = vpack.c.b16 %v3876, %v3875
    %v3913 = vpack.c.b16 %v3878, %v3877
    %v3914 = vpack.c.b16 %v3880, %v3879
    %v3915 = vpack.c.b16 %v3882, %v3881
    %v3916 = vpack.c.b16 %v3884, %v3883
    %3949 = vmatprep.subr.bf16.mxu0 0
    %3950 = vmatpush1.bf16.msra.mxu0 %v3885
    %3951 = vmatprep.subr.bf16.mxu0 0
    %3952 = vmatpush1.bf16.msra.mxu0 %v3886
    %3953 = vmatprep.subr.bf16.mxu0 0
    %3954 = vmatpush1.bf16.msra.mxu0 %v3887
    %3955 = vmatprep.subr.bf16.mxu0 0
    %3956 = vmatpush1.bf16.msra.mxu0 %v3888
    %3957 = vmatprep.subr.bf16.mxu0 0
    %3958 = vmatpush1.bf16.msra.mxu0 %v3889
    %3959 = vmatprep.subr.bf16.mxu0 0
    %3960 = vmatpush1.bf16.msra.mxu0 %v3890
    %3961 = vmatprep.subr.bf16.mxu0 0
    %3962 = vmatpush1.bf16.msra.mxu0 %v3891
    %3963 = vmatprep.subr.bf16.mxu0 0
    %3964 = vmatpush1.bf16.msra.mxu0 %v3892
    %3965 = vmatprep.subr.bf16.mxu0 0
    %3966 = vmatpush1.bf16.msra.mxu0 %v3893
    %3967 = vmatprep.subr.bf16.mxu0 0
    %3968 = vmatpush1.bf16.msra.mxu0 %v3894
    %3969 = vmatprep.subr.bf16.mxu0 0
    %3970 = vmatpush1.bf16.msra.mxu0 %v3895
    %3971 = vmatprep.subr.bf16.mxu0 0
    %3972 = vmatpush1.bf16.msra.mxu0 %v3896
    %3973 = vmatprep.subr.bf16.mxu0 0
    %3974 = vmatpush1.bf16.msra.mxu0 %v3897
    %3975 = vmatprep.subr.bf16.mxu0 0
    %3976 = vmatpush1.bf16.msra.mxu0 %v3898
    %3977 = vmatprep.subr.bf16.mxu0 0
    %3978 = vmatpush1.bf16.msra.mxu0 %v3899
    %3979 = vmatprep.subr.bf16.mxu0 0
    %3980 = vmatpush1.bf16.msra.mxu0 %v3900
    %3981 = vmatprep.mubr.bf16.mxu0 %v3754
    %3982 = vmatmul.mubr.bf16.gmra.mrb[0].mxu0 %v3753
    %v3983 = vpop.f32.mrb[0].mxu0
    %v3984 = vadd.f32 0.0, %v3983
    %v3985 = vpop.f32.mrb[0].mxu0
    %v3986 = vpop.f32.mrb[0].mxu0
    %v3987 = vadd.f32 0.0, %v3986
    %v3988 = vpop.f32.mrb[0].mxu0
    %3989 = vdwg.mxu0
    %3990 = vmatprep.subr.bf16.mxu0 0
    %3991 = vmatpush1.bf16.msra.mxu0 %v3901
    %3992 = vmatprep.subr.bf16.mxu0 0
    %3993 = vmatpush1.bf16.msra.mxu0 %v3902
    %3994 = vmatprep.subr.bf16.mxu0 0
    %3995 = vmatpush1.bf16.msra.mxu0 %v3903
    %3996 = vmatprep.subr.bf16.mxu0 0
    %3997 = vmatpush1.bf16.msra.mxu0 %v3904
    %3998 = vmatprep.subr.bf16.mxu0 0
    %3999 = vmatpush1.bf16.msra.mxu0 %v3905
    %4000 = vmatprep.subr.bf16.mxu0 0
    %4001 = vmatpush1.bf16.msra.mxu0 %v3906
    %4002 = vmatprep.subr.bf16.mxu0 0
    %4003 = vmatpush1.bf16.msra.mxu0 %v3907
    %4004 = vmatprep.subr.bf16.mxu0 0
    %4005 = vmatpush1.bf16.msra.mxu0 %v3908
    %4006 = vmatprep.subr.bf16.mxu0 0
    %4007 = vmatpush1.bf16.msra.mxu0 %v3909
    %4008 = vmatprep.subr.bf16.mxu0 0
    %4009 = vmatpush1.bf16.msra.mxu0 %v3910
    %4010 = vmatprep.subr.bf16.mxu0 0
    %4011 = vmatpush1.bf16.msra.mxu0 %v3911
    %4012 = vmatprep.subr.bf16.mxu0 0
    %4013 = vmatpush1.bf16.msra.mxu0 %v3912
    %4014 = vmatprep.subr.bf16.mxu0 0
    %4015 = vmatpush1.bf16.msra.mxu0 %v3913
    %4016 = vmatprep.subr.bf16.mxu0 0
    %4017 = vmatpush1.bf16.msra.mxu0 %v3914
    %4018 = vmatprep.subr.bf16.mxu0 0
    %4019 = vmatpush1.bf16.msra.mxu0 %v3915
    %4020 = vmatprep.subr.bf16.mxu0 0
    %4021 = vmatpush1.bf16.msra.mxu0 %v3916
    %4022 = vmatprep.mubr.bf16.mxu0 %v3756
    %4023 = vmatmul.mubr.bf16.gmra.mrb[0].mxu0 %v3755
    %v4024 = vpop.f32.mrb[0].mxu0
    %v4025 = vadd.f32 %v3984, %v4024
    %v4026 = vpop.f32.mrb[0].mxu0
    %v4027 = vpop.f32.mrb[0].mxu0
    %v4028 = vadd.f32 %v3987, %v4027
    %v4029 = vpop.f32.mrb[0].mxu0
    %4030 = vdwg.mxu0
    %v4031 = vadd.f32 %v3299, %v4025
    %v4032 = vadd.f32 %v3300, %v4028
    %s4033 = scalar_lea.vmem %s17, 1
    %v4034 = vld [vmem:[%s4033] sm:$0x1]
    %v4036 = vlaneseq
    %v4037 = vshrl.u32 %v4036, 7
    %v4038 = vsub.s32 0, %v4037
    %v4039 = vrot.slane %v4034, %v4038
    %v4041 = vadd.f32 %v4031, %v4039
    %v4042 = vadd.f32 %v4032, %v4039
    %v4043 = vld [vmem:[%s18] sm:$0x1]
    %v4044 = vld [vmem:[%s19] sm:$0x1]
    %4045 = vadd.xlane.f32.xlu0 %v4041
    %v4046 = vpop.xlane.xlu0 %4045
    %v4047 = vsel %vm665, %v4042, 0.0
    %4048 = vadd.xlane.f32.xlu0 %v4047
    %v4049 = vpop.xlane.xlu0 %4048
    %v4050 = vmul.f32 %v4046, %v669
    %v4051 = vmul.f32 %v4049, %v669
    %v4052 = vsub.f32 %v4041, %v4050
    %v4053 = vsub.f32 %v4042, %v4051
    %v4054 = vmul.f32 %v4052, %v4052
    %v4055 = vmul.f32 %v4053, %v4053
    %4056 = vadd.xlane.f32.xlu0 %v4054
    %v4057 = vpop.xlane.xlu0 %4056
    %v4058 = vsel %vm665, %v4055, 0.0
    %4059 = vadd.xlane.f32.xlu0 %v4058
    %v4060 = vpop.xlane.xlu0 %4059
    %v4061 = vmul.f32 %v4057, %v669
    %v4062 = vmul.f32 %v4060, %v669
    %v4063 = vadd.f32 %v4061, 1e-06
    %v4064 = vadd.f32 %v4062, 1e-06
    %v4065 = vrsqrt.pop %v4063
    %v4066 = vrsqrt.pop %v4064
    %v4067 = vmul.f32 %v4052, %v4065
    %v4068 = vmul.f32 %v4053, %v4066
    %v4070 = vlaneseq
    %v4071 = vshrl.u32 %v4070, 7
    %v4072 = vsub.s32 0, %v4071
    %v4073 = vrot.slane %v4043, %v4072
    %v4075 = vmul.f32 %v4067, %v4073
    %v4076 = vmul.f32 %v4068, %v4073
    %v4078 = vlaneseq
    %v4079 = vshrl.u32 %v4078, 7
    %v4080 = vsub.s32 0, %v4079
    %v4081 = vrot.slane %v4044, %v4080
    %v4083 = vadd.f32 %v4075, %v4081
    %v4084 = vadd.f32 %v4076, %v4081
    %v4085 = vld [vmem:[%s20] sm:$0xf]
    %v4086 = vld [vmem:[%s20 + $0x4] sm:$0xf]
    %v4087 = vld [vmem:[%s20 + $0x8] sm:$0xf]
    %v4088 = vld [vmem:[%s20 + $0xc] sm:$0xf]
    %v4089 = vld [vmem:[%s20 + $0x10] sm:$0xf]
    %v4090 = vld [vmem:[%s20 + $0x14] sm:$0xf]
    %v4091 = vld [vmem:[%s20 + $0x18] sm:$0xf]
    %v4092 = vld [vmem:[%s20 + $0x1c] sm:$0xf]
    %v4093 = vld [vmem:[%s20 + $0x20] sm:$0xf]
    %v4094 = vld [vmem:[%s20 + $0x24] sm:$0xf]
    %v4095 = vld [vmem:[%s20 + $0x28] sm:$0xf]
    %v4096 = vld [vmem:[%s20 + $0x2c] sm:$0xf]
    %v4097 = vld [vmem:[%s20 + $0x30] sm:$0xf]
    %v4098 = vld [vmem:[%s20 + $0x34] sm:$0xf]
    %v4099 = vld [vmem:[%s20 + $0x38] sm:$0xf]
    %v4100 = vld [vmem:[%s20 + $0x3c] sm:$0xf]
    %v4101 = vpack.c.bf16 %v4084, %v4083
    %v4102 = vld [vmem:[%s21] sm:$0x1]
    %v4104 = vlaneseq
    %v4105 = vshrl.u32 %v4104, 7
    %v4106 = vsub.s32 0, %v4105
    %v4107 = vrot.slane %v4102, %v4106
    %v4125 = vunpack.c.l.b16 %v4085
    %v4126 = vunpack.c.l.b16 %v4086
    %v4127 = vunpack.c.l.b16 %v4087
    %v4128 = vunpack.c.l.b16 %v4088
    %v4129 = vunpack.c.l.b16 %v4089
    %v4130 = vunpack.c.l.b16 %v4090
    %v4131 = vunpack.c.l.b16 %v4091
    %v4132 = vunpack.c.l.b16 %v4092
    %v4133 = vunpack.c.l.b16 %v4093
    %v4134 = vunpack.c.l.b16 %v4094
    %v4135 = vunpack.c.l.b16 %v4095
    %v4136 = vunpack.c.l.b16 %v4096
    %v4137 = vunpack.c.l.b16 %v4097
    %v4138 = vunpack.c.l.b16 %v4098
    %v4139 = vunpack.c.l.b16 %v4099
    %v4140 = vunpack.c.l.b16 %v4100
    %v4141 = vpack.c.b16 %v4126, %v4125
    %v4142 = vpack.c.b16 %v4128, %v4127
    %v4143 = vpack.c.b16 %v4130, %v4129
    %v4144 = vpack.c.b16 %v4132, %v4131
    %v4145 = vpack.c.b16 %v4134, %v4133
    %v4146 = vpack.c.b16 %v4136, %v4135
    %v4147 = vpack.c.b16 %v4138, %v4137
    %v4148 = vpack.c.b16 %v4140, %v4139
    %4157 = vmatprep.subr.bf16.mxu0 0
    %4158 = vmatpush1.bf16.msra.mxu0 %v4141
    %4159 = vmatprep.subr.bf16.mxu0 0
    %4160 = vmatpush1.bf16.msra.mxu0 %v4142
    %4161 = vmatprep.subr.bf16.mxu0 0
    %4162 = vmatpush1.bf16.msra.mxu0 %v4143
    %4163 = vmatprep.subr.bf16.mxu0 0
    %4164 = vmatpush1.bf16.msra.mxu0 %v4144
    %4165 = vmatprep.subr.bf16.mxu0 0
    %4166 = vmatpush1.bf16.msra.mxu0 %v4145
    %4167 = vmatprep.subr.bf16.mxu0 0
    %4168 = vmatpush1.bf16.msra.mxu0 %v4146
    %4169 = vmatprep.subr.bf16.mxu0 0
    %4170 = vmatpush1.bf16.msra.mxu0 %v4147
    %4171 = vmatprep.subr.bf16.mxu0 0
    %4172 = vmatpush1.bf16.msra.mxu0 %v4148
    %4173 = vmatprep.subr.bf16.mxu0 0
    %4174 = vmatpush1.bf16.msra.mxu0 0
    %4175 = vmatprep.subr.bf16.mxu0 0
    %4176 = vmatpush1.bf16.msra.mxu0 0
    %4177 = vmatprep.subr.bf16.mxu0 0
    %4178 = vmatpush1.bf16.msra.mxu0 0
    %4179 = vmatprep.subr.bf16.mxu0 0
    %4180 = vmatpush1.bf16.msra.mxu0 0
    %4181 = vmatprep.subr.bf16.mxu0 0
    %4182 = vmatpush1.bf16.msra.mxu0 0
    %4183 = vmatprep.subr.bf16.mxu0 0
    %4184 = vmatpush1.bf16.msra.mxu0 0
    %4185 = vmatprep.subr.bf16.mxu0 0
    %4186 = vmatpush1.bf16.msra.mxu0 0
    %4187 = vmatprep.subr.bf16.mxu0 0
    %4188 = vmatpush1.bf16.msra.mxu0 0
    %4189 = vmatprep.mubr.bf16.mxu0 0
    %4190 = vmatmul.mubr.bf16.gmra.mrb[0].mxu0 %v4101
    %v4191 = vpop.f32.mrb[0].mxu0
    %v4192 = vadd.f32 %v4107, %v4191
    %v4193 = vpop.f32.mrb[0].mxu0
    %v4194 = vpop.f32.mrb[0].mxu0
    %v4195 = vpop.f32.mrb[0].mxu0
    %4196 = vdwg.mxu0
    %vm4197 = vcmask 48128
    %v4198 = vsel %vm4197, %v4192, -inf
    %4199 = vmax.xlane.f32.xlu0 %v4198
    %v4200 = vpop.xlane.xlu0 %4199
    %v4201 = vsub.f32 %v4192, %v4200
    %v4202 = vmul.f32 %v4201, 1.442695
    %v4203 = vpow.pop %v4202
    %v4204 = vsel %vm4197, %v4203, 0.0
    %4205 = vadd.xlane.f32.xlu0 %v4204
    %v4206 = vpop.xlane.xlu0 %4205
    %v4207 = vlog2.pop %v4206
    %v4208 = vmul.f32 %v4207, 0.6931472
    %v4209 = vadd.f32 %v4200, %v4208
    %v4210 = vsub.f32 %v4192, %v4209
    %vm4211 = vcmask 40960
    %4212 = vst.msk [vmem:[#allocation2] sm:$0x1] %vm4211, %v4210
    %vm4213 = vcmask 46085
    %4214 = vst.msk [vmem:[#allocation2 - $0x4] sm:$0x20] %vm4213, %v4210
    // Predicated region
    $region90: #{forward.1} parent=1 // pred_check
      _
    $region91: #{forward.1} parent=1 // pred_check_branch
      %4216 = sbr.rel (0) target = $region93
    $region92: #{forward.1} parent=1 // pred_region
      %s4218 = ssub.s32 32, 32
      %4219 = vsyncadd [#allocation3], %s4218
      %s4221 = sshll.u32 [#allocation2], 4
      %s4222 = int_to_ptr.vmem [resolvable:$true] %s4221
      %4224 = dma.vmem_to_hbm [thread:$0]  %s4222, 32, %s22, [#allocation3]
    $region93: #{forward.1} parent=1 // pred_fallthru
      _
    // Predicated region
    $region94: #{forward.1} parent=1 // pred_check
      _
    $region95: #{forward.1} parent=1 // pred_check_branch
      %4226 = sbr.rel (0) target = $region97
    $region96: #{forward.1} parent=1 // pred_region
      %4227 = dma.done [#allocation3], 32
    $region97: #{forward.1} parent=1 // pred_fallthru
      _
    %4228 = vsyncpa [#allocation3], 1

</llo_original>
